<compile_context>
chip_gen: v7x
topology: tpu7x:2x2x1
jax: 0.10.0
libtpu: 0.0.40
codegen_flags: <defaults>
</compile_context>

<pallas_src>
import jax
import jax.numpy as jnp
from jax.experimental import pallas as pl
from jax.experimental.pallas import tpu as pltpu


# ---------------------------------------------------------------------------
# Kernel
# ---------------------------------------------------------------------------
def _generator_kernel(x_ref, enc_w_ref, enc_b_ref, dec_w_ref, dec_b_ref, o_ref):
    """Fused encoder+decoder for one (batch, tn) slab of decoder output features.

    bf16 MXU inputs, f32 accumulation, f32 bias-add / ReLU.
    """
    w_dtype = enc_w_ref.dtype
    h = jnp.dot(x_ref[...].astype(w_dtype), enc_w_ref[...],
                preferred_element_type=jnp.float32)
    h = jnp.maximum(h + enc_b_ref[...].astype(jnp.float32), 0.0)
    y = jnp.dot(h.astype(dec_w_ref.dtype), dec_w_ref[...],
                preferred_element_type=jnp.float32)
    y = jnp.maximum(y + dec_b_ref[...].astype(jnp.float32), 0.0)
    o_ref[...] = y.astype(o_ref.dtype)


# ---------------------------------------------------------------------------
# Helpers
# ---------------------------------------------------------------------------
def _block_spec(block_shape, index_map, *, single_buffer=False):
    """BlockSpec, optionally requesting a single VMEM buffer (constant-index blocks)."""
    if single_buffer and hasattr(pl, "Buffered"):
        try:
            return pl.BlockSpec(block_shape, index_map, pipeline_mode=pl.Buffered(1))
        except TypeError:
            pass  # older JAX without pipeline_mode kwarg
    return pl.BlockSpec(block_shape, index_map)


def _tensorcores_per_chip():
    """2 on v7x (megacore), 1 on v5e/v6e (and anything we can't identify)."""
    try:
        kind = (getattr(jax.devices()[0], "device_kind", "") or "").lower()
        if "v7" in kind:
            return 2
    except Exception:
        pass
    return 1


# ---------------------------------------------------------------------------
# pallas_call wrapper
# ---------------------------------------------------------------------------
def generator_forward_pallas(x, enc_w, enc_b, dec_w, dec_b, *,
                             n_splits=None, single_buffer=True):
    """decoded = relu(relu(x @ enc_w + enc_b) @ dec_w + dec_b) in one pallas_call.

    x:     (M, D) f32     enc_w: (D, H) bf16   enc_b: (1, H) f32
    dec_w: (H, N) bf16    dec_b: (1, N) f32    ->    (M, N) f32

    Weights are streamed from HBM exactly once per call, so throughput scales
    nearly linearly with M — batch as many activation rows per call as possible.
    """
    M, D = x.shape
    Dw, H = enc_w.shape
    Hw, N = dec_w.shape
    assert D == Dw and H == Hw
    assert enc_b.shape == (1, H) and dec_b.shape == (1, N)

    if n_splits is None:
        # The decoder-feature split only pays off with >=2 TensorCores (v7x);
        # on single-TC v5e/v6e it is pure per-step overhead + a duplicated
        # encoder matmul, so collapse it.
        n_splits = _tensorcores_per_chip()
    # Keep decoder output tiles lane-dense (multiple of 128) or collapse the split.
    if n_splits > 1 and (N % n_splits != 0 or (N // n_splits) % 128 != 0):
        n_splits = 1
    tn = N // n_splits

    w_bytes = jnp.dtype(enc_w.dtype).itemsize
    x_bytes = jnp.dtype(x.dtype).itemsize

    # Advisory cost hint: two matmuls; HBM traffic dominated by (bf16) weights.
    cost = pl.CostEstimate(
        flops=2 * M * D * H + 2 * M * H * N,
        transcendentals=0,
        bytes_accessed=(x_bytes * M * D + w_bytes * D * H + 4 * H
                        + w_bytes * H * N + 4 * N + x_bytes * M * N),
    )

    # VMEM budget estimate (v7x has only 64 MiB physical / 32 MiB default scoped).
    dec_bufs = 1 if (n_splits == 1 and single_buffer) else 2
    vmem_est = (
        x_bytes * M * D + w_bytes * D * H + 4 * H          # resident blocks
        + dec_bufs * (w_bytes * H * tn + 4 * tn)           # dec_w / dec_b buffers
        + 2 * x_bytes * M * tn                             # output buffers
        + 4 * M * (H + tn)                                 # f32 intermediates
    )
    vmem_limit = None
    if vmem_est > 28 * 1024 * 1024:
        # TODO(synk): if this grows past ~48 MiB on v7x, reintroduce a K-tiled
        # "arbitrary" reduction axis with an f32 accumulator instead of raising it.
        vmem_limit = min(int(vmem_est * 1.25), 96 * 1024 * 1024)

    sem = ("parallel",) if n_splits > 1 else ("arbitrary",)
    # TODO(synk): on v7x, confirm with xprof that the 2-step "parallel" axis really
    # lands on both TensorCores; if not, switch this axis to pltpu.CORE_PARALLEL.

    const_sb = single_buffer                  # constant-index blocks: 1 buffer is enough
    dec_sb = single_buffer and n_splits == 1  # with a 1-step grid, same for dec_w/dec_b

    return pl.pallas_call(
        _generator_kernel,
        out_shape=jax.ShapeDtypeStruct((M, N), x.dtype),
        grid_spec=pltpu.PrefetchScalarGridSpec(
            num_scalar_prefetch=0,
            grid=(n_splits,),
            in_specs=[
                _block_spec((M, D), lambda j: (0, 0), single_buffer=const_sb),   # x
                _block_spec((D, H), lambda j: (0, 0), single_buffer=const_sb),   # enc_w
                _block_spec((1, H), lambda j: (0, 0), single_buffer=const_sb),   # enc_b
                _block_spec((H, tn), lambda j: (0, j), single_buffer=dec_sb),    # dec_w
                _block_spec((1, tn), lambda j: (0, j), single_buffer=dec_sb),    # dec_b
            ],
            out_specs=pl.BlockSpec((M, tn), lambda j: (0, j)),
        ),
        compiler_params=pltpu.CompilerParams(
            dimension_semantics=sem,
            vmem_limit_bytes=vmem_limit,
        ),
        cost_estimate=cost,
    )(x, enc_w, enc_b, dec_w, dec_b)


# ---------------------------------------------------------------------------
# Parameter init (matches the PyTorch module: xavier_normal_ weights,
# default U(-1/sqrt(fan_in), 1/sqrt(fan_in)) biases), stored transposed.
# ---------------------------------------------------------------------------
def xavier_normal(key, out_features, in_features, dtype=jnp.float32):
    std = (2.0 / (in_features + out_features)) ** 0.5
    return std * jax.random.normal(key, (out_features, in_features), dtype=dtype)


def init_generator_params(key, input_dim, hidden_dim, weight_dtype=jnp.bfloat16):
    k_enc_w, k_enc_b, k_dec_w, k_dec_b = jax.random.split(key, 4)
    enc_w = xavier_normal(k_enc_w, hidden_dim, input_dim)
    dec_w = xavier_normal(k_dec_w, input_dim, hidden_dim)
    enc_b = jax.random.uniform(k_enc_b, (1, hidden_dim), jnp.float32,
                               -1.0 / input_dim ** 0.5, 1.0 / input_dim ** 0.5)
    dec_b = jax.random.uniform(k_dec_b, (1, input_dim), jnp.float32,
                               -1.0 / hidden_dim ** 0.5, 1.0 / hidden_dim ** 0.5)
    return {
        "enc_w": enc_w.T.astype(weight_dtype),   # (input_dim, hidden_dim) for x @ W
        "enc_b": enc_b,                          # biases stay f32 (f32 bias-add/ReLU)
        "dec_w": dec_w.T.astype(weight_dtype),   # (hidden_dim, input_dim)
        "dec_b": dec_b,
    }


# ---------------------------------------------------------------------------
# Forward + pure-JAX reference
# ---------------------------------------------------------------------------
_SINGLE_BUFFER_OK = None  # cached: does this JAX accept pipeline_mode=pl.Buffered(1)?


def generator_forward(params, x):
    global _SINGLE_BUFFER_OK
    args = (x, params["enc_w"], params["enc_b"], params["dec_w"], params["dec_b"])
    if _SINGLE_BUFFER_OK is None:
        try:
            out = generator_forward_pallas(*args, single_buffer=True)
            jax.block_until_ready(out)
            _SINGLE_BUFFER_OK = True
            return out
        except Exception:
            _SINGLE_BUFFER_OK = False
    return generator_forward_pallas(*args, single_buffer=_SINGLE_BUFFER_OK)


def generator_forward_ref(params, x):
    """Pure-JAX reference mirroring the kernel math (bf16 MXU inputs, f32 accum)."""
    wdt = params["enc_w"].dtype
    h = jnp.dot(x.astype(wdt), params["enc_w"], preferred_element_type=jnp.float32)
    h = jnp.maximum(h + params["enc_b"].astype(jnp.float32), 0.0)
    y = jnp.dot(h.astype(wdt), params["dec_w"], preferred_element_type=jnp.float32)
    return jnp.maximum(y + params["dec_b"].astype(jnp.float32), 0.0).astype(x.dtype)


if __name__ == "__main__":
    # Small shapes consistent with the module (input_dim/hidden_dim scaled down
    # from 10752/512; keep multiples of 128 so tiles stay lane-dense).
    batch, input_dim, hidden_dim = 8, 1024, 256

    key = jax.random.PRNGKey(0)
    k_params, k_x = jax.random.split(key)
    params = init_generator_params(k_params, input_dim, hidden_dim)
    x = jax.random.normal(k_x, (batch, input_dim), jnp.float32)

    out = generator_forward(params, x)
    jax.block_until_ready(out)

    ref = generator_forward_ref(params, x)
    assert out.shape == (batch, input_dim)
    assert jnp.allclose(out, ref, atol=2e-3, rtol=2e-3), "mismatch vs JAX reference"

    print("KERNEL_OK")
</pallas_src>

<mosaic_0001>
module attributes {stable_mosaic.version = 11 : i64} {
  func.func @_generator_kernel(%arg0: i32, %arg1: memref<8x1024xf32, #tpu.memory_space<vmem>>, %arg2: memref<1024x256xbf16, #tpu.memory_space<vmem>>, %arg3: memref<1x256xf32, #tpu.memory_space<vmem>>, %arg4: memref<256x1024xbf16, #tpu.memory_space<vmem>>, %arg5: memref<1x1024xf32, #tpu.memory_space<vmem>>, %arg6: memref<8x1024xf32, #tpu.memory_space<vmem>>) attributes {dimension_semantics = [#tpu.dimension_semantics<arbitrary>], iteration_bounds = array<i64: 1>, scalar_prefetch = 0 : i64, scratch_operands = 0 : i64, tpu.core_type = #tpu.core_type<tc>, window_params = [{pipeline_mode = #tpu.pipeline_mode<synchronous>, transform_indices = @transform_0, window_bounds = array<i64: 8, 1024>}, {pipeline_mode = #tpu.pipeline_mode<synchronous>, transform_indices = @transform_1, window_bounds = array<i64: 1024, 256>}, {pipeline_mode = #tpu.pipeline_mode<synchronous>, transform_indices = @transform_2, window_bounds = array<i64: 1, 256>}, {pipeline_mode = #tpu.pipeline_mode<synchronous>, transform_indices = @transform_3, window_bounds = array<i64: 256, 1024>}, {pipeline_mode = #tpu.pipeline_mode<synchronous>, transform_indices = @transform_4, window_bounds = array<i64: 1, 1024>}, {transform_indices = @transform_5, window_bounds = array<i64: 8, 1024>}]} {
    %c0 = arith.constant 0 : index
    %c0_0 = arith.constant 0 : index
    %0 = vector.load %arg1[%c0, %c0_0] : memref<8x1024xf32, #tpu.memory_space<vmem>>, vector<8x1024xf32>
    %1 = arith.truncf %0 : vector<8x1024xf32> to vector<8x1024xbf16>
    %c0_1 = arith.constant 0 : index
    %c0_2 = arith.constant 0 : index
    %2 = vector.load %arg2[%c0_1, %c0_2] : memref<1024x256xbf16, #tpu.memory_space<vmem>>, vector<1024x256xbf16>
    %cst = arith.constant dense<0.000000e+00> : vector<8x256xf32>
    %3 = tpu.matmul %1, %2, %cst {dimension_numbers = #tpu.dot_dimension_numbers<[1], [0], [0], [1], [0, 0, 1, 1], [], []>} : vector<8x1024xbf16>, vector<1024x256xbf16>, vector<8x256xf32> -> vector<8x256xf32>
    %c0_3 = arith.constant 0 : index
    %c0_4 = arith.constant 0 : index
    %4 = vector.load %arg3[%c0_3, %c0_4] : memref<1x256xf32, #tpu.memory_space<vmem>>, vector<1x256xf32>
    %5 = vector.broadcast %4 : vector<1x256xf32> to vector<8x256xf32>
    %6 = arith.addf %3, %5 : vector<8x256xf32>
    %cst_5 = arith.constant 0.000000e+00 : f32
    %7 = vector.broadcast %cst_5 : f32 to vector<8x256xf32>
    %8 = arith.maximumf %6, %7 : vector<8x256xf32>
    %9 = arith.truncf %8 : vector<8x256xf32> to vector<8x256xbf16>
    %c0_6 = arith.constant 0 : index
    %c0_7 = arith.constant 0 : index
    %10 = vector.load %arg4[%c0_6, %c0_7] : memref<256x1024xbf16, #tpu.memory_space<vmem>>, vector<256x1024xbf16>
    %cst_8 = arith.constant dense<0.000000e+00> : vector<8x1024xf32>
    %11 = tpu.matmul %9, %10, %cst_8 {dimension_numbers = #tpu.dot_dimension_numbers<[1], [0], [0], [1], [0, 0, 1, 1], [], []>} : vector<8x256xbf16>, vector<256x1024xbf16>, vector<8x1024xf32> -> vector<8x1024xf32>
    %c0_9 = arith.constant 0 : index
    %c0_10 = arith.constant 0 : index
    %12 = vector.load %arg5[%c0_9, %c0_10] : memref<1x1024xf32, #tpu.memory_space<vmem>>, vector<1x1024xf32>
    %13 = vector.broadcast %12 : vector<1x1024xf32> to vector<8x1024xf32>
    %14 = arith.addf %11, %13 : vector<8x1024xf32>
    %cst_11 = arith.constant 0.000000e+00 : f32
    %15 = vector.broadcast %cst_11 : f32 to vector<8x1024xf32>
    %16 = arith.maximumf %14, %15 : vector<8x1024xf32>
    %c0_12 = arith.constant 0 : index
    %c0_13 = arith.constant 0 : index
    %17 = vector.load %arg6[%c0_12, %c0_13] : memref<8x1024xf32, #tpu.memory_space<vmem>>, vector<8x1024xf32>
    tpu.vector_store %arg6[%c0_12, %c0_13], %16 {strides = array<i32>} : memref<8x1024xf32, #tpu.memory_space<vmem>>, vector<8x1024xf32>,
    return
  }
  func.func @transform_0(%arg0: i32) -> (i32, i32) {
    %c0_i32 = arith.constant 0 : i32
    %c0_i32_0 = arith.constant 0 : i32
    %c0_i32_1 = arith.constant 0 : i32
    return %c0_i32, %c0_i32_0 : i32, i32
  }
  func.func @transform_1(%arg0: i32) -> (i32, i32) {
    %c0_i32 = arith.constant 0 : i32
    %c0_i32_0 = arith.constant 0 : i32
    %c0_i32_1 = arith.constant 0 : i32
    return %c0_i32, %c0_i32_0 : i32, i32
  }
  func.func @transform_2(%arg0: i32) -> (i32, i32) {
    %c0_i32 = arith.constant 0 : i32
    %c0_i32_0 = arith.constant 0 : i32
    %c0_i32_1 = arith.constant 0 : i32
    return %c0_i32, %c0_i32_0 : i32, i32
  }
  func.func @transform_3(%arg0: i32) -> (i32, i32) {
    %c0_i32 = arith.constant 0 : i32
    %c0_i32_0 = arith.constant 0 : i32
    return %c0_i32, %arg0 : i32, i32
  }
  func.func @transform_4(%arg0: i32) -> (i32, i32) {
    %c0_i32 = arith.constant 0 : i32
    %c0_i32_0 = arith.constant 0 : i32
    return %c0_i32, %arg0 : i32, i32
  }
  func.func @transform_5(%arg0: i32) -> (i32, i32) {
    %c0_i32 = arith.constant 0 : i32
    %c0_i32_0 = arith.constant 0 : i32
    return %c0_i32, %arg0 : i32, i32
  }
}

module attributes {stable_mosaic.version = 11 : i64} {
  func.func @_generator_kernel(%arg0: i32, %arg1: memref<8x1024xf32, #tpu.memory_space<vmem>>, %arg2: memref<1024x256xbf16, #tpu.memory_space<vmem>>, %arg3: memref<1x256xf32, #tpu.memory_space<vmem>>, %arg4: memref<256x1024xbf16, #tpu.memory_space<vmem>>, %arg5: memref<1x1024xf32, #tpu.memory_space<vmem>>, %arg6: memref<8x1024xf32, #tpu.memory_space<vmem>>) attributes {dimension_semantics = [#tpu.dimension_semantics<arbitrary>], iteration_bounds = array<i64: 1>, scalar_prefetch = 0 : i64, scratch_operands = 0 : i64, tpu.core_type = #tpu.core_type<tc>, window_params = [{pipeline_mode = #tpu.pipeline_mode<synchronous>, transform_indices = @transform_0, window_bounds = array<i64: 8, 1024>}, {pipeline_mode = #tpu.pipeline_mode<synchronous>, transform_indices = @transform_1, window_bounds = array<i64: 1024, 256>}, {pipeline_mode = #tpu.pipeline_mode<synchronous>, transform_indices = @transform_2, window_bounds = array<i64: 1, 256>}, {transform_indices = @transform_3, window_bounds = array<i64: 256, 1024>}, {transform_indices = @transform_4, window_bounds = array<i64: 1, 1024>}, {transform_indices = @transform_5, window_bounds = array<i64: 8, 1024>}]} {
    %c0 = arith.constant 0 : index
    %c0_0 = arith.constant 0 : index
    %0 = vector.load %arg1[%c0, %c0_0] : memref<8x1024xf32, #tpu.memory_space<vmem>>, vector<8x1024xf32>
    %1 = arith.truncf %0 : vector<8x1024xf32> to vector<8x1024xbf16>
    %c0_1 = arith.constant 0 : index
    %c0_2 = arith.constant 0 : index
    %2 = vector.load %arg2[%c0_1, %c0_2] : memref<1024x256xbf16, #tpu.memory_space<vmem>>, vector<1024x256xbf16>
    %cst = arith.constant dense<0.000000e+00> : vector<8x256xf32>
    %3 = tpu.matmul %1, %2, %cst {dimension_numbers = #tpu.dot_dimension_numbers<[1], [0], [0], [1], [0, 0, 1, 1], [], []>} : vector<8x1024xbf16>, vector<1024x256xbf16>, vector<8x256xf32> -> vector<8x256xf32>
    %c0_3 = arith.constant 0 : index
    %c0_4 = arith.constant 0 : index
    %4 = vector.load %arg3[%c0_3, %c0_4] : memref<1x256xf32, #tpu.memory_space<vmem>>, vector<1x256xf32>
    %5 = vector.broadcast %4 : vector<1x256xf32> to vector<8x256xf32>
    %6 = arith.addf %3, %5 : vector<8x256xf32>
    %cst_5 = arith.constant 0.000000e+00 : f32
    %7 = vector.broadcast %cst_5 : f32 to vector<8x256xf32>
    %8 = arith.maximumf %6, %7 : vector<8x256xf32>
    %9 = arith.truncf %8 : vector<8x256xf32> to vector<8x256xbf16>
    %c0_6 = arith.constant 0 : index
    %c0_7 = arith.constant 0 : index
    %10 = vector.load %arg4[%c0_6, %c0_7] : memref<256x1024xbf16, #tpu.memory_space<vmem>>, vector<256x1024xbf16>
    %cst_8 = arith.constant dense<0.000000e+00> : vector<8x1024xf32>
    %11 = tpu.matmul %9, %10, %cst_8 {dimension_numbers = #tpu.dot_dimension_numbers<[1], [0], [0], [1], [0, 0, 1, 1], [], []>} : vector<8x256xbf16>, vector<256x1024xbf16>, vector<8x1024xf32> -> vector<8x1024xf32>
    %c0_9 = arith.constant 0 : index
    %c0_10 = arith.constant 0 : index
    %12 = vector.load %arg5[%c0_9, %c0_10] : memref<1x1024xf32, #tpu.memory_space<vmem>>, vector<1x1024xf32>
    %13 = vector.broadcast %12 : vector<1x1024xf32> to vector<8x1024xf32>
    %14 = arith.addf %11, %13 : vector<8x1024xf32>
    %cst_11 = arith.constant 0.000000e+00 : f32
    %15 = vector.broadcast %cst_11 : f32 to vector<8x1024xf32>
    %16 = arith.maximumf %14, %15 : vector<8x1024xf32>
    %c0_12 = arith.constant 0 : index
    %c0_13 = arith.constant 0 : index
    %17 = vector.load %arg6[%c0_12, %c0_13] : memref<8x1024xf32, #tpu.memory_space<vmem>>, vector<8x1024xf32>
    tpu.vector_store %arg6[%c0_12, %c0_13], %16 {strides = array<i32>} : memref<8x1024xf32, #tpu.memory_space<vmem>>, vector<8x1024xf32>,
    return
  }
  func.func @transform_0(%arg0: i32) -> (i32, i32) {
    %c0_i32 = arith.constant 0 : i32
    %c0_i32_0 = arith.constant 0 : i32
    %c0_i32_1 = arith.constant 0 : i32
    return %c0_i32, %c0_i32_0 : i32, i32
  }
  func.func @transform_1(%arg0: i32) -> (i32, i32) {
    %c0_i32 = arith.constant 0 : i32
    %c0_i32_0 = arith.constant 0 : i32
    %c0_i32_1 = arith.constant 0 : i32
    return %c0_i32, %c0_i32_0 : i32, i32
  }
  func.func @transform_2(%arg0: i32) -> (i32, i32) {
    %c0_i32 = arith.constant 0 : i32
    %c0_i32_0 = arith.constant 0 : i32
    %c0_i32_1 = arith.constant 0 : i32
    return %c0_i32, %c0_i32_0 : i32, i32
  }
  func.func @transform_3(%arg0: i32) -> (i32, i32) {
    %c0_i32 = arith.constant 0 : i32
    %c0_i32_0 = arith.constant 0 : i32
    return %c0_i32, %arg0 : i32, i32
  }
  func.func @transform_4(%arg0: i32) -> (i32, i32) {
    %c0_i32 = arith.constant 0 : i32
    %c0_i32_0 = arith.constant 0 : i32
    return %c0_i32, %arg0 : i32, i32
  }
  func.func @transform_5(%arg0: i32) -> (i32, i32) {
    %c0_i32 = arith.constant 0 : i32
    %c0_i32_0 = arith.constant 0 : i32
    return %c0_i32, %arg0 : i32, i32
  }
}

</mosaic_0001>

<llo_original>
// kernel: tpu_custom_call.1
$region0: #{tpu_custom_call.1}
  #allocation0 [shape = 'u32[]', space=smem, size = 0x4, offset = 0x4, fixed_abs, tag = 'smem constant byte address 0x4 - core index']
  #allocation1 [shape = 'u32[144,128]{1,0:T(1,128)}', space=vmem, size = 0x12000, scoped, tag = 'internal scratch']
  %s0 = inlined_call_operand.hbm [shape: f32[8,1024], index: 0, kind: input, shape index: {}]
  %s1 = inlined_call_operand.hbm [shape: bf16[1024,256], index: 1, kind: input, shape index: {}]
  %s2 = inlined_call_operand.vmem [shape: f32[1,256], index: 2, kind: input, shape index: {}]
  %s3 = inlined_call_operand.hbm [shape: bf16[256,1024], index: 3, kind: input, shape index: {}]
  %s4 = inlined_call_operand.vmem [shape: f32[1,1024], index: 4, kind: input, shape index: {}]
  %s5 = inlined_call_operand.hbm [shape: f32[8,1024], index: 5, kind: output, shape index: {}]
  %s6 = sld [smem:[#allocation0]]
  $region42: #{tpu_custom_call.1} parent=0
    _
  %s8 = ssub.s32 1, %s6
  %s9 = scalar_select 0, %s8, %s6
  $region1: #{tpu_custom_call.1} parent=0
    #allocation2 [shape = 'u8[32768]{0}', space=vmem, size = 0x8000, scoped, tag = 'input window, operand 0, single buffered']
    #allocation3 [shape = 's32[1]{0}', space=sflag, size = 0x4, scoped, tag = 'scoped memory for tpu_custom_call.1']
    #allocation4 [shape = 's32[1]{0}', space=sflag, size = 0x4, scoped, tag = 'scoped memory for tpu_custom_call.1']
    #allocation5 [shape = 'u8[524288]{0}', space=vmem, size = 0x80000, scoped, tag = 'input window, operand 1, single buffered']
    #allocation6 [shape = 's32[1]{0}', space=sflag, size = 0x4, scoped, tag = 'scoped memory for tpu_custom_call.1']
    #allocation7 [shape = 'u8[524288]{0}', space=vmem, size = 0x80000, scoped, tag = 'input window, operand 3, single buffered']
    #allocation8 [shape = 'u8[32768]{0}', space=vmem, size = 0x8000, scoped, tag = 'output window, operand 0, single buffered']
    %10 = vsyncpa [#allocation3], 0
    %11 = vsyncpa [#allocation6], 0
    %12 = vsyncpa [#allocation4], 0
    // Predicated region
    $region2: #{tpu_custom_call.1} parent=1 // pred_check
      _
    $region3: #{tpu_custom_call.1} parent=1 // pred_check_branch
      %14 = sbr.rel (0) target = $region5
    $region4: #{tpu_custom_call.1} parent=1 // pred_region
      %s16 = ssub.s32 1024, 1024
      %17 = vsyncadd [#allocation3], %s16
      %s19 = sshll.u32 [#allocation2], 4
      %s20 = int_to_ptr.vmem [resolvable:$true] %s19
      %22 = dma.hbm_to_vmem [thread:$0]  %s0, 1024, %s20, [#allocation3]
    $region5: #{tpu_custom_call.1} parent=1 // pred_fallthru
      _
    // Predicated region
    $region6: #{tpu_custom_call.1} parent=1 // pred_check
      _
    $region7: #{tpu_custom_call.1} parent=1 // pred_check_branch
      %24 = sbr.rel (0) target = $region9
    $region8: #{tpu_custom_call.1} parent=1 // pred_region
      %s26 = ssub.s32 16384, 16384
      %27 = vsyncadd [#allocation6], %s26
      %s28 = sshll.u32 [#allocation5], 4
      %s29 = int_to_ptr.vmem [resolvable:$true] %s28
      %34 = dma.hbm_to_vmem [thread:$0]  %s1, 16384, %s29, [#allocation6], 128, 128, 8
    $region9: #{tpu_custom_call.1} parent=1 // pred_fallthru
      _
    // Predicated region
    $region10: #{tpu_custom_call.1} parent=1 // pred_check
      _
    $region11: #{tpu_custom_call.1} parent=1 // pred_check_branch
      %36 = sbr.rel (0) target = $region13
    $region12: #{tpu_custom_call.1} parent=1 // pred_region
      _
    $region13: #{tpu_custom_call.1} parent=1 // pred_fallthru
      _
    // Predicated region
    $region14: #{tpu_custom_call.1} parent=1 // pred_check
      _
    $region15: #{tpu_custom_call.1} parent=1 // pred_check_branch
      %38 = sbr.rel (0) target = $region17
    $region16: #{tpu_custom_call.1} parent=1 // pred_region
      %s40 = ssub.s32 16384, 16384
      %41 = vsyncadd [#allocation6], %s40
      %s42 = sshll.u32 [#allocation7], 4
      %s43 = int_to_ptr.vmem [resolvable:$true] %s42
      %48 = dma.hbm_to_vmem [thread:$0]  %s3, 16384, %s43, [#allocation6], 512, 512, 32
    $region17: #{tpu_custom_call.1} parent=1 // pred_fallthru
      _
    // Predicated region
    $region18: #{tpu_custom_call.1} parent=1 // pred_check
      _
    $region19: #{tpu_custom_call.1} parent=1 // pred_check_branch
      %50 = sbr.rel (0) target = $region21
    $region20: #{tpu_custom_call.1} parent=1 // pred_region
      _
    $region21: #{tpu_custom_call.1} parent=1 // pred_fallthru
      _
    // Predicated region
    $region22: #{tpu_custom_call.1} parent=1 // pred_check
      _
    $region23: #{tpu_custom_call.1} parent=1 // pred_check_branch
      %52 = sbr.rel (0) target = $region25
    $region24: #{tpu_custom_call.1} parent=1 // pred_region
      %53 = dma.done [#allocation3], 1024
    $region25: #{tpu_custom_call.1} parent=1 // pred_fallthru
      _
    // Predicated region
    $region26: #{tpu_custom_call.1} parent=1 // pred_check
      _
    $region27: #{tpu_custom_call.1} parent=1 // pred_check_branch
      %55 = sbr.rel (0) target = $region29
    $region28: #{tpu_custom_call.1} parent=1 // pred_region
      %56 = dma.done [#allocation6], 16384
    $region29: #{tpu_custom_call.1} parent=1 // pred_fallthru
      _
    // Predicated region
    $region30: #{tpu_custom_call.1} parent=1 // pred_check
      _
    $region31: #{tpu_custom_call.1} parent=1 // pred_check_branch
      %58 = sbr.rel (0) target = $region33
    $region32: #{tpu_custom_call.1} parent=1 // pred_region
      %59 = dma.done [#allocation6], 16384
    $region33: #{tpu_custom_call.1} parent=1 // pred_fallthru
      _
    %v60 = vld [vmem:[#allocation2] sm:$0xff]
    %v61 = vld [vmem:[#allocation2 + $0x8] sm:$0xff]
    %v62 = vld [vmem:[#allocation2 + $0x10] sm:$0xff]
    %v63 = vld [vmem:[#allocation2 + $0x18] sm:$0xff]
    %v64 = vld [vmem:[#allocation2 + $0x20] sm:$0xff]
    %v65 = vld [vmem:[#allocation2 + $0x28] sm:$0xff]
    %v66 = vld [vmem:[#allocation2 + $0x30] sm:$0xff]
    %v67 = vld [vmem:[#allocation2 + $0x38] sm:$0xff]
    %v68 = vpack.c.bf16 %v60, %v60
    %v69 = vpack.c.bf16 %v61, %v61
    %v70 = vpack.c.bf16 %v62, %v62
    %v71 = vpack.c.bf16 %v63, %v63
    %v72 = vpack.c.bf16 %v64, %v64
    %v73 = vpack.c.bf16 %v65, %v65
    %v74 = vpack.c.bf16 %v66, %v66
    %v75 = vpack.c.bf16 %v67, %v67
    %v76 = vld [vmem:[#allocation5] sm:$0xff]
    %v77 = vld [vmem:[#allocation5 + $0x8] sm:$0xff]
    %v78 = vld [vmem:[#allocation5 + $0x10] sm:$0xff]
    %v79 = vld [vmem:[#allocation5 + $0x18] sm:$0xff]
    %v80 = vld [vmem:[#allocation5 + $0x20] sm:$0xff]
    %v81 = vld [vmem:[#allocation5 + $0x28] sm:$0xff]
    %v82 = vld [vmem:[#allocation5 + $0x30] sm:$0xff]
    %v83 = vld [vmem:[#allocation5 + $0x38] sm:$0xff]
    %v84 = vld [vmem:[#allocation5 + $0x40] sm:$0xff]
    %v85 = vld [vmem:[#allocation5 + $0x48] sm:$0xff]
    %v86 = vld [vmem:[#allocation5 + $0x50] sm:$0xff]
    %v87 = vld [vmem:[#allocation5 + $0x58] sm:$0xff]
    %v88 = vld [vmem:[#allocation5 + $0x60] sm:$0xff]
    %v89 = vld [vmem:[#allocation5 + $0x68] sm:$0xff]
    %v90 = vld [vmem:[#allocation5 + $0x70] sm:$0xff]
    %v91 = vld [vmem:[#allocation5 + $0x78] sm:$0xff]
    %v92 = vld [vmem:[#allocation5 + $0x80] sm:$0xff]
    %v93 = vld [vmem:[#allocation5 + $0x88] sm:$0xff]
    %v94 = vld [vmem:[#allocation5 + $0x90] sm:$0xff]
    %v95 = vld [vmem:[#allocation5 + $0x98] sm:$0xff]
    %v96 = vld [vmem:[#allocation5 + $0xa0] sm:$0xff]
    %v97 = vld [vmem:[#allocation5 + $0xa8] sm:$0xff]
    %v98 = vld [vmem:[#allocation5 + $0xb0] sm:$0xff]
    %v99 = vld [vmem:[#allocation5 + $0xb8] sm:$0xff]
    %v100 = vld [vmem:[#allocation5 + $0xc0] sm:$0xff]
    %v101 = vld [vmem:[#allocation5 + $0xc8] sm:$0xff]
    %v102 = vld [vmem:[#allocation5 + $0xd0] sm:$0xff]
    %v103 = vld [vmem:[#allocation5 + $0xd8] sm:$0xff]
    %v104 = vld [vmem:[#allocation5 + $0xe0] sm:$0xff]
    %v105 = vld [vmem:[#allocation5 + $0xe8] sm:$0xff]
    %v106 = vld [vmem:[#allocation5 + $0xf0] sm:$0xff]
    %v107 = vld [vmem:[#allocation5 + $0xf8] sm:$0xff]
    %v108 = vld [vmem:[#allocation5 + $0x100] sm:$0xff]
    %v109 = vld [vmem:[#allocation5 + $0x108] sm:$0xff]
    %v110 = vld [vmem:[#allocation5 + $0x110] sm:$0xff]
    %v111 = vld [vmem:[#allocation5 + $0x118] sm:$0xff]
    %v112 = vld [vmem:[#allocation5 + $0x120] sm:$0xff]
    %v113 = vld [vmem:[#allocation5 + $0x128] sm:$0xff]
    %v114 = vld [vmem:[#allocation5 + $0x130] sm:$0xff]
    %v115 = vld [vmem:[#allocation5 + $0x138] sm:$0xff]
    %v116 = vld [vmem:[#allocation5 + $0x140] sm:$0xff]
    %v117 = vld [vmem:[#allocation5 + $0x148] sm:$0xff]
    %v118 = vld [vmem:[#allocation5 + $0x150] sm:$0xff]
    %v119 = vld [vmem:[#allocation5 + $0x158] sm:$0xff]
    %v120 = vld [vmem:[#allocation5 + $0x160] sm:$0xff]
    %v121 = vld [vmem:[#allocation5 + $0x168] sm:$0xff]
    %v122 = vld [vmem:[#allocation5 + $0x170] sm:$0xff]
    %v123 = vld [vmem:[#allocation5 + $0x178] sm:$0xff]
    %v124 = vld [vmem:[#allocation5 + $0x180] sm:$0xff]
    %v125 = vld [vmem:[#allocation5 + $0x188] sm:$0xff]
    %v126 = vld [vmem:[#allocation5 + $0x190] sm:$0xff]
    %v127 = vld [vmem:[#allocation5 + $0x198] sm:$0xff]
    %v128 = vld [vmem:[#allocation5 + $0x1a0] sm:$0xff]
    %v129 = vld [vmem:[#allocation5 + $0x1a8] sm:$0xff]
    %v130 = vld [vmem:[#allocation5 + $0x1b0] sm:$0xff]
    %v131 = vld [vmem:[#allocation5 + $0x1b8] sm:$0xff]
    %v132 = vld [vmem:[#allocation5 + $0x1c0] sm:$0xff]
    %v133 = vld [vmem:[#allocation5 + $0x1c8] sm:$0xff]
    %v134 = vld [vmem:[#allocation5 + $0x1d0] sm:$0xff]
    %v135 = vld [vmem:[#allocation5 + $0x1d8] sm:$0xff]
    %v136 = vld [vmem:[#allocation5 + $0x1e0] sm:$0xff]
    %v137 = vld [vmem:[#allocation5 + $0x1e8] sm:$0xff]
    %v138 = vld [vmem:[#allocation5 + $0x1f0] sm:$0xff]
    %v139 = vld [vmem:[#allocation5 + $0x1f8] sm:$0xff]
    %v140 = vld [vmem:[#allocation5 + $0x200] sm:$0xff]
    %v141 = vld [vmem:[#allocation5 + $0x208] sm:$0xff]
    %v142 = vld [vmem:[#allocation5 + $0x210] sm:$0xff]
    %v143 = vld [vmem:[#allocation5 + $0x218] sm:$0xff]
    %v144 = vld [vmem:[#allocation5 + $0x220] sm:$0xff]
    %v145 = vld [vmem:[#allocation5 + $0x228] sm:$0xff]
    %v146 = vld [vmem:[#allocation5 + $0x230] sm:$0xff]
    %v147 = vld [vmem:[#allocation5 + $0x238] sm:$0xff]
    %v148 = vld [vmem:[#allocation5 + $0x240] sm:$0xff]
    %v149 = vld [vmem:[#allocation5 + $0x248] sm:$0xff]
    %v150 = vld [vmem:[#allocation5 + $0x250] sm:$0xff]
    %v151 = vld [vmem:[#allocation5 + $0x258] sm:$0xff]
    %v152 = vld [vmem:[#allocation5 + $0x260] sm:$0xff]
    %v153 = vld [vmem:[#allocation5 + $0x268] sm:$0xff]
    %v154 = vld [vmem:[#allocation5 + $0x270] sm:$0xff]
    %v155 = vld [vmem:[#allocation5 + $0x278] sm:$0xff]
    %v156 = vld [vmem:[#allocation5 + $0x280] sm:$0xff]
    %v157 = vld [vmem:[#allocation5 + $0x288] sm:$0xff]
    %v158 = vld [vmem:[#allocation5 + $0x290] sm:$0xff]
    %v159 = vld [vmem:[#allocation5 + $0x298] sm:$0xff]
    %v160 = vld [vmem:[#allocation5 + $0x2a0] sm:$0xff]
    %v161 = vld [vmem:[#allocation5 + $0x2a8] sm:$0xff]
    %v162 = vld [vmem:[#allocation5 + $0x2b0] sm:$0xff]
    %v163 = vld [vmem:[#allocation5 + $0x2b8] sm:$0xff]
    %v164 = vld [vmem:[#allocation5 + $0x2c0] sm:$0xff]
    %v165 = vld [vmem:[#allocation5 + $0x2c8] sm:$0xff]
    %v166 = vld [vmem:[#allocation5 + $0x2d0] sm:$0xff]
    %v167 = vld [vmem:[#allocation5 + $0x2d8] sm:$0xff]
    %v168 = vld [vmem:[#allocation5 + $0x2e0] sm:$0xff]
    %v169 = vld [vmem:[#allocation5 + $0x2e8] sm:$0xff]
    %v170 = vld [vmem:[#allocation5 + $0x2f0] sm:$0xff]
    %v171 = vld [vmem:[#allocation5 + $0x2f8] sm:$0xff]
    %v172 = vld [vmem:[#allocation5 + $0x300] sm:$0xff]
    %v173 = vld [vmem:[#allocation5 + $0x308] sm:$0xff]
    %v174 = vld [vmem:[#allocation5 + $0x310] sm:$0xff]
    %v175 = vld [vmem:[#allocation5 + $0x318] sm:$0xff]
    %v176 = vld [vmem:[#allocation5 + $0x320] sm:$0xff]
    %v177 = vld [vmem:[#allocation5 + $0x328] sm:$0xff]
    %v178 = vld [vmem:[#allocation5 + $0x330] sm:$0xff]
    %v179 = vld [vmem:[#allocation5 + $0x338] sm:$0xff]
    %v180 = vld [vmem:[#allocation5 + $0x340] sm:$0xff]
    %v181 = vld [vmem:[#allocation5 + $0x348] sm:$0xff]
    %v182 = vld [vmem:[#allocation5 + $0x350] sm:$0xff]
    %v183 = vld [vmem:[#allocation5 + $0x358] sm:$0xff]
    %v184 = vld [vmem:[#allocation5 + $0x360] sm:$0xff]
    %v185 = vld [vmem:[#allocation5 + $0x368] sm:$0xff]
    %v186 = vld [vmem:[#allocation5 + $0x370] sm:$0xff]
    %v187 = vld [vmem:[#allocation5 + $0x378] sm:$0xff]
    %v188 = vld [vmem:[#allocation5 + $0x380] sm:$0xff]
    %v189 = vld [vmem:[#allocation5 + $0x388] sm:$0xff]
    %v190 = vld [vmem:[#allocation5 + $0x390] sm:$0xff]
    %v191 = vld [vmem:[#allocation5 + $0x398] sm:$0xff]
    %v192 = vld [vmem:[#allocation5 + $0x3a0] sm:$0xff]
    %v193 = vld [vmem:[#allocation5 + $0x3a8] sm:$0xff]
    %v194 = vld [vmem:[#allocation5 + $0x3b0] sm:$0xff]
    %v195 = vld [vmem:[#allocation5 + $0x3b8] sm:$0xff]
    %v196 = vld [vmem:[#allocation5 + $0x3c0] sm:$0xff]
    %v197 = vld [vmem:[#allocation5 + $0x3c8] sm:$0xff]
    %v198 = vld [vmem:[#allocation5 + $0x3d0] sm:$0xff]
    %v199 = vld [vmem:[#allocation5 + $0x3d8] sm:$0xff]
    %v200 = vld [vmem:[#allocation5 + $0x3e0] sm:$0xff]
    %v201 = vld [vmem:[#allocation5 + $0x3e8] sm:$0xff]
    %v202 = vld [vmem:[#allocation5 + $0x3f0] sm:$0xff]
    %v203 = vld [vmem:[#allocation5 + $0x3f8] sm:$0xff]
    %v204 = vld [vmem:[%s2] sm:$0x3]
    %v206 = vlaneseq
    %v207 = vshrl.u32 %v206, 7
    %v208 = vsub.s32 0, %v207
    %v209 = vrot.slane %v204, %v208
    %v210 = vlaneseq
    %v211 = vshrl.u32 %v210, 7
    %v212 = vsub.s32 1, %v211
    %v213 = vrot.slane %v204, %v212
    %v344 = vunpack.c.l.b16 %v76
    %v345 = vunpack.c.h.b16 %v76
    %v346 = vunpack.c.l.b16 %v77
    %v347 = vunpack.c.h.b16 %v77
    %v348 = vunpack.c.l.b16 %v78
    %v349 = vunpack.c.h.b16 %v78
    %v350 = vunpack.c.l.b16 %v79
    %v351 = vunpack.c.h.b16 %v79
    %v352 = vunpack.c.l.b16 %v80
    %v353 = vunpack.c.h.b16 %v80
    %v354 = vunpack.c.l.b16 %v81
    %v355 = vunpack.c.h.b16 %v81
    %v356 = vunpack.c.l.b16 %v82
    %v357 = vunpack.c.h.b16 %v82
    %v358 = vunpack.c.l.b16 %v83
    %v359 = vunpack.c.h.b16 %v83
    %v360 = vunpack.c.l.b16 %v84
    %v361 = vunpack.c.h.b16 %v84
    %v362 = vunpack.c.l.b16 %v85
    %v363 = vunpack.c.h.b16 %v85
    %v364 = vunpack.c.l.b16 %v86
    %v365 = vunpack.c.h.b16 %v86
    %v366 = vunpack.c.l.b16 %v87
    %v367 = vunpack.c.h.b16 %v87
    %v368 = vunpack.c.l.b16 %v88
    %v369 = vunpack.c.h.b16 %v88
    %v370 = vunpack.c.l.b16 %v89
    %v371 = vunpack.c.h.b16 %v89
    %v372 = vunpack.c.l.b16 %v90
    %v373 = vunpack.c.h.b16 %v90
    %v374 = vunpack.c.l.b16 %v91
    %v375 = vunpack.c.h.b16 %v91
    %v376 = vunpack.c.l.b16 %v92
    %v377 = vunpack.c.h.b16 %v92
    %v378 = vunpack.c.l.b16 %v93
    %v379 = vunpack.c.h.b16 %v93
    %v380 = vunpack.c.l.b16 %v94
    %v381 = vunpack.c.h.b16 %v94
    %v382 = vunpack.c.l.b16 %v95
    %v383 = vunpack.c.h.b16 %v95
    %v384 = vunpack.c.l.b16 %v96
    %v385 = vunpack.c.h.b16 %v96
    %v386 = vunpack.c.l.b16 %v97
    %v387 = vunpack.c.h.b16 %v97
    %v388 = vunpack.c.l.b16 %v98
    %v389 = vunpack.c.h.b16 %v98
    %v390 = vunpack.c.l.b16 %v99
    %v391 = vunpack.c.h.b16 %v99
    %v392 = vunpack.c.l.b16 %v100
    %v393 = vunpack.c.h.b16 %v100
    %v394 = vunpack.c.l.b16 %v101
    %v395 = vunpack.c.h.b16 %v101
    %v396 = vunpack.c.l.b16 %v102
    %v397 = vunpack.c.h.b16 %v102
    %v398 = vunpack.c.l.b16 %v103
    %v399 = vunpack.c.h.b16 %v103
    %v400 = vunpack.c.l.b16 %v104
    %v401 = vunpack.c.h.b16 %v104
    %v402 = vunpack.c.l.b16 %v105
    %v403 = vunpack.c.h.b16 %v105
    %v404 = vunpack.c.l.b16 %v106
    %v405 = vunpack.c.h.b16 %v106
    %v406 = vunpack.c.l.b16 %v107
    %v407 = vunpack.c.h.b16 %v107
    %v408 = vunpack.c.l.b16 %v108
    %v409 = vunpack.c.h.b16 %v108
    %v410 = vunpack.c.l.b16 %v109
    %v411 = vunpack.c.h.b16 %v109
    %v412 = vunpack.c.l.b16 %v110
    %v413 = vunpack.c.h.b16 %v110
    %v414 = vunpack.c.l.b16 %v111
    %v415 = vunpack.c.h.b16 %v111
    %v416 = vunpack.c.l.b16 %v112
    %v417 = vunpack.c.h.b16 %v112
    %v418 = vunpack.c.l.b16 %v113
    %v419 = vunpack.c.h.b16 %v113
    %v420 = vunpack.c.l.b16 %v114
    %v421 = vunpack.c.h.b16 %v114
    %v422 = vunpack.c.l.b16 %v115
    %v423 = vunpack.c.h.b16 %v115
    %v424 = vunpack.c.l.b16 %v116
    %v425 = vunpack.c.h.b16 %v116
    %v426 = vunpack.c.l.b16 %v117
    %v427 = vunpack.c.h.b16 %v117
    %v428 = vunpack.c.l.b16 %v118
    %v429 = vunpack.c.h.b16 %v118
    %v430 = vunpack.c.l.b16 %v119
    %v431 = vunpack.c.h.b16 %v119
    %v432 = vunpack.c.l.b16 %v120
    %v433 = vunpack.c.h.b16 %v120
    %v434 = vunpack.c.l.b16 %v121
    %v435 = vunpack.c.h.b16 %v121
    %v436 = vunpack.c.l.b16 %v122
    %v437 = vunpack.c.h.b16 %v122
    %v438 = vunpack.c.l.b16 %v123
    %v439 = vunpack.c.h.b16 %v123
    %v440 = vunpack.c.l.b16 %v124
    %v441 = vunpack.c.h.b16 %v124
    %v442 = vunpack.c.l.b16 %v125
    %v443 = vunpack.c.h.b16 %v125
    %v444 = vunpack.c.l.b16 %v126
    %v445 = vunpack.c.h.b16 %v126
    %v446 = vunpack.c.l.b16 %v127
    %v447 = vunpack.c.h.b16 %v127
    %v448 = vunpack.c.l.b16 %v128
    %v449 = vunpack.c.h.b16 %v128
    %v450 = vunpack.c.l.b16 %v129
    %v451 = vunpack.c.h.b16 %v129
    %v452 = vunpack.c.l.b16 %v130
    %v453 = vunpack.c.h.b16 %v130
    %v454 = vunpack.c.l.b16 %v131
    %v455 = vunpack.c.h.b16 %v131
    %v456 = vunpack.c.l.b16 %v132
    %v457 = vunpack.c.h.b16 %v132
    %v458 = vunpack.c.l.b16 %v133
    %v459 = vunpack.c.h.b16 %v133
    %v460 = vunpack.c.l.b16 %v134
    %v461 = vunpack.c.h.b16 %v134
    %v462 = vunpack.c.l.b16 %v135
    %v463 = vunpack.c.h.b16 %v135
    %v464 = vunpack.c.l.b16 %v136
    %v465 = vunpack.c.h.b16 %v136
    %v466 = vunpack.c.l.b16 %v137
    %v467 = vunpack.c.h.b16 %v137
    %v468 = vunpack.c.l.b16 %v138
    %v469 = vunpack.c.h.b16 %v138
    %v470 = vunpack.c.l.b16 %v139
    %v471 = vunpack.c.h.b16 %v139
    %v472 = vunpack.c.l.b16 %v140
    %v473 = vunpack.c.h.b16 %v140
    %v474 = vunpack.c.l.b16 %v141
    %v475 = vunpack.c.h.b16 %v141
    %v476 = vunpack.c.l.b16 %v142
    %v477 = vunpack.c.h.b16 %v142
    %v478 = vunpack.c.l.b16 %v143
    %v479 = vunpack.c.h.b16 %v143
    %v480 = vunpack.c.l.b16 %v144
    %v481 = vunpack.c.h.b16 %v144
    %v482 = vunpack.c.l.b16 %v145
    %v483 = vunpack.c.h.b16 %v145
    %v484 = vunpack.c.l.b16 %v146
    %v485 = vunpack.c.h.b16 %v146
    %v486 = vunpack.c.l.b16 %v147
    %v487 = vunpack.c.h.b16 %v147
    %v488 = vunpack.c.l.b16 %v148
    %v489 = vunpack.c.h.b16 %v148
    %v490 = vunpack.c.l.b16 %v149
    %v491 = vunpack.c.h.b16 %v149
    %v492 = vunpack.c.l.b16 %v150
    %v493 = vunpack.c.h.b16 %v150
    %v494 = vunpack.c.l.b16 %v151
    %v495 = vunpack.c.h.b16 %v151
    %v496 = vunpack.c.l.b16 %v152
    %v497 = vunpack.c.h.b16 %v152
    %v498 = vunpack.c.l.b16 %v153
    %v499 = vunpack.c.h.b16 %v153
    %v500 = vunpack.c.l.b16 %v154
    %v501 = vunpack.c.h.b16 %v154
    %v502 = vunpack.c.l.b16 %v155
    %v503 = vunpack.c.h.b16 %v155
    %v504 = vunpack.c.l.b16 %v156
    %v505 = vunpack.c.h.b16 %v156
    %v506 = vunpack.c.l.b16 %v157
    %v507 = vunpack.c.h.b16 %v157
    %v508 = vunpack.c.l.b16 %v158
    %v509 = vunpack.c.h.b16 %v158
    %v510 = vunpack.c.l.b16 %v159
    %v511 = vunpack.c.h.b16 %v159
    %v512 = vunpack.c.l.b16 %v160
    %v513 = vunpack.c.h.b16 %v160
    %v514 = vunpack.c.l.b16 %v161
    %v515 = vunpack.c.h.b16 %v161
    %v516 = vunpack.c.l.b16 %v162
    %v517 = vunpack.c.h.b16 %v162
    %v518 = vunpack.c.l.b16 %v163
    %v519 = vunpack.c.h.b16 %v163
    %v520 = vunpack.c.l.b16 %v164
    %v521 = vunpack.c.h.b16 %v164
    %v522 = vunpack.c.l.b16 %v165
    %v523 = vunpack.c.h.b16 %v165
    %v524 = vunpack.c.l.b16 %v166
    %v525 = vunpack.c.h.b16 %v166
    %v526 = vunpack.c.l.b16 %v167
    %v527 = vunpack.c.h.b16 %v167
    %v528 = vunpack.c.l.b16 %v168
    %v529 = vunpack.c.h.b16 %v168
    %v530 = vunpack.c.l.b16 %v169
    %v531 = vunpack.c.h.b16 %v169
    %v532 = vunpack.c.l.b16 %v170
    %v533 = vunpack.c.h.b16 %v170
    %v534 = vunpack.c.l.b16 %v171
    %v535 = vunpack.c.h.b16 %v171
    %v536 = vunpack.c.l.b16 %v172
    %v537 = vunpack.c.h.b16 %v172
    %v538 = vunpack.c.l.b16 %v173
    %v539 = vunpack.c.h.b16 %v173
    %v540 = vunpack.c.l.b16 %v174
    %v541 = vunpack.c.h.b16 %v174
    %v542 = vunpack.c.l.b16 %v175
    %v543 = vunpack.c.h.b16 %v175
    %v544 = vunpack.c.l.b16 %v176
    %v545 = vunpack.c.h.b16 %v176
    %v546 = vunpack.c.l.b16 %v177
    %v547 = vunpack.c.h.b16 %v177
    %v548 = vunpack.c.l.b16 %v178
    %v549 = vunpack.c.h.b16 %v178
    %v550 = vunpack.c.l.b16 %v179
    %v551 = vunpack.c.h.b16 %v179
    %v552 = vunpack.c.l.b16 %v180
    %v553 = vunpack.c.h.b16 %v180
    %v554 = vunpack.c.l.b16 %v181
    %v555 = vunpack.c.h.b16 %v181
    %v556 = vunpack.c.l.b16 %v182
    %v557 = vunpack.c.h.b16 %v182
    %v558 = vunpack.c.l.b16 %v183
    %v559 = vunpack.c.h.b16 %v183
    %v560 = vunpack.c.l.b16 %v184
    %v561 = vunpack.c.h.b16 %v184
    %v562 = vunpack.c.l.b16 %v185
    %v563 = vunpack.c.h.b16 %v185
    %v564 = vunpack.c.l.b16 %v186
    %v565 = vunpack.c.h.b16 %v186
    %v566 = vunpack.c.l.b16 %v187
    %v567 = vunpack.c.h.b16 %v187
    %v568 = vunpack.c.l.b16 %v188
    %v569 = vunpack.c.h.b16 %v188
    %v570 = vunpack.c.l.b16 %v189
    %v571 = vunpack.c.h.b16 %v189
    %v572 = vunpack.c.l.b16 %v190
    %v573 = vunpack.c.h.b16 %v190
    %v574 = vunpack.c.l.b16 %v191
    %v575 = vunpack.c.h.b16 %v191
    %v576 = vunpack.c.l.b16 %v192
    %v577 = vunpack.c.h.b16 %v192
    %v578 = vunpack.c.l.b16 %v193
    %v579 = vunpack.c.h.b16 %v193
    %v580 = vunpack.c.l.b16 %v194
    %v581 = vunpack.c.h.b16 %v194
    %v582 = vunpack.c.l.b16 %v195
    %v583 = vunpack.c.h.b16 %v195
    %v584 = vunpack.c.l.b16 %v196
    %v585 = vunpack.c.h.b16 %v196
    %v586 = vunpack.c.l.b16 %v197
    %v587 = vunpack.c.h.b16 %v197
    %v588 = vunpack.c.l.b16 %v198
    %v589 = vunpack.c.h.b16 %v198
    %v590 = vunpack.c.l.b16 %v199
    %v591 = vunpack.c.h.b16 %v199
    %v592 = vunpack.c.l.b16 %v200
    %v593 = vunpack.c.h.b16 %v200
    %v594 = vunpack.c.l.b16 %v201
    %v595 = vunpack.c.h.b16 %v201
    %v596 = vunpack.c.l.b16 %v202
    %v597 = vunpack.c.h.b16 %v202
    %v598 = vunpack.c.l.b16 %v203
    %v599 = vunpack.c.h.b16 %v203
    %v600 = vpack.c.b16 %v346, %v344
    %v601 = vpack.c.b16 %v347, %v345
    %v602 = vpack.c.b16 %v350, %v348
    %v603 = vpack.c.b16 %v351, %v349
    %v604 = vpack.c.b16 %v354, %v352
    %v605 = vpack.c.b16 %v355, %v353
    %v606 = vpack.c.b16 %v358, %v356
    %v607 = vpack.c.b16 %v359, %v357
    %v608 = vpack.c.b16 %v362, %v360
    %v609 = vpack.c.b16 %v363, %v361
    %v610 = vpack.c.b16 %v366, %v364
    %v611 = vpack.c.b16 %v367, %v365
    %v612 = vpack.c.b16 %v370, %v368
    %v613 = vpack.c.b16 %v371, %v369
    %v614 = vpack.c.b16 %v374, %v372
    %v615 = vpack.c.b16 %v375, %v373
    %v616 = vpack.c.b16 %v378, %v376
    %v617 = vpack.c.b16 %v379, %v377
    %v618 = vpack.c.b16 %v382, %v380
    %v619 = vpack.c.b16 %v383, %v381
    %v620 = vpack.c.b16 %v386, %v384
    %v621 = vpack.c.b16 %v387, %v385
    %v622 = vpack.c.b16 %v390, %v388
    %v623 = vpack.c.b16 %v391, %v389
    %v624 = vpack.c.b16 %v394, %v392
    %v625 = vpack.c.b16 %v395, %v393
    %v626 = vpack.c.b16 %v398, %v396
    %v627 = vpack.c.b16 %v399, %v397
    %v628 = vpack.c.b16 %v402, %v400
    %v629 = vpack.c.b16 %v403, %v401
    %v630 = vpack.c.b16 %v406, %v404
    %v631 = vpack.c.b16 %v407, %v405
    %v632 = vpack.c.b16 %v410, %v408
    %v633 = vpack.c.b16 %v411, %v409
    %v634 = vpack.c.b16 %v414, %v412
    %v635 = vpack.c.b16 %v415, %v413
    %v636 = vpack.c.b16 %v418, %v416
    %v637 = vpack.c.b16 %v419, %v417
    %v638 = vpack.c.b16 %v422, %v420
    %v639 = vpack.c.b16 %v423, %v421
    %v640 = vpack.c.b16 %v426, %v424
    %v641 = vpack.c.b16 %v427, %v425
    %v642 = vpack.c.b16 %v430, %v428
    %v643 = vpack.c.b16 %v431, %v429
    %v644 = vpack.c.b16 %v434, %v432
    %v645 = vpack.c.b16 %v435, %v433
    %v646 = vpack.c.b16 %v438, %v436
    %v647 = vpack.c.b16 %v439, %v437
    %v648 = vpack.c.b16 %v442, %v440
    %v649 = vpack.c.b16 %v443, %v441
    %v650 = vpack.c.b16 %v446, %v444
    %v651 = vpack.c.b16 %v447, %v445
    %v652 = vpack.c.b16 %v450, %v448
    %v653 = vpack.c.b16 %v451, %v449
    %v654 = vpack.c.b16 %v454, %v452
    %v655 = vpack.c.b16 %v455, %v453
    %v656 = vpack.c.b16 %v458, %v456
    %v657 = vpack.c.b16 %v459, %v457
    %v658 = vpack.c.b16 %v462, %v460
    %v659 = vpack.c.b16 %v463, %v461
    %v660 = vpack.c.b16 %v466, %v464
    %v661 = vpack.c.b16 %v467, %v465
    %v662 = vpack.c.b16 %v470, %v468
    %v663 = vpack.c.b16 %v471, %v469
    %v664 = vpack.c.b16 %v474, %v472
    %v665 = vpack.c.b16 %v475, %v473
    %v666 = vpack.c.b16 %v478, %v476
    %v667 = vpack.c.b16 %v479, %v477
    %v668 = vpack.c.b16 %v482, %v480
    %v669 = vpack.c.b16 %v483, %v481
    %v670 = vpack.c.b16 %v486, %v484
    %v671 = vpack.c.b16 %v487, %v485
    %v672 = vpack.c.b16 %v490, %v488
    %v673 = vpack.c.b16 %v491, %v489
    %v674 = vpack.c.b16 %v494, %v492
    %v675 = vpack.c.b16 %v495, %v493
    %v676 = vpack.c.b16 %v498, %v496
    %v677 = vpack.c.b16 %v499, %v497
    %v678 = vpack.c.b16 %v502, %v500
    %v679 = vpack.c.b16 %v503, %v501
    %v680 = vpack.c.b16 %v506, %v504
    %v681 = vpack.c.b16 %v507, %v505
    %v682 = vpack.c.b16 %v510, %v508
    %v683 = vpack.c.b16 %v511, %v509
    %v684 = vpack.c.b16 %v514, %v512
    %v685 = vpack.c.b16 %v515, %v513
    %v686 = vpack.c.b16 %v518, %v516
    %v687 = vpack.c.b16 %v519, %v517
    %v688 = vpack.c.b16 %v522, %v520
    %v689 = vpack.c.b16 %v523, %v521
    %v690 = vpack.c.b16 %v526, %v524
    %v691 = vpack.c.b16 %v527, %v525
    %v692 = vpack.c.b16 %v530, %v528
    %v693 = vpack.c.b16 %v531, %v529
    %v694 = vpack.c.b16 %v534, %v532
    %v695 = vpack.c.b16 %v535, %v533
    %v696 = vpack.c.b16 %v538, %v536
    %v697 = vpack.c.b16 %v539, %v537
    %v698 = vpack.c.b16 %v542, %v540
    %v699 = vpack.c.b16 %v543, %v541
    %v700 = vpack.c.b16 %v546, %v544
    %v701 = vpack.c.b16 %v547, %v545
    %v702 = vpack.c.b16 %v550, %v548
    %v703 = vpack.c.b16 %v551, %v549
    %v704 = vpack.c.b16 %v554, %v552
    %v705 = vpack.c.b16 %v555, %v553
    %v706 = vpack.c.b16 %v558, %v556
    %v707 = vpack.c.b16 %v559, %v557
    %v708 = vpack.c.b16 %v562, %v560
    %v709 = vpack.c.b16 %v563, %v561
    %v710 = vpack.c.b16 %v566, %v564
    %v711 = vpack.c.b16 %v567, %v565
    %v712 = vpack.c.b16 %v570, %v568
    %v713 = vpack.c.b16 %v571, %v569
    %v714 = vpack.c.b16 %v574, %v572
    %v715 = vpack.c.b16 %v575, %v573
    %v716 = vpack.c.b16 %v578, %v576
    %v717 = vpack.c.b16 %v579, %v577
    %v718 = vpack.c.b16 %v582, %v580
    %v719 = vpack.c.b16 %v583, %v581
    %v720 = vpack.c.b16 %v586, %v584
    %v721 = vpack.c.b16 %v587, %v585
    %v722 = vpack.c.b16 %v590, %v588
    %v723 = vpack.c.b16 %v591, %v589
    %v724 = vpack.c.b16 %v594, %v592
    %v725 = vpack.c.b16 %v595, %v593
    %v726 = vpack.c.b16 %v598, %v596
    %v727 = vpack.c.b16 %v599, %v597
    %856 = vmatprep.subr.bf16.mxu0 %v601
    %857 = vmatpush1.bf16.msra.mxu0 %v600
    %858 = vmatprep.subr.bf16.mxu0 %v603
    %859 = vmatpush1.bf16.msra.mxu0 %v602
    %860 = vmatprep.subr.bf16.mxu0 %v605
    %861 = vmatpush1.bf16.msra.mxu0 %v604
    %862 = vmatprep.subr.bf16.mxu0 %v607
    %863 = vmatpush1.bf16.msra.mxu0 %v606
    %864 = vmatprep.subr.bf16.mxu0 %v609
    %865 = vmatpush1.bf16.msra.mxu0 %v608
    %866 = vmatprep.subr.bf16.mxu0 %v611
    %867 = vmatpush1.bf16.msra.mxu0 %v610
    %868 = vmatprep.subr.bf16.mxu0 %v613
    %869 = vmatpush1.bf16.msra.mxu0 %v612
    %870 = vmatprep.subr.bf16.mxu0 %v615
    %871 = vmatpush1.bf16.msra.mxu0 %v614
    %872 = vmatprep.subr.bf16.mxu0 %v617
    %873 = vmatpush1.bf16.msra.mxu0 %v616
    %874 = vmatprep.subr.bf16.mxu0 %v619
    %875 = vmatpush1.bf16.msra.mxu0 %v618
    %876 = vmatprep.subr.bf16.mxu0 %v621
    %877 = vmatpush1.bf16.msra.mxu0 %v620
    %878 = vmatprep.subr.bf16.mxu0 %v623
    %879 = vmatpush1.bf16.msra.mxu0 %v622
    %880 = vmatprep.subr.bf16.mxu0 %v625
    %881 = vmatpush1.bf16.msra.mxu0 %v624
    %882 = vmatprep.subr.bf16.mxu0 %v627
    %883 = vmatpush1.bf16.msra.mxu0 %v626
    %884 = vmatprep.subr.bf16.mxu0 %v629
    %885 = vmatpush1.bf16.msra.mxu0 %v628
    %886 = vmatprep.subr.bf16.mxu0 %v631
    %887 = vmatpush1.bf16.msra.mxu0 %v630
    %888 = vmatprep.mubr.bf16.mxu0 %v69
    %889 = vmatmul.mubr.bf16.gmra.mrb[0].mxu0 %v68
    %v890 = vpop.f32.mrb[0].mxu0
    %v891 = vadd.f32 %v209, %v890
    %v892 = vpop.f32.mrb[0].mxu0
    %v893 = vadd.f32 %v213, %v892
    %v894 = vpop.f32.mrb[0].mxu0
    %v895 = vpop.f32.mrb[0].mxu0
    %896 = vdwg.mxu0
    %897 = vmatprep.subr.bf16.mxu0 %v633
    %898 = vmatpush1.bf16.msra.mxu0 %v632
    %899 = vmatprep.subr.bf16.mxu0 %v635
    %900 = vmatpush1.bf16.msra.mxu0 %v634
    %901 = vmatprep.subr.bf16.mxu0 %v637
    %902 = vmatpush1.bf16.msra.mxu0 %v636
    %903 = vmatprep.subr.bf16.mxu0 %v639
    %904 = vmatpush1.bf16.msra.mxu0 %v638
    %905 = vmatprep.subr.bf16.mxu0 %v641
    %906 = vmatpush1.bf16.msra.mxu0 %v640
    %907 = vmatprep.subr.bf16.mxu0 %v643
    %908 = vmatpush1.bf16.msra.mxu0 %v642
    %909 = vmatprep.subr.bf16.mxu0 %v645
    %910 = vmatpush1.bf16.msra.mxu0 %v644
    %911 = vmatprep.subr.bf16.mxu0 %v647
    %912 = vmatpush1.bf16.msra.mxu0 %v646
    %913 = vmatprep.subr.bf16.mxu0 %v649
    %914 = vmatpush1.bf16.msra.mxu0 %v648
    %915 = vmatprep.subr.bf16.mxu0 %v651
    %916 = vmatpush1.bf16.msra.mxu0 %v650
    %917 = vmatprep.subr.bf16.mxu0 %v653
    %918 = vmatpush1.bf16.msra.mxu0 %v652
    %919 = vmatprep.subr.bf16.mxu0 %v655
    %920 = vmatpush1.bf16.msra.mxu0 %v654
    %921 = vmatprep.subr.bf16.mxu0 %v657
    %922 = vmatpush1.bf16.msra.mxu0 %v656
    %923 = vmatprep.subr.bf16.mxu0 %v659
    %924 = vmatpush1.bf16.msra.mxu0 %v658
    %925 = vmatprep.subr.bf16.mxu0 %v661
    %926 = vmatpush1.bf16.msra.mxu0 %v660
    %927 = vmatprep.subr.bf16.mxu0 %v663
    %928 = vmatpush1.bf16.msra.mxu0 %v662
    %929 = vmatprep.mubr.bf16.mxu0 %v71
    %930 = vmatmul.mubr.bf16.gmra.mrb[0].mxu0 %v70
    %v931 = vpop.f32.mrb[0].mxu0
    %v932 = vadd.f32 %v891, %v931
    %v933 = vpop.f32.mrb[0].mxu0
    %v934 = vadd.f32 %v893, %v933
    %v935 = vpop.f32.mrb[0].mxu0
    %v936 = vpop.f32.mrb[0].mxu0
    %937 = vdwg.mxu0
    %938 = vmatprep.subr.bf16.mxu0 %v665
    %939 = vmatpush1.bf16.msra.mxu0 %v664
    %940 = vmatprep.subr.bf16.mxu0 %v667
    %941 = vmatpush1.bf16.msra.mxu0 %v666
    %942 = vmatprep.subr.bf16.mxu0 %v669
    %943 = vmatpush1.bf16.msra.mxu0 %v668
    %944 = vmatprep.subr.bf16.mxu0 %v671
    %945 = vmatpush1.bf16.msra.mxu0 %v670
    %946 = vmatprep.subr.bf16.mxu0 %v673
    %947 = vmatpush1.bf16.msra.mxu0 %v672
    %948 = vmatprep.subr.bf16.mxu0 %v675
    %949 = vmatpush1.bf16.msra.mxu0 %v674
    %950 = vmatprep.subr.bf16.mxu0 %v677
    %951 = vmatpush1.bf16.msra.mxu0 %v676
    %952 = vmatprep.subr.bf16.mxu0 %v679
    %953 = vmatpush1.bf16.msra.mxu0 %v678
    %954 = vmatprep.subr.bf16.mxu0 %v681
    %955 = vmatpush1.bf16.msra.mxu0 %v680
    %956 = vmatprep.subr.bf16.mxu0 %v683
    %957 = vmatpush1.bf16.msra.mxu0 %v682
    %958 = vmatprep.subr.bf16.mxu0 %v685
    %959 = vmatpush1.bf16.msra.mxu0 %v684
    %960 = vmatprep.subr.bf16.mxu0 %v687
    %961 = vmatpush1.bf16.msra.mxu0 %v686
    %962 = vmatprep.subr.bf16.mxu0 %v689
    %963 = vmatpush1.bf16.msra.mxu0 %v688
    %964 = vmatprep.subr.bf16.mxu0 %v691
    %965 = vmatpush1.bf16.msra.mxu0 %v690
    %966 = vmatprep.subr.bf16.mxu0 %v693
    %967 = vmatpush1.bf16.msra.mxu0 %v692
    %968 = vmatprep.subr.bf16.mxu0 %v695
    %969 = vmatpush1.bf16.msra.mxu0 %v694
    %970 = vmatprep.mubr.bf16.mxu0 %v73
    %971 = vmatmul.mubr.bf16.gmra.mrb[0].mxu0 %v72
    %v972 = vpop.f32.mrb[0].mxu0
    %v973 = vadd.f32 %v932, %v972
    %v974 = vpop.f32.mrb[0].mxu0
    %v975 = vadd.f32 %v934, %v974
    %v976 = vpop.f32.mrb[0].mxu0
    %v977 = vpop.f32.mrb[0].mxu0
    %978 = vdwg.mxu0
    %979 = vmatprep.subr.bf16.mxu0 %v697
    %980 = vmatpush1.bf16.msra.mxu0 %v696
    %981 = vmatprep.subr.bf16.mxu0 %v699
    %982 = vmatpush1.bf16.msra.mxu0 %v698
    %983 = vmatprep.subr.bf16.mxu0 %v701
    %984 = vmatpush1.bf16.msra.mxu0 %v700
    %985 = vmatprep.subr.bf16.mxu0 %v703
    %986 = vmatpush1.bf16.msra.mxu0 %v702
    %987 = vmatprep.subr.bf16.mxu0 %v705
    %988 = vmatpush1.bf16.msra.mxu0 %v704
    %989 = vmatprep.subr.bf16.mxu0 %v707
    %990 = vmatpush1.bf16.msra.mxu0 %v706
    %991 = vmatprep.subr.bf16.mxu0 %v709
    %992 = vmatpush1.bf16.msra.mxu0 %v708
    %993 = vmatprep.subr.bf16.mxu0 %v711
    %994 = vmatpush1.bf16.msra.mxu0 %v710
    %995 = vmatprep.subr.bf16.mxu0 %v713
    %996 = vmatpush1.bf16.msra.mxu0 %v712
    %997 = vmatprep.subr.bf16.mxu0 %v715
    %998 = vmatpush1.bf16.msra.mxu0 %v714
    %999 = vmatprep.subr.bf16.mxu0 %v717
    %1000 = vmatpush1.bf16.msra.mxu0 %v716
    %1001 = vmatprep.subr.bf16.mxu0 %v719
    %1002 = vmatpush1.bf16.msra.mxu0 %v718
    %1003 = vmatprep.subr.bf16.mxu0 %v721
    %1004 = vmatpush1.bf16.msra.mxu0 %v720
    %1005 = vmatprep.subr.bf16.mxu0 %v723
    %1006 = vmatpush1.bf16.msra.mxu0 %v722
    %1007 = vmatprep.subr.bf16.mxu0 %v725
    %1008 = vmatpush1.bf16.msra.mxu0 %v724
    %1009 = vmatprep.subr.bf16.mxu0 %v727
    %1010 = vmatpush1.bf16.msra.mxu0 %v726
    %1011 = vmatprep.mubr.bf16.mxu0 %v75
    %1012 = vmatmul.mubr.bf16.gmra.mrb[0].mxu0 %v74
    %v1013 = vpop.f32.mrb[0].mxu0
    %v1014 = vadd.f32 %v973, %v1013
    %v1015 = vpop.f32.mrb[0].mxu0
    %v1016 = vadd.f32 %v975, %v1015
    %v1017 = vpop.f32.mrb[0].mxu0
    %v1018 = vpop.f32.mrb[0].mxu0
    %1019 = vdwg.mxu0
    %v1020 = vmax.f32 %v1014, 0.0
    %v1021 = vmax.f32 %v1016, 0.0
    %v1022 = vpack.c.bf16 %v1020, %v1020
    %v1023 = vpack.c.bf16 %v1021, %v1021
    %v1024 = vld [vmem:[#allocation7] sm:$0xff]
    %v1025 = vld [vmem:[#allocation7 + $0x8] sm:$0xff]
    %v1026 = vld [vmem:[#allocation7 + $0x10] sm:$0xff]
    %v1027 = vld [vmem:[#allocation7 + $0x18] sm:$0xff]
    %v1028 = vld [vmem:[#allocation7 + $0x20] sm:$0xff]
    %v1029 = vld [vmem:[#allocation7 + $0x28] sm:$0xff]
    %v1030 = vld [vmem:[#allocation7 + $0x30] sm:$0xff]
    %v1031 = vld [vmem:[#allocation7 + $0x38] sm:$0xff]
    %v1032 = vld [vmem:[#allocation7 + $0x40] sm:$0xff]
    %v1033 = vld [vmem:[#allocation7 + $0x48] sm:$0xff]
    %v1034 = vld [vmem:[#allocation7 + $0x50] sm:$0xff]
    %v1035 = vld [vmem:[#allocation7 + $0x58] sm:$0xff]
    %v1036 = vld [vmem:[#allocation7 + $0x60] sm:$0xff]
    %v1037 = vld [vmem:[#allocation7 + $0x68] sm:$0xff]
    %v1038 = vld [vmem:[#allocation7 + $0x70] sm:$0xff]
    %v1039 = vld [vmem:[#allocation7 + $0x78] sm:$0xff]
    %v1040 = vld [vmem:[#allocation7 + $0x80] sm:$0xff]
    %v1041 = vld [vmem:[#allocation7 + $0x88] sm:$0xff]
    %v1042 = vld [vmem:[#allocation7 + $0x90] sm:$0xff]
    %v1043 = vld [vmem:[#allocation7 + $0x98] sm:$0xff]
    %v1044 = vld [vmem:[#allocation7 + $0xa0] sm:$0xff]
    %v1045 = vld [vmem:[#allocation7 + $0xa8] sm:$0xff]
    %v1046 = vld [vmem:[#allocation7 + $0xb0] sm:$0xff]
    %v1047 = vld [vmem:[#allocation7 + $0xb8] sm:$0xff]
    %v1048 = vld [vmem:[#allocation7 + $0xc0] sm:$0xff]
    %v1049 = vld [vmem:[#allocation7 + $0xc8] sm:$0xff]
    %v1050 = vld [vmem:[#allocation7 + $0xd0] sm:$0xff]
    %v1051 = vld [vmem:[#allocation7 + $0xd8] sm:$0xff]
    %v1052 = vld [vmem:[#allocation7 + $0xe0] sm:$0xff]
    %v1053 = vld [vmem:[#allocation7 + $0xe8] sm:$0xff]
    %v1054 = vld [vmem:[#allocation7 + $0xf0] sm:$0xff]
    %v1055 = vld [vmem:[#allocation7 + $0xf8] sm:$0xff]
    %v1056 = vld [vmem:[#allocation7 + $0x100] sm:$0xff]
    %v1057 = vld [vmem:[#allocation7 + $0x108] sm:$0xff]
    %v1058 = vld [vmem:[#allocation7 + $0x110] sm:$0xff]
    %v1059 = vld [vmem:[#allocation7 + $0x118] sm:$0xff]
    %v1060 = vld [vmem:[#allocation7 + $0x120] sm:$0xff]
    %v1061 = vld [vmem:[#allocation7 + $0x128] sm:$0xff]
    %v1062 = vld [vmem:[#allocation7 + $0x130] sm:$0xff]
    %v1063 = vld [vmem:[#allocation7 + $0x138] sm:$0xff]
    %v1064 = vld [vmem:[#allocation7 + $0x140] sm:$0xff]
    %v1065 = vld [vmem:[#allocation7 + $0x148] sm:$0xff]
    %v1066 = vld [vmem:[#allocation7 + $0x150] sm:$0xff]
    %v1067 = vld [vmem:[#allocation7 + $0x158] sm:$0xff]
    %v1068 = vld [vmem:[#allocation7 + $0x160] sm:$0xff]
    %v1069 = vld [vmem:[#allocation7 + $0x168] sm:$0xff]
    %v1070 = vld [vmem:[#allocation7 + $0x170] sm:$0xff]
    %v1071 = vld [vmem:[#allocation7 + $0x178] sm:$0xff]
    %v1072 = vld [vmem:[#allocation7 + $0x180] sm:$0xff]
    %v1073 = vld [vmem:[#allocation7 + $0x188] sm:$0xff]
    %v1074 = vld [vmem:[#allocation7 + $0x190] sm:$0xff]
    %v1075 = vld [vmem:[#allocation7 + $0x198] sm:$0xff]
    %v1076 = vld [vmem:[#allocation7 + $0x1a0] sm:$0xff]
    %v1077 = vld [vmem:[#allocation7 + $0x1a8] sm:$0xff]
    %v1078 = vld [vmem:[#allocation7 + $0x1b0] sm:$0xff]
    %v1079 = vld [vmem:[#allocation7 + $0x1b8] sm:$0xff]
    %v1080 = vld [vmem:[#allocation7 + $0x1c0] sm:$0xff]
    %v1081 = vld [vmem:[#allocation7 + $0x1c8] sm:$0xff]
    %v1082 = vld [vmem:[#allocation7 + $0x1d0] sm:$0xff]
    %v1083 = vld [vmem:[#allocation7 + $0x1d8] sm:$0xff]
    %v1084 = vld [vmem:[#allocation7 + $0x1e0] sm:$0xff]
    %v1085 = vld [vmem:[#allocation7 + $0x1e8] sm:$0xff]
    %v1086 = vld [vmem:[#allocation7 + $0x1f0] sm:$0xff]
    %v1087 = vld [vmem:[#allocation7 + $0x1f8] sm:$0xff]
    %v1088 = vld [vmem:[#allocation7 + $0x200] sm:$0xff]
    %v1089 = vld [vmem:[#allocation7 + $0x208] sm:$0xff]
    %v1090 = vld [vmem:[#allocation7 + $0x210] sm:$0xff]
    %v1091 = vld [vmem:[#allocation7 + $0x218] sm:$0xff]
    %v1092 = vld [vmem:[#allocation7 + $0x220] sm:$0xff]
    %v1093 = vld [vmem:[#allocation7 + $0x228] sm:$0xff]
    %v1094 = vld [vmem:[#allocation7 + $0x230] sm:$0xff]
    %v1095 = vld [vmem:[#allocation7 + $0x238] sm:$0xff]
    %v1096 = vld [vmem:[#allocation7 + $0x240] sm:$0xff]
    %v1097 = vld [vmem:[#allocation7 + $0x248] sm:$0xff]
    %v1098 = vld [vmem:[#allocation7 + $0x250] sm:$0xff]
    %v1099 = vld [vmem:[#allocation7 + $0x258] sm:$0xff]
    %v1100 = vld [vmem:[#allocation7 + $0x260] sm:$0xff]
    %v1101 = vld [vmem:[#allocation7 + $0x268] sm:$0xff]
    %v1102 = vld [vmem:[#allocation7 + $0x270] sm:$0xff]
    %v1103 = vld [vmem:[#allocation7 + $0x278] sm:$0xff]
    %v1104 = vld [vmem:[#allocation7 + $0x280] sm:$0xff]
    %v1105 = vld [vmem:[#allocation7 + $0x288] sm:$0xff]
    %v1106 = vld [vmem:[#allocation7 + $0x290] sm:$0xff]
    %v1107 = vld [vmem:[#allocation7 + $0x298] sm:$0xff]
    %v1108 = vld [vmem:[#allocation7 + $0x2a0] sm:$0xff]
    %v1109 = vld [vmem:[#allocation7 + $0x2a8] sm:$0xff]
    %v1110 = vld [vmem:[#allocation7 + $0x2b0] sm:$0xff]
    %v1111 = vld [vmem:[#allocation7 + $0x2b8] sm:$0xff]
    %v1112 = vld [vmem:[#allocation7 + $0x2c0] sm:$0xff]
    %v1113 = vld [vmem:[#allocation7 + $0x2c8] sm:$0xff]
    %v1114 = vld [vmem:[#allocation7 + $0x2d0] sm:$0xff]
    %v1115 = vld [vmem:[#allocation7 + $0x2d8] sm:$0xff]
    %v1116 = vld [vmem:[#allocation7 + $0x2e0] sm:$0xff]
    %v1117 = vld [vmem:[#allocation7 + $0x2e8] sm:$0xff]
    %v1118 = vld [vmem:[#allocation7 + $0x2f0] sm:$0xff]
    %v1119 = vld [vmem:[#allocation7 + $0x2f8] sm:$0xff]
    %v1120 = vld [vmem:[#allocation7 + $0x300] sm:$0xff]
    %v1121 = vld [vmem:[#allocation7 + $0x308] sm:$0xff]
    %v1122 = vld [vmem:[#allocation7 + $0x310] sm:$0xff]
    %v1123 = vld [vmem:[#allocation7 + $0x318] sm:$0xff]
    %v1124 = vld [vmem:[#allocation7 + $0x320] sm:$0xff]
    %v1125 = vld [vmem:[#allocation7 + $0x328] sm:$0xff]
    %v1126 = vld [vmem:[#allocation7 + $0x330] sm:$0xff]
    %v1127 = vld [vmem:[#allocation7 + $0x338] sm:$0xff]
    %v1128 = vld [vmem:[#allocation7 + $0x340] sm:$0xff]
    %v1129 = vld [vmem:[#allocation7 + $0x348] sm:$0xff]
    %v1130 = vld [vmem:[#allocation7 + $0x350] sm:$0xff]
    %v1131 = vld [vmem:[#allocation7 + $0x358] sm:$0xff]
    %v1132 = vld [vmem:[#allocation7 + $0x360] sm:$0xff]
    %v1133 = vld [vmem:[#allocation7 + $0x368] sm:$0xff]
    %v1134 = vld [vmem:[#allocation7 + $0x370] sm:$0xff]
    %v1135 = vld [vmem:[#allocation7 + $0x378] sm:$0xff]
    %v1136 = vld [vmem:[#allocation7 + $0x380] sm:$0xff]
    %v1137 = vld [vmem:[#allocation7 + $0x388] sm:$0xff]
    %v1138 = vld [vmem:[#allocation7 + $0x390] sm:$0xff]
    %v1139 = vld [vmem:[#allocation7 + $0x398] sm:$0xff]
    %v1140 = vld [vmem:[#allocation7 + $0x3a0] sm:$0xff]
    %v1141 = vld [vmem:[#allocation7 + $0x3a8] sm:$0xff]
    %v1142 = vld [vmem:[#allocation7 + $0x3b0] sm:$0xff]
    %v1143 = vld [vmem:[#allocation7 + $0x3b8] sm:$0xff]
    %v1144 = vld [vmem:[#allocation7 + $0x3c0] sm:$0xff]
    %v1145 = vld [vmem:[#allocation7 + $0x3c8] sm:$0xff]
    %v1146 = vld [vmem:[#allocation7 + $0x3d0] sm:$0xff]
    %v1147 = vld [vmem:[#allocation7 + $0x3d8] sm:$0xff]
    %v1148 = vld [vmem:[#allocation7 + $0x3e0] sm:$0xff]
    %v1149 = vld [vmem:[#allocation7 + $0x3e8] sm:$0xff]
    %v1150 = vld [vmem:[#allocation7 + $0x3f0] sm:$0xff]
    %v1151 = vld [vmem:[#allocation7 + $0x3f8] sm:$0xff]
    %v1152 = vld [vmem:[%s4] sm:$0xff]
    %v1154 = vlaneseq
    %v1155 = vshrl.u32 %v1154, 7
    %v1156 = vsub.s32 0, %v1155
    %v1157 = vrot.slane %v1152, %v1156
    %v1158 = vlaneseq
    %v1159 = vshrl.u32 %v1158, 7
    %v1160 = vsub.s32 1, %v1159
    %v1161 = vrot.slane %v1152, %v1160
    %v1162 = vlaneseq
    %v1163 = vshrl.u32 %v1162, 7
    %v1164 = vsub.s32 2, %v1163
    %v1165 = vrot.slane %v1152, %v1164
    %v1166 = vlaneseq
    %v1167 = vshrl.u32 %v1166, 7
    %v1168 = vsub.s32 3, %v1167
    %v1169 = vrot.slane %v1152, %v1168
    %v1170 = vlaneseq
    %v1171 = vshrl.u32 %v1170, 7
    %v1172 = vsub.s32 4, %v1171
    %v1173 = vrot.slane %v1152, %v1172
    %v1174 = vlaneseq
    %v1175 = vshrl.u32 %v1174, 7
    %v1176 = vsub.s32 5, %v1175
    %v1177 = vrot.slane %v1152, %v1176
    %v1178 = vlaneseq
    %v1179 = vshrl.u32 %v1178, 7
    %v1180 = vsub.s32 6, %v1179
    %v1181 = vrot.slane %v1152, %v1180
    %v1182 = vlaneseq
    %v1183 = vshrl.u32 %v1182, 7
    %v1184 = vsub.s32 7, %v1183
    %v1185 = vrot.slane %v1152, %v1184
    %v1322 = vunpack.c.l.b16 %v1024
    %v1323 = vunpack.c.h.b16 %v1024
    %v1324 = vunpack.c.l.b16 %v1025
    %v1325 = vunpack.c.h.b16 %v1025
    %v1326 = vunpack.c.l.b16 %v1026
    %v1327 = vunpack.c.h.b16 %v1026
    %v1328 = vunpack.c.l.b16 %v1027
    %v1329 = vunpack.c.h.b16 %v1027
    %v1330 = vunpack.c.l.b16 %v1028
    %v1331 = vunpack.c.h.b16 %v1028
    %v1332 = vunpack.c.l.b16 %v1029
    %v1333 = vunpack.c.h.b16 %v1029
    %v1334 = vunpack.c.l.b16 %v1030
    %v1335 = vunpack.c.h.b16 %v1030
    %v1336 = vunpack.c.l.b16 %v1031
    %v1337 = vunpack.c.h.b16 %v1031
    %v1338 = vunpack.c.l.b16 %v1032
    %v1339 = vunpack.c.h.b16 %v1032
    %v1340 = vunpack.c.l.b16 %v1033
    %v1341 = vunpack.c.h.b16 %v1033
    %v1342 = vunpack.c.l.b16 %v1034
    %v1343 = vunpack.c.h.b16 %v1034
    %v1344 = vunpack.c.l.b16 %v1035
    %v1345 = vunpack.c.h.b16 %v1035
    %v1346 = vunpack.c.l.b16 %v1036
    %v1347 = vunpack.c.h.b16 %v1036
    %v1348 = vunpack.c.l.b16 %v1037
    %v1349 = vunpack.c.h.b16 %v1037
    %v1350 = vunpack.c.l.b16 %v1038
    %v1351 = vunpack.c.h.b16 %v1038
    %v1352 = vunpack.c.l.b16 %v1039
    %v1353 = vunpack.c.h.b16 %v1039
    %v1354 = vunpack.c.l.b16 %v1040
    %v1355 = vunpack.c.h.b16 %v1040
    %v1356 = vunpack.c.l.b16 %v1041
    %v1357 = vunpack.c.h.b16 %v1041
    %v1358 = vunpack.c.l.b16 %v1042
    %v1359 = vunpack.c.h.b16 %v1042
    %v1360 = vunpack.c.l.b16 %v1043
    %v1361 = vunpack.c.h.b16 %v1043
    %v1362 = vunpack.c.l.b16 %v1044
    %v1363 = vunpack.c.h.b16 %v1044
    %v1364 = vunpack.c.l.b16 %v1045
    %v1365 = vunpack.c.h.b16 %v1045
    %v1366 = vunpack.c.l.b16 %v1046
    %v1367 = vunpack.c.h.b16 %v1046
    %v1368 = vunpack.c.l.b16 %v1047
    %v1369 = vunpack.c.h.b16 %v1047
    %v1370 = vunpack.c.l.b16 %v1048
    %v1371 = vunpack.c.h.b16 %v1048
    %v1372 = vunpack.c.l.b16 %v1049
    %v1373 = vunpack.c.h.b16 %v1049
    %v1374 = vunpack.c.l.b16 %v1050
    %v1375 = vunpack.c.h.b16 %v1050
    %v1376 = vunpack.c.l.b16 %v1051
    %v1377 = vunpack.c.h.b16 %v1051
    %v1378 = vunpack.c.l.b16 %v1052
    %v1379 = vunpack.c.h.b16 %v1052
    %v1380 = vunpack.c.l.b16 %v1053
    %v1381 = vunpack.c.h.b16 %v1053
    %v1382 = vunpack.c.l.b16 %v1054
    %v1383 = vunpack.c.h.b16 %v1054
    %v1384 = vunpack.c.l.b16 %v1055
    %v1385 = vunpack.c.h.b16 %v1055
    %v1386 = vunpack.c.l.b16 %v1056
    %v1387 = vunpack.c.h.b16 %v1056
    %v1388 = vunpack.c.l.b16 %v1057
    %v1389 = vunpack.c.h.b16 %v1057
    %v1390 = vunpack.c.l.b16 %v1058
    %v1391 = vunpack.c.h.b16 %v1058
    %v1392 = vunpack.c.l.b16 %v1059
    %v1393 = vunpack.c.h.b16 %v1059
    %v1394 = vunpack.c.l.b16 %v1060
    %v1395 = vunpack.c.h.b16 %v1060
    %v1396 = vunpack.c.l.b16 %v1061
    %v1397 = vunpack.c.h.b16 %v1061
    %v1398 = vunpack.c.l.b16 %v1062
    %v1399 = vunpack.c.h.b16 %v1062
    %v1400 = vunpack.c.l.b16 %v1063
    %v1401 = vunpack.c.h.b16 %v1063
    %v1402 = vunpack.c.l.b16 %v1064
    %v1403 = vunpack.c.h.b16 %v1064
    %v1404 = vunpack.c.l.b16 %v1065
    %v1405 = vunpack.c.h.b16 %v1065
    %v1406 = vunpack.c.l.b16 %v1066
    %v1407 = vunpack.c.h.b16 %v1066
    %v1408 = vunpack.c.l.b16 %v1067
    %v1409 = vunpack.c.h.b16 %v1067
    %v1410 = vunpack.c.l.b16 %v1068
    %v1411 = vunpack.c.h.b16 %v1068
    %v1412 = vunpack.c.l.b16 %v1069
    %v1413 = vunpack.c.h.b16 %v1069
    %v1414 = vunpack.c.l.b16 %v1070
    %v1415 = vunpack.c.h.b16 %v1070
    %v1416 = vunpack.c.l.b16 %v1071
    %v1417 = vunpack.c.h.b16 %v1071
    %v1418 = vunpack.c.l.b16 %v1072
    %v1419 = vunpack.c.h.b16 %v1072
    %v1420 = vunpack.c.l.b16 %v1073
    %v1421 = vunpack.c.h.b16 %v1073
    %v1422 = vunpack.c.l.b16 %v1074
    %v1423 = vunpack.c.h.b16 %v1074
    %v1424 = vunpack.c.l.b16 %v1075
    %v1425 = vunpack.c.h.b16 %v1075
    %v1426 = vunpack.c.l.b16 %v1076
    %v1427 = vunpack.c.h.b16 %v1076
    %v1428 = vunpack.c.l.b16 %v1077
    %v1429 = vunpack.c.h.b16 %v1077
    %v1430 = vunpack.c.l.b16 %v1078
    %v1431 = vunpack.c.h.b16 %v1078
    %v1432 = vunpack.c.l.b16 %v1079
    %v1433 = vunpack.c.h.b16 %v1079
    %v1434 = vunpack.c.l.b16 %v1080
    %v1435 = vunpack.c.h.b16 %v1080
    %v1436 = vunpack.c.l.b16 %v1081
    %v1437 = vunpack.c.h.b16 %v1081
    %v1438 = vunpack.c.l.b16 %v1082
    %v1439 = vunpack.c.h.b16 %v1082
    %v1440 = vunpack.c.l.b16 %v1083
    %v1441 = vunpack.c.h.b16 %v1083
    %v1442 = vunpack.c.l.b16 %v1084
    %v1443 = vunpack.c.h.b16 %v1084
    %v1444 = vunpack.c.l.b16 %v1085
    %v1445 = vunpack.c.h.b16 %v1085
    %v1446 = vunpack.c.l.b16 %v1086
    %v1447 = vunpack.c.h.b16 %v1086
    %v1448 = vunpack.c.l.b16 %v1087
    %v1449 = vunpack.c.h.b16 %v1087
    %v1450 = vunpack.c.l.b16 %v1088
    %v1451 = vunpack.c.h.b16 %v1088
    %v1452 = vunpack.c.l.b16 %v1089
    %v1453 = vunpack.c.h.b16 %v1089
    %v1454 = vunpack.c.l.b16 %v1090
    %v1455 = vunpack.c.h.b16 %v1090
    %v1456 = vunpack.c.l.b16 %v1091
    %v1457 = vunpack.c.h.b16 %v1091
    %v1458 = vunpack.c.l.b16 %v1092
    %v1459 = vunpack.c.h.b16 %v1092
    %v1460 = vunpack.c.l.b16 %v1093
    %v1461 = vunpack.c.h.b16 %v1093
    %v1462 = vunpack.c.l.b16 %v1094
    %v1463 = vunpack.c.h.b16 %v1094
    %v1464 = vunpack.c.l.b16 %v1095
    %v1465 = vunpack.c.h.b16 %v1095
    %v1466 = vunpack.c.l.b16 %v1096
    %v1467 = vunpack.c.h.b16 %v1096
    %v1468 = vunpack.c.l.b16 %v1097
    %v1469 = vunpack.c.h.b16 %v1097
    %v1470 = vunpack.c.l.b16 %v1098
    %v1471 = vunpack.c.h.b16 %v1098
    %v1472 = vunpack.c.l.b16 %v1099
    %v1473 = vunpack.c.h.b16 %v1099
    %v1474 = vunpack.c.l.b16 %v1100
    %v1475 = vunpack.c.h.b16 %v1100
    %v1476 = vunpack.c.l.b16 %v1101
    %v1477 = vunpack.c.h.b16 %v1101
    %v1478 = vunpack.c.l.b16 %v1102
    %v1479 = vunpack.c.h.b16 %v1102
    %v1480 = vunpack.c.l.b16 %v1103
    %v1481 = vunpack.c.h.b16 %v1103
    %v1482 = vunpack.c.l.b16 %v1104
    %v1483 = vunpack.c.h.b16 %v1104
    %v1484 = vunpack.c.l.b16 %v1105
    %v1485 = vunpack.c.h.b16 %v1105
    %v1486 = vunpack.c.l.b16 %v1106
    %v1487 = vunpack.c.h.b16 %v1106
    %v1488 = vunpack.c.l.b16 %v1107
    %v1489 = vunpack.c.h.b16 %v1107
    %v1490 = vunpack.c.l.b16 %v1108
    %v1491 = vunpack.c.h.b16 %v1108
    %v1492 = vunpack.c.l.b16 %v1109
    %v1493 = vunpack.c.h.b16 %v1109
    %v1494 = vunpack.c.l.b16 %v1110
    %v1495 = vunpack.c.h.b16 %v1110
    %v1496 = vunpack.c.l.b16 %v1111
    %v1497 = vunpack.c.h.b16 %v1111
    %v1498 = vunpack.c.l.b16 %v1112
    %v1499 = vunpack.c.h.b16 %v1112
    %v1500 = vunpack.c.l.b16 %v1113
    %v1501 = vunpack.c.h.b16 %v1113
    %v1502 = vunpack.c.l.b16 %v1114
    %v1503 = vunpack.c.h.b16 %v1114
    %v1504 = vunpack.c.l.b16 %v1115
    %v1505 = vunpack.c.h.b16 %v1115
    %v1506 = vunpack.c.l.b16 %v1116
    %v1507 = vunpack.c.h.b16 %v1116
    %v1508 = vunpack.c.l.b16 %v1117
    %v1509 = vunpack.c.h.b16 %v1117
    %v1510 = vunpack.c.l.b16 %v1118
    %v1511 = vunpack.c.h.b16 %v1118
    %v1512 = vunpack.c.l.b16 %v1119
    %v1513 = vunpack.c.h.b16 %v1119
    %v1514 = vunpack.c.l.b16 %v1120
    %v1515 = vunpack.c.h.b16 %v1120
    %v1516 = vunpack.c.l.b16 %v1121
    %v1517 = vunpack.c.h.b16 %v1121
    %v1518 = vunpack.c.l.b16 %v1122
    %v1519 = vunpack.c.h.b16 %v1122
    %v1520 = vunpack.c.l.b16 %v1123
    %v1521 = vunpack.c.h.b16 %v1123
    %v1522 = vunpack.c.l.b16 %v1124
    %v1523 = vunpack.c.h.b16 %v1124
    %v1524 = vunpack.c.l.b16 %v1125
    %v1525 = vunpack.c.h.b16 %v1125
    %v1526 = vunpack.c.l.b16 %v1126
    %v1527 = vunpack.c.h.b16 %v1126
    %v1528 = vunpack.c.l.b16 %v1127
    %v1529 = vunpack.c.h.b16 %v1127
    %v1530 = vunpack.c.l.b16 %v1128
    %v1531 = vunpack.c.h.b16 %v1128
    %v1532 = vunpack.c.l.b16 %v1129
    %v1533 = vunpack.c.h.b16 %v1129
    %v1534 = vunpack.c.l.b16 %v1130
    %v1535 = vunpack.c.h.b16 %v1130
    %v1536 = vunpack.c.l.b16 %v1131
    %v1537 = vunpack.c.h.b16 %v1131
    %v1538 = vunpack.c.l.b16 %v1132
    %v1539 = vunpack.c.h.b16 %v1132
    %v1540 = vunpack.c.l.b16 %v1133
    %v1541 = vunpack.c.h.b16 %v1133
    %v1542 = vunpack.c.l.b16 %v1134
    %v1543 = vunpack.c.h.b16 %v1134
    %v1544 = vunpack.c.l.b16 %v1135
    %v1545 = vunpack.c.h.b16 %v1135
    %v1546 = vunpack.c.l.b16 %v1136
    %v1547 = vunpack.c.h.b16 %v1136
    %v1548 = vunpack.c.l.b16 %v1137
    %v1549 = vunpack.c.h.b16 %v1137
    %v1550 = vunpack.c.l.b16 %v1138
    %v1551 = vunpack.c.h.b16 %v1138
    %v1552 = vunpack.c.l.b16 %v1139
    %v1553 = vunpack.c.h.b16 %v1139
    %v1554 = vunpack.c.l.b16 %v1140
    %v1555 = vunpack.c.h.b16 %v1140
    %v1556 = vunpack.c.l.b16 %v1141
    %v1557 = vunpack.c.h.b16 %v1141
    %v1558 = vunpack.c.l.b16 %v1142
    %v1559 = vunpack.c.h.b16 %v1142
    %v1560 = vunpack.c.l.b16 %v1143
    %v1561 = vunpack.c.h.b16 %v1143
    %v1562 = vunpack.c.l.b16 %v1144
    %v1563 = vunpack.c.h.b16 %v1144
    %v1564 = vunpack.c.l.b16 %v1145
    %v1565 = vunpack.c.h.b16 %v1145
    %v1566 = vunpack.c.l.b16 %v1146
    %v1567 = vunpack.c.h.b16 %v1146
    %v1568 = vunpack.c.l.b16 %v1147
    %v1569 = vunpack.c.h.b16 %v1147
    %v1570 = vunpack.c.l.b16 %v1148
    %v1571 = vunpack.c.h.b16 %v1148
    %v1572 = vunpack.c.l.b16 %v1149
    %v1573 = vunpack.c.h.b16 %v1149
    %v1574 = vunpack.c.l.b16 %v1150
    %v1575 = vunpack.c.h.b16 %v1150
    %v1576 = vunpack.c.l.b16 %v1151
    %v1577 = vunpack.c.h.b16 %v1151
    %v1578 = vpack.c.b16 %v1330, %v1322
    %v1579 = vpack.c.b16 %v1331, %v1323
    %v1580 = vpack.c.b16 %v1332, %v1324
    %v1581 = vpack.c.b16 %v1333, %v1325
    %v1582 = vpack.c.b16 %v1334, %v1326
    %v1583 = vpack.c.b16 %v1335, %v1327
    %v1584 = vpack.c.b16 %v1336, %v1328
    %v1585 = vpack.c.b16 %v1337, %v1329
    %v1586 = vpack.c.b16 %v1346, %v1338
    %v1587 = vpack.c.b16 %v1347, %v1339
    %v1588 = vpack.c.b16 %v1348, %v1340
    %v1589 = vpack.c.b16 %v1349, %v1341
    %v1590 = vpack.c.b16 %v1350, %v1342
    %v1591 = vpack.c.b16 %v1351, %v1343
    %v1592 = vpack.c.b16 %v1352, %v1344
    %v1593 = vpack.c.b16 %v1353, %v1345
    %v1594 = vpack.c.b16 %v1362, %v1354
    %v1595 = vpack.c.b16 %v1363, %v1355
    %v1596 = vpack.c.b16 %v1364, %v1356
    %v1597 = vpack.c.b16 %v1365, %v1357
    %v1598 = vpack.c.b16 %v1366, %v1358
    %v1599 = vpack.c.b16 %v1367, %v1359
    %v1600 = vpack.c.b16 %v1368, %v1360
    %v1601 = vpack.c.b16 %v1369, %v1361
    %v1602 = vpack.c.b16 %v1378, %v1370
    %v1603 = vpack.c.b16 %v1379, %v1371
    %v1604 = vpack.c.b16 %v1380, %v1372
    %v1605 = vpack.c.b16 %v1381, %v1373
    %v1606 = vpack.c.b16 %v1382, %v1374
    %v1607 = vpack.c.b16 %v1383, %v1375
    %v1608 = vpack.c.b16 %v1384, %v1376
    %v1609 = vpack.c.b16 %v1385, %v1377
    %v1610 = vpack.c.b16 %v1394, %v1386
    %v1611 = vpack.c.b16 %v1395, %v1387
    %v1612 = vpack.c.b16 %v1396, %v1388
    %v1613 = vpack.c.b16 %v1397, %v1389
    %v1614 = vpack.c.b16 %v1398, %v1390
    %v1615 = vpack.c.b16 %v1399, %v1391
    %v1616 = vpack.c.b16 %v1400, %v1392
    %v1617 = vpack.c.b16 %v1401, %v1393
    %v1618 = vpack.c.b16 %v1410, %v1402
    %v1619 = vpack.c.b16 %v1411, %v1403
    %v1620 = vpack.c.b16 %v1412, %v1404
    %v1621 = vpack.c.b16 %v1413, %v1405
    %v1622 = vpack.c.b16 %v1414, %v1406
    %v1623 = vpack.c.b16 %v1415, %v1407
    %v1624 = vpack.c.b16 %v1416, %v1408
    %v1625 = vpack.c.b16 %v1417, %v1409
    %v1626 = vpack.c.b16 %v1426, %v1418
    %v1627 = vpack.c.b16 %v1427, %v1419
    %v1628 = vpack.c.b16 %v1428, %v1420
    %v1629 = vpack.c.b16 %v1429, %v1421
    %v1630 = vpack.c.b16 %v1430, %v1422
    %v1631 = vpack.c.b16 %v1431, %v1423
    %v1632 = vpack.c.b16 %v1432, %v1424
    %v1633 = vpack.c.b16 %v1433, %v1425
    %v1634 = vpack.c.b16 %v1442, %v1434
    %v1635 = vpack.c.b16 %v1443, %v1435
    %v1636 = vpack.c.b16 %v1444, %v1436
    %v1637 = vpack.c.b16 %v1445, %v1437
    %v1638 = vpack.c.b16 %v1446, %v1438
    %v1639 = vpack.c.b16 %v1447, %v1439
    %v1640 = vpack.c.b16 %v1448, %v1440
    %v1641 = vpack.c.b16 %v1449, %v1441
    %v1642 = vpack.c.b16 %v1458, %v1450
    %v1643 = vpack.c.b16 %v1459, %v1451
    %v1644 = vpack.c.b16 %v1460, %v1452
    %v1645 = vpack.c.b16 %v1461, %v1453
    %v1646 = vpack.c.b16 %v1462, %v1454
    %v1647 = vpack.c.b16 %v1463, %v1455
    %v1648 = vpack.c.b16 %v1464, %v1456
    %v1649 = vpack.c.b16 %v1465, %v1457
    %v1650 = vpack.c.b16 %v1474, %v1466
    %v1651 = vpack.c.b16 %v1475, %v1467
    %v1652 = vpack.c.b16 %v1476, %v1468
    %v1653 = vpack.c.b16 %v1477, %v1469
    %v1654 = vpack.c.b16 %v1478, %v1470
    %v1655 = vpack.c.b16 %v1479, %v1471
    %v1656 = vpack.c.b16 %v1480, %v1472
    %v1657 = vpack.c.b16 %v1481, %v1473
    %v1658 = vpack.c.b16 %v1490, %v1482
    %v1659 = vpack.c.b16 %v1491, %v1483
    %v1660 = vpack.c.b16 %v1492, %v1484
    %v1661 = vpack.c.b16 %v1493, %v1485
    %v1662 = vpack.c.b16 %v1494, %v1486
    %v1663 = vpack.c.b16 %v1495, %v1487
    %v1664 = vpack.c.b16 %v1496, %v1488
    %v1665 = vpack.c.b16 %v1497, %v1489
    %v1666 = vpack.c.b16 %v1506, %v1498
    %v1667 = vpack.c.b16 %v1507, %v1499
    %v1668 = vpack.c.b16 %v1508, %v1500
    %v1669 = vpack.c.b16 %v1509, %v1501
    %v1670 = vpack.c.b16 %v1510, %v1502
    %v1671 = vpack.c.b16 %v1511, %v1503
    %v1672 = vpack.c.b16 %v1512, %v1504
    %v1673 = vpack.c.b16 %v1513, %v1505
    %v1674 = vpack.c.b16 %v1522, %v1514
    %v1675 = vpack.c.b16 %v1523, %v1515
    %v1676 = vpack.c.b16 %v1524, %v1516
    %v1677 = vpack.c.b16 %v1525, %v1517
    %v1678 = vpack.c.b16 %v1526, %v1518
    %v1679 = vpack.c.b16 %v1527, %v1519
    %v1680 = vpack.c.b16 %v1528, %v1520
    %v1681 = vpack.c.b16 %v1529, %v1521
    %v1682 = vpack.c.b16 %v1538, %v1530
    %v1683 = vpack.c.b16 %v1539, %v1531
    %v1684 = vpack.c.b16 %v1540, %v1532
    %v1685 = vpack.c.b16 %v1541, %v1533
    %v1686 = vpack.c.b16 %v1542, %v1534
    %v1687 = vpack.c.b16 %v1543, %v1535
    %v1688 = vpack.c.b16 %v1544, %v1536
    %v1689 = vpack.c.b16 %v1545, %v1537
    %v1690 = vpack.c.b16 %v1554, %v1546
    %v1691 = vpack.c.b16 %v1555, %v1547
    %v1692 = vpack.c.b16 %v1556, %v1548
    %v1693 = vpack.c.b16 %v1557, %v1549
    %v1694 = vpack.c.b16 %v1558, %v1550
    %v1695 = vpack.c.b16 %v1559, %v1551
    %v1696 = vpack.c.b16 %v1560, %v1552
    %v1697 = vpack.c.b16 %v1561, %v1553
    %v1698 = vpack.c.b16 %v1570, %v1562
    %v1699 = vpack.c.b16 %v1571, %v1563
    %v1700 = vpack.c.b16 %v1572, %v1564
    %v1701 = vpack.c.b16 %v1573, %v1565
    %v1702 = vpack.c.b16 %v1574, %v1566
    %v1703 = vpack.c.b16 %v1575, %v1567
    %v1704 = vpack.c.b16 %v1576, %v1568
    %v1705 = vpack.c.b16 %v1577, %v1569
    %1834 = vmatprep.subr.bf16.mxu0 %v1579
    %1835 = vmatpush1.bf16.msra.mxu0 %v1578
    %1836 = vmatprep.subr.bf16.mxu0 %v1587
    %1837 = vmatpush1.bf16.msra.mxu0 %v1586
    %1838 = vmatprep.subr.bf16.mxu0 %v1595
    %1839 = vmatpush1.bf16.msra.mxu0 %v1594
    %1840 = vmatprep.subr.bf16.mxu0 %v1603
    %1841 = vmatpush1.bf16.msra.mxu0 %v1602
    %1842 = vmatprep.subr.bf16.mxu0 %v1611
    %1843 = vmatpush1.bf16.msra.mxu0 %v1610
    %1844 = vmatprep.subr.bf16.mxu0 %v1619
    %1845 = vmatpush1.bf16.msra.mxu0 %v1618
    %1846 = vmatprep.subr.bf16.mxu0 %v1627
    %1847 = vmatpush1.bf16.msra.mxu0 %v1626
    %1848 = vmatprep.subr.bf16.mxu0 %v1635
    %1849 = vmatpush1.bf16.msra.mxu0 %v1634
    %1850 = vmatprep.subr.bf16.mxu0 %v1643
    %1851 = vmatpush1.bf16.msra.mxu0 %v1642
    %1852 = vmatprep.subr.bf16.mxu0 %v1651
    %1853 = vmatpush1.bf16.msra.mxu0 %v1650
    %1854 = vmatprep.subr.bf16.mxu0 %v1659
    %1855 = vmatpush1.bf16.msra.mxu0 %v1658
    %1856 = vmatprep.subr.bf16.mxu0 %v1667
    %1857 = vmatpush1.bf16.msra.mxu0 %v1666
    %1858 = vmatprep.subr.bf16.mxu0 %v1675
    %1859 = vmatpush1.bf16.msra.mxu0 %v1674
    %1860 = vmatprep.subr.bf16.mxu0 %v1683
    %1861 = vmatpush1.bf16.msra.mxu0 %v1682
    %1862 = vmatprep.subr.bf16.mxu0 %v1691
    %1863 = vmatpush1.bf16.msra.mxu0 %v1690
    %1864 = vmatprep.subr.bf16.mxu0 %v1699
    %1865 = vmatpush1.bf16.msra.mxu0 %v1698
    %1866 = vmatprep.mubr.bf16.mxu0 %v1023
    %1867 = vmatmul.mubr.bf16.gmra.mrb[0].mxu0 %v1022
    %v1868 = vpop.f32.mrb[0].mxu0
    %v1869 = vadd.f32 %v1157, %v1868
    %v1870 = vpop.f32.mrb[0].mxu0
    %v1871 = vadd.f32 %v1161, %v1870
    %v1872 = vpop.f32.mrb[0].mxu0
    %v1873 = vpop.f32.mrb[0].mxu0
    %1874 = vdwg.mxu0
    %1875 = vmatprep.subr.bf16.mxu0 %v1581
    %1876 = vmatpush1.bf16.msra.mxu0 %v1580
    %1877 = vmatprep.subr.bf16.mxu0 %v1589
    %1878 = vmatpush1.bf16.msra.mxu0 %v1588
    %1879 = vmatprep.subr.bf16.mxu0 %v1597
    %1880 = vmatpush1.bf16.msra.mxu0 %v1596
    %1881 = vmatprep.subr.bf16.mxu0 %v1605
    %1882 = vmatpush1.bf16.msra.mxu0 %v1604
    %1883 = vmatprep.subr.bf16.mxu0 %v1613
    %1884 = vmatpush1.bf16.msra.mxu0 %v1612
    %1885 = vmatprep.subr.bf16.mxu0 %v1621
    %1886 = vmatpush1.bf16.msra.mxu0 %v1620
    %1887 = vmatprep.subr.bf16.mxu0 %v1629
    %1888 = vmatpush1.bf16.msra.mxu0 %v1628
    %1889 = vmatprep.subr.bf16.mxu0 %v1637
    %1890 = vmatpush1.bf16.msra.mxu0 %v1636
    %1891 = vmatprep.subr.bf16.mxu0 %v1645
    %1892 = vmatpush1.bf16.msra.mxu0 %v1644
    %1893 = vmatprep.subr.bf16.mxu0 %v1653
    %1894 = vmatpush1.bf16.msra.mxu0 %v1652
    %1895 = vmatprep.subr.bf16.mxu0 %v1661
    %1896 = vmatpush1.bf16.msra.mxu0 %v1660
    %1897 = vmatprep.subr.bf16.mxu0 %v1669
    %1898 = vmatpush1.bf16.msra.mxu0 %v1668
    %1899 = vmatprep.subr.bf16.mxu0 %v1677
    %1900 = vmatpush1.bf16.msra.mxu0 %v1676
    %1901 = vmatprep.subr.bf16.mxu0 %v1685
    %1902 = vmatpush1.bf16.msra.mxu0 %v1684
    %1903 = vmatprep.subr.bf16.mxu0 %v1693
    %1904 = vmatpush1.bf16.msra.mxu0 %v1692
    %1905 = vmatprep.subr.bf16.mxu0 %v1701
    %1906 = vmatpush1.bf16.msra.mxu0 %v1700
    %1907 = vmatprep.mubr.bf16.mxu0 %v1023
    %1908 = vmatmul.mubr.bf16.gmra.mrb[0].mxu0 %v1022
    %v1909 = vpop.f32.mrb[0].mxu0
    %v1910 = vadd.f32 %v1165, %v1909
    %v1911 = vpop.f32.mrb[0].mxu0
    %v1912 = vadd.f32 %v1169, %v1911
    %v1913 = vpop.f32.mrb[0].mxu0
    %v1914 = vpop.f32.mrb[0].mxu0
    %1915 = vdwg.mxu0
    %1916 = vmatprep.subr.bf16.mxu0 %v1583
    %1917 = vmatpush1.bf16.msra.mxu0 %v1582
    %1918 = vmatprep.subr.bf16.mxu0 %v1591
    %1919 = vmatpush1.bf16.msra.mxu0 %v1590
    %1920 = vmatprep.subr.bf16.mxu0 %v1599
    %1921 = vmatpush1.bf16.msra.mxu0 %v1598
    %1922 = vmatprep.subr.bf16.mxu0 %v1607
    %1923 = vmatpush1.bf16.msra.mxu0 %v1606
    %1924 = vmatprep.subr.bf16.mxu0 %v1615
    %1925 = vmatpush1.bf16.msra.mxu0 %v1614
    %1926 = vmatprep.subr.bf16.mxu0 %v1623
    %1927 = vmatpush1.bf16.msra.mxu0 %v1622
    %1928 = vmatprep.subr.bf16.mxu0 %v1631
    %1929 = vmatpush1.bf16.msra.mxu0 %v1630
    %1930 = vmatprep.subr.bf16.mxu0 %v1639
    %1931 = vmatpush1.bf16.msra.mxu0 %v1638
    %1932 = vmatprep.subr.bf16.mxu0 %v1647
    %1933 = vmatpush1.bf16.msra.mxu0 %v1646
    %1934 = vmatprep.subr.bf16.mxu0 %v1655
    %1935 = vmatpush1.bf16.msra.mxu0 %v1654
    %1936 = vmatprep.subr.bf16.mxu0 %v1663
    %1937 = vmatpush1.bf16.msra.mxu0 %v1662
    %1938 = vmatprep.subr.bf16.mxu0 %v1671
    %1939 = vmatpush1.bf16.msra.mxu0 %v1670
    %1940 = vmatprep.subr.bf16.mxu0 %v1679
    %1941 = vmatpush1.bf16.msra.mxu0 %v1678
    %1942 = vmatprep.subr.bf16.mxu0 %v1687
    %1943 = vmatpush1.bf16.msra.mxu0 %v1686
    %1944 = vmatprep.subr.bf16.mxu0 %v1695
    %1945 = vmatpush1.bf16.msra.mxu0 %v1694
    %1946 = vmatprep.subr.bf16.mxu0 %v1703
    %1947 = vmatpush1.bf16.msra.mxu0 %v1702
    %1948 = vmatprep.mubr.bf16.mxu0 %v1023
    %1949 = vmatmul.mubr.bf16.gmra.mrb[0].mxu0 %v1022
    %v1950 = vpop.f32.mrb[0].mxu0
    %v1951 = vadd.f32 %v1173, %v1950
    %v1952 = vpop.f32.mrb[0].mxu0
    %v1953 = vadd.f32 %v1177, %v1952
    %v1954 = vpop.f32.mrb[0].mxu0
    %v1955 = vpop.f32.mrb[0].mxu0
    %1956 = vdwg.mxu0
    %1957 = vmatprep.subr.bf16.mxu0 %v1585
    %1958 = vmatpush1.bf16.msra.mxu0 %v1584
    %1959 = vmatprep.subr.bf16.mxu0 %v1593
    %1960 = vmatpush1.bf16.msra.mxu0 %v1592
    %1961 = vmatprep.subr.bf16.mxu0 %v1601
    %1962 = vmatpush1.bf16.msra.mxu0 %v1600
    %1963 = vmatprep.subr.bf16.mxu0 %v1609
    %1964 = vmatpush1.bf16.msra.mxu0 %v1608
    %1965 = vmatprep.subr.bf16.mxu0 %v1617
    %1966 = vmatpush1.bf16.msra.mxu0 %v1616
    %1967 = vmatprep.subr.bf16.mxu0 %v1625
    %1968 = vmatpush1.bf16.msra.mxu0 %v1624
    %1969 = vmatprep.subr.bf16.mxu0 %v1633
    %1970 = vmatpush1.bf16.msra.mxu0 %v1632
    %1971 = vmatprep.subr.bf16.mxu0 %v1641
    %1972 = vmatpush1.bf16.msra.mxu0 %v1640
    %1973 = vmatprep.subr.bf16.mxu0 %v1649
    %1974 = vmatpush1.bf16.msra.mxu0 %v1648
    %1975 = vmatprep.subr.bf16.mxu0 %v1657
    %1976 = vmatpush1.bf16.msra.mxu0 %v1656
    %1977 = vmatprep.subr.bf16.mxu0 %v1665
    %1978 = vmatpush1.bf16.msra.mxu0 %v1664
    %1979 = vmatprep.subr.bf16.mxu0 %v1673
    %1980 = vmatpush1.bf16.msra.mxu0 %v1672
    %1981 = vmatprep.subr.bf16.mxu0 %v1681
    %1982 = vmatpush1.bf16.msra.mxu0 %v1680
    %1983 = vmatprep.subr.bf16.mxu0 %v1689
    %1984 = vmatpush1.bf16.msra.mxu0 %v1688
    %1985 = vmatprep.subr.bf16.mxu0 %v1697
    %1986 = vmatpush1.bf16.msra.mxu0 %v1696
    %1987 = vmatprep.subr.bf16.mxu0 %v1705
    %1988 = vmatpush1.bf16.msra.mxu0 %v1704
    %1989 = vmatprep.mubr.bf16.mxu0 %v1023
    %1990 = vmatmul.mubr.bf16.gmra.mrb[0].mxu0 %v1022
    %v1991 = vpop.f32.mrb[0].mxu0
    %v1992 = vadd.f32 %v1181, %v1991
    %v1993 = vpop.f32.mrb[0].mxu0
    %v1994 = vadd.f32 %v1185, %v1993
    %v1995 = vpop.f32.mrb[0].mxu0
    %v1996 = vpop.f32.mrb[0].mxu0
    %1997 = vdwg.mxu0
    %v1998 = vmax.f32 %v1869, 0.0
    %v1999 = vmax.f32 %v1871, 0.0
    %v2000 = vmax.f32 %v1910, 0.0
    %v2001 = vmax.f32 %v1912, 0.0
    %v2002 = vmax.f32 %v1951, 0.0
    %v2003 = vmax.f32 %v1953, 0.0
    %v2004 = vmax.f32 %v1992, 0.0
    %v2005 = vmax.f32 %v1994, 0.0
    %2006 = vst [vmem:[#allocation8] sm:$0xff] %v1998
    %2007 = vst [vmem:[#allocation8 + $0x8] sm:$0xff] %v1999
    %2008 = vst [vmem:[#allocation8 + $0x10] sm:$0xff] %v2000
    %2009 = vst [vmem:[#allocation8 + $0x18] sm:$0xff] %v2001
    %2010 = vst [vmem:[#allocation8 + $0x20] sm:$0xff] %v2002
    %2011 = vst [vmem:[#allocation8 + $0x28] sm:$0xff] %v2003
    %2012 = vst [vmem:[#allocation8 + $0x30] sm:$0xff] %v2004
    %2013 = vst [vmem:[#allocation8 + $0x38] sm:$0xff] %v2005
    // Predicated region
    $region34: #{tpu_custom_call.1} parent=1 // pred_check
      _
    $region35: #{tpu_custom_call.1} parent=1 // pred_check_branch
      %2015 = sbr.rel (0) target = $region37
    $region36: #{tpu_custom_call.1} parent=1 // pred_region
      %s2017 = ssub.s32 1024, 1024
      %2018 = vsyncadd [#allocation4], %s2017
      %s2020 = sshll.u32 [#allocation8], 4
      %s2021 = int_to_ptr.vmem [resolvable:$true] %s2020
      %2023 = dma.vmem_to_hbm [thread:$0]  %s2021, 1024, %s5, [#allocation4]
    $region37: #{tpu_custom_call.1} parent=1 // pred_fallthru
      _
    // Predicated region
    $region38: #{tpu_custom_call.1} parent=1 // pred_check
      _
    $region39: #{tpu_custom_call.1} parent=1 // pred_check_branch
      %2025 = sbr.rel (0) target = $region41
    $region40: #{tpu_custom_call.1} parent=1 // pred_region
      %2026 = dma.done [#allocation4], 1024
    $region41: #{tpu_custom_call.1} parent=1 // pred_fallthru
      _
    %2027 = vsyncpa [#allocation3], 1
    %2028 = vsyncpa [#allocation6], 1
    %2029 = vsyncpa [#allocation4], 1

// kernel: tpu_custom_call.1
$region0: #{tpu_custom_call.1}
  #allocation0 [shape = 'u32[]', space=smem, size = 0x4, offset = 0x4, fixed_abs, tag = 'smem constant byte address 0x4 - core index']
  #allocation1 [shape = 'u32[144,128]{1,0:T(1,128)}', space=vmem, size = 0x12000, scoped, tag = 'internal scratch']
  %s0 = inlined_call_operand.hbm [shape: f32[8,1024], index: 0, kind: input, shape index: {}]
  %s1 = inlined_call_operand.hbm [shape: bf16[1024,256], index: 1, kind: input, shape index: {}]
  %s2 = inlined_call_operand.vmem [shape: f32[1,256], index: 2, kind: input, shape index: {}]
  %s3 = inlined_call_operand.hbm [shape: bf16[256,1024], index: 3, kind: input, shape index: {}]
  %s4 = inlined_call_operand.vmem [shape: f32[1,1024], index: 4, kind: input, shape index: {}]
  %s5 = inlined_call_operand.hbm [shape: f32[8,1024], index: 5, kind: output, shape index: {}]
  %s6 = sld [smem:[#allocation0]]
  $region42: #{tpu_custom_call.1} parent=0
    _
  %s8 = ssub.s32 1, %s6
  %s9 = scalar_select 0, %s8, %s6
  $region1: #{tpu_custom_call.1} parent=0
    #allocation2 [shape = 'u8[32768]{0}', space=vmem, size = 0x8000, scoped, tag = 'input window, operand 0, single buffered']
    #allocation3 [shape = 's32[1]{0}', space=sflag, size = 0x4, scoped, tag = 'scoped memory for tpu_custom_call.1']
    #allocation4 [shape = 's32[1]{0}', space=sflag, size = 0x4, scoped, tag = 'scoped memory for tpu_custom_call.1']
    #allocation5 [shape = 'u8[524288]{0}', space=vmem, size = 0x80000, scoped, tag = 'input window, operand 1, single buffered']
    #allocation6 [shape = 's32[1]{0}', space=sflag, size = 0x4, scoped, tag = 'scoped memory for tpu_custom_call.1']
    #allocation7 [shape = 'u8[524288]{0}', space=vmem, size = 0x80000, scoped, tag = 'input window, operand 3, single buffered']
    #allocation8 [shape = 'u8[32768]{0}', space=vmem, size = 0x8000, scoped, tag = 'output window, operand 0, single buffered']
    %10 = vsyncpa [#allocation3], 0
    %11 = vsyncpa [#allocation6], 0
    %12 = vsyncpa [#allocation4], 0
    // Predicated region
    $region2: #{tpu_custom_call.1} parent=1 // pred_check
      _
    $region3: #{tpu_custom_call.1} parent=1 // pred_check_branch
      %14 = sbr.rel (0) target = $region5
    $region4: #{tpu_custom_call.1} parent=1 // pred_region
      %s16 = ssub.s32 1024, 1024
      %17 = vsyncadd [#allocation3], %s16
      %s19 = sshll.u32 [#allocation2], 4
      %s20 = int_to_ptr.vmem [resolvable:$true] %s19
      %22 = dma.hbm_to_vmem [thread:$0]  %s0, 1024, %s20, [#allocation3]
    $region5: #{tpu_custom_call.1} parent=1 // pred_fallthru
      _
    // Predicated region
    $region6: #{tpu_custom_call.1} parent=1 // pred_check
      _
    $region7: #{tpu_custom_call.1} parent=1 // pred_check_branch
      %24 = sbr.rel (0) target = $region9
    $region8: #{tpu_custom_call.1} parent=1 // pred_region
      %s26 = ssub.s32 16384, 16384
      %27 = vsyncadd [#allocation6], %s26
      %s28 = sshll.u32 [#allocation5], 4
      %s29 = int_to_ptr.vmem [resolvable:$true] %s28
      %34 = dma.hbm_to_vmem [thread:$0]  %s1, 16384, %s29, [#allocation6], 128, 128, 8
    $region9: #{tpu_custom_call.1} parent=1 // pred_fallthru
      _
    // Predicated region
    $region10: #{tpu_custom_call.1} parent=1 // pred_check
      _
    $region11: #{tpu_custom_call.1} parent=1 // pred_check_branch
      %36 = sbr.rel (0) target = $region13
    $region12: #{tpu_custom_call.1} parent=1 // pred_region
      _
    $region13: #{tpu_custom_call.1} parent=1 // pred_fallthru
      _
    // Predicated region
    $region14: #{tpu_custom_call.1} parent=1 // pred_check
      _
    $region15: #{tpu_custom_call.1} parent=1 // pred_check_branch
      %38 = sbr.rel (0) target = $region17
    $region16: #{tpu_custom_call.1} parent=1 // pred_region
      %s40 = ssub.s32 16384, 16384
      %41 = vsyncadd [#allocation6], %s40
      %s42 = sshll.u32 [#allocation7], 4
      %s43 = int_to_ptr.vmem [resolvable:$true] %s42
      %48 = dma.hbm_to_vmem [thread:$0]  %s3, 16384, %s43, [#allocation6], 512, 512, 32
    $region17: #{tpu_custom_call.1} parent=1 // pred_fallthru
      _
    // Predicated region
    $region18: #{tpu_custom_call.1} parent=1 // pred_check
      _
    $region19: #{tpu_custom_call.1} parent=1 // pred_check_branch
      %50 = sbr.rel (0) target = $region21
    $region20: #{tpu_custom_call.1} parent=1 // pred_region
      _
    $region21: #{tpu_custom_call.1} parent=1 // pred_fallthru
      _
    // Predicated region
    $region22: #{tpu_custom_call.1} parent=1 // pred_check
      _
    $region23: #{tpu_custom_call.1} parent=1 // pred_check_branch
      %52 = sbr.rel (0) target = $region25
    $region24: #{tpu_custom_call.1} parent=1 // pred_region
      %53 = dma.done [#allocation3], 1024
    $region25: #{tpu_custom_call.1} parent=1 // pred_fallthru
      _
    // Predicated region
    $region26: #{tpu_custom_call.1} parent=1 // pred_check
      _
    $region27: #{tpu_custom_call.1} parent=1 // pred_check_branch
      %55 = sbr.rel (0) target = $region29
    $region28: #{tpu_custom_call.1} parent=1 // pred_region
      %56 = dma.done [#allocation6], 16384
    $region29: #{tpu_custom_call.1} parent=1 // pred_fallthru
      _
    // Predicated region
    $region30: #{tpu_custom_call.1} parent=1 // pred_check
      _
    $region31: #{tpu_custom_call.1} parent=1 // pred_check_branch
      %58 = sbr.rel (0) target = $region33
    $region32: #{tpu_custom_call.1} parent=1 // pred_region
      %59 = dma.done [#allocation6], 16384
    $region33: #{tpu_custom_call.1} parent=1 // pred_fallthru
      _
    %v60 = vld [vmem:[#allocation2] sm:$0xff]
    %v61 = vld [vmem:[#allocation2 + $0x8] sm:$0xff]
    %v62 = vld [vmem:[#allocation2 + $0x10] sm:$0xff]
    %v63 = vld [vmem:[#allocation2 + $0x18] sm:$0xff]
    %v64 = vld [vmem:[#allocation2 + $0x20] sm:$0xff]
    %v65 = vld [vmem:[#allocation2 + $0x28] sm:$0xff]
    %v66 = vld [vmem:[#allocation2 + $0x30] sm:$0xff]
    %v67 = vld [vmem:[#allocation2 + $0x38] sm:$0xff]
    %v68 = vpack.c.bf16 %v60, %v60
    %v69 = vpack.c.bf16 %v61, %v61
    %v70 = vpack.c.bf16 %v62, %v62
    %v71 = vpack.c.bf16 %v63, %v63
    %v72 = vpack.c.bf16 %v64, %v64
    %v73 = vpack.c.bf16 %v65, %v65
    %v74 = vpack.c.bf16 %v66, %v66
    %v75 = vpack.c.bf16 %v67, %v67
    %v76 = vld [vmem:[#allocation5] sm:$0xff]
    %v77 = vld [vmem:[#allocation5 + $0x8] sm:$0xff]
    %v78 = vld [vmem:[#allocation5 + $0x10] sm:$0xff]
    %v79 = vld [vmem:[#allocation5 + $0x18] sm:$0xff]
    %v80 = vld [vmem:[#allocation5 + $0x20] sm:$0xff]
    %v81 = vld [vmem:[#allocation5 + $0x28] sm:$0xff]
    %v82 = vld [vmem:[#allocation5 + $0x30] sm:$0xff]
    %v83 = vld [vmem:[#allocation5 + $0x38] sm:$0xff]
    %v84 = vld [vmem:[#allocation5 + $0x40] sm:$0xff]
    %v85 = vld [vmem:[#allocation5 + $0x48] sm:$0xff]
    %v86 = vld [vmem:[#allocation5 + $0x50] sm:$0xff]
    %v87 = vld [vmem:[#allocation5 + $0x58] sm:$0xff]
    %v88 = vld [vmem:[#allocation5 + $0x60] sm:$0xff]
    %v89 = vld [vmem:[#allocation5 + $0x68] sm:$0xff]
    %v90 = vld [vmem:[#allocation5 + $0x70] sm:$0xff]
    %v91 = vld [vmem:[#allocation5 + $0x78] sm:$0xff]
    %v92 = vld [vmem:[#allocation5 + $0x80] sm:$0xff]
    %v93 = vld [vmem:[#allocation5 + $0x88] sm:$0xff]
    %v94 = vld [vmem:[#allocation5 + $0x90] sm:$0xff]
    %v95 = vld [vmem:[#allocation5 + $0x98] sm:$0xff]
    %v96 = vld [vmem:[#allocation5 + $0xa0] sm:$0xff]
    %v97 = vld [vmem:[#allocation5 + $0xa8] sm:$0xff]
    %v98 = vld [vmem:[#allocation5 + $0xb0] sm:$0xff]
    %v99 = vld [vmem:[#allocation5 + $0xb8] sm:$0xff]
    %v100 = vld [vmem:[#allocation5 + $0xc0] sm:$0xff]
    %v101 = vld [vmem:[#allocation5 + $0xc8] sm:$0xff]
    %v102 = vld [vmem:[#allocation5 + $0xd0] sm:$0xff]
    %v103 = vld [vmem:[#allocation5 + $0xd8] sm:$0xff]
    %v104 = vld [vmem:[#allocation5 + $0xe0] sm:$0xff]
    %v105 = vld [vmem:[#allocation5 + $0xe8] sm:$0xff]
    %v106 = vld [vmem:[#allocation5 + $0xf0] sm:$0xff]
    %v107 = vld [vmem:[#allocation5 + $0xf8] sm:$0xff]
    %v108 = vld [vmem:[#allocation5 + $0x100] sm:$0xff]
    %v109 = vld [vmem:[#allocation5 + $0x108] sm:$0xff]
    %v110 = vld [vmem:[#allocation5 + $0x110] sm:$0xff]
    %v111 = vld [vmem:[#allocation5 + $0x118] sm:$0xff]
    %v112 = vld [vmem:[#allocation5 + $0x120] sm:$0xff]
    %v113 = vld [vmem:[#allocation5 + $0x128] sm:$0xff]
    %v114 = vld [vmem:[#allocation5 + $0x130] sm:$0xff]
    %v115 = vld [vmem:[#allocation5 + $0x138] sm:$0xff]
    %v116 = vld [vmem:[#allocation5 + $0x140] sm:$0xff]
    %v117 = vld [vmem:[#allocation5 + $0x148] sm:$0xff]
    %v118 = vld [vmem:[#allocation5 + $0x150] sm:$0xff]
    %v119 = vld [vmem:[#allocation5 + $0x158] sm:$0xff]
    %v120 = vld [vmem:[#allocation5 + $0x160] sm:$0xff]
    %v121 = vld [vmem:[#allocation5 + $0x168] sm:$0xff]
    %v122 = vld [vmem:[#allocation5 + $0x170] sm:$0xff]
    %v123 = vld [vmem:[#allocation5 + $0x178] sm:$0xff]
    %v124 = vld [vmem:[#allocation5 + $0x180] sm:$0xff]
    %v125 = vld [vmem:[#allocation5 + $0x188] sm:$0xff]
    %v126 = vld [vmem:[#allocation5 + $0x190] sm:$0xff]
    %v127 = vld [vmem:[#allocation5 + $0x198] sm:$0xff]
    %v128 = vld [vmem:[#allocation5 + $0x1a0] sm:$0xff]
    %v129 = vld [vmem:[#allocation5 + $0x1a8] sm:$0xff]
    %v130 = vld [vmem:[#allocation5 + $0x1b0] sm:$0xff]
    %v131 = vld [vmem:[#allocation5 + $0x1b8] sm:$0xff]
    %v132 = vld [vmem:[#allocation5 + $0x1c0] sm:$0xff]
    %v133 = vld [vmem:[#allocation5 + $0x1c8] sm:$0xff]
    %v134 = vld [vmem:[#allocation5 + $0x1d0] sm:$0xff]
    %v135 = vld [vmem:[#allocation5 + $0x1d8] sm:$0xff]
    %v136 = vld [vmem:[#allocation5 + $0x1e0] sm:$0xff]
    %v137 = vld [vmem:[#allocation5 + $0x1e8] sm:$0xff]
    %v138 = vld [vmem:[#allocation5 + $0x1f0] sm:$0xff]
    %v139 = vld [vmem:[#allocation5 + $0x1f8] sm:$0xff]
    %v140 = vld [vmem:[#allocation5 + $0x200] sm:$0xff]
    %v141 = vld [vmem:[#allocation5 + $0x208] sm:$0xff]
    %v142 = vld [vmem:[#allocation5 + $0x210] sm:$0xff]
    %v143 = vld [vmem:[#allocation5 + $0x218] sm:$0xff]
    %v144 = vld [vmem:[#allocation5 + $0x220] sm:$0xff]
    %v145 = vld [vmem:[#allocation5 + $0x228] sm:$0xff]
    %v146 = vld [vmem:[#allocation5 + $0x230] sm:$0xff]
    %v147 = vld [vmem:[#allocation5 + $0x238] sm:$0xff]
    %v148 = vld [vmem:[#allocation5 + $0x240] sm:$0xff]
    %v149 = vld [vmem:[#allocation5 + $0x248] sm:$0xff]
    %v150 = vld [vmem:[#allocation5 + $0x250] sm:$0xff]
    %v151 = vld [vmem:[#allocation5 + $0x258] sm:$0xff]
    %v152 = vld [vmem:[#allocation5 + $0x260] sm:$0xff]
    %v153 = vld [vmem:[#allocation5 + $0x268] sm:$0xff]
    %v154 = vld [vmem:[#allocation5 + $0x270] sm:$0xff]
    %v155 = vld [vmem:[#allocation5 + $0x278] sm:$0xff]
    %v156 = vld [vmem:[#allocation5 + $0x280] sm:$0xff]
    %v157 = vld [vmem:[#allocation5 + $0x288] sm:$0xff]
    %v158 = vld [vmem:[#allocation5 + $0x290] sm:$0xff]
    %v159 = vld [vmem:[#allocation5 + $0x298] sm:$0xff]
    %v160 = vld [vmem:[#allocation5 + $0x2a0] sm:$0xff]
    %v161 = vld [vmem:[#allocation5 + $0x2a8] sm:$0xff]
    %v162 = vld [vmem:[#allocation5 + $0x2b0] sm:$0xff]
    %v163 = vld [vmem:[#allocation5 + $0x2b8] sm:$0xff]
    %v164 = vld [vmem:[#allocation5 + $0x2c0] sm:$0xff]
    %v165 = vld [vmem:[#allocation5 + $0x2c8] sm:$0xff]
    %v166 = vld [vmem:[#allocation5 + $0x2d0] sm:$0xff]
    %v167 = vld [vmem:[#allocation5 + $0x2d8] sm:$0xff]
    %v168 = vld [vmem:[#allocation5 + $0x2e0] sm:$0xff]
    %v169 = vld [vmem:[#allocation5 + $0x2e8] sm:$0xff]
    %v170 = vld [vmem:[#allocation5 + $0x2f0] sm:$0xff]
    %v171 = vld [vmem:[#allocation5 + $0x2f8] sm:$0xff]
    %v172 = vld [vmem:[#allocation5 + $0x300] sm:$0xff]
    %v173 = vld [vmem:[#allocation5 + $0x308] sm:$0xff]
    %v174 = vld [vmem:[#allocation5 + $0x310] sm:$0xff]
    %v175 = vld [vmem:[#allocation5 + $0x318] sm:$0xff]
    %v176 = vld [vmem:[#allocation5 + $0x320] sm:$0xff]
    %v177 = vld [vmem:[#allocation5 + $0x328] sm:$0xff]
    %v178 = vld [vmem:[#allocation5 + $0x330] sm:$0xff]
    %v179 = vld [vmem:[#allocation5 + $0x338] sm:$0xff]
    %v180 = vld [vmem:[#allocation5 + $0x340] sm:$0xff]
    %v181 = vld [vmem:[#allocation5 + $0x348] sm:$0xff]
    %v182 = vld [vmem:[#allocation5 + $0x350] sm:$0xff]
    %v183 = vld [vmem:[#allocation5 + $0x358] sm:$0xff]
    %v184 = vld [vmem:[#allocation5 + $0x360] sm:$0xff]
    %v185 = vld [vmem:[#allocation5 + $0x368] sm:$0xff]
    %v186 = vld [vmem:[#allocation5 + $0x370] sm:$0xff]
    %v187 = vld [vmem:[#allocation5 + $0x378] sm:$0xff]
    %v188 = vld [vmem:[#allocation5 + $0x380] sm:$0xff]
    %v189 = vld [vmem:[#allocation5 + $0x388] sm:$0xff]
    %v190 = vld [vmem:[#allocation5 + $0x390] sm:$0xff]
    %v191 = vld [vmem:[#allocation5 + $0x398] sm:$0xff]
    %v192 = vld [vmem:[#allocation5 + $0x3a0] sm:$0xff]
    %v193 = vld [vmem:[#allocation5 + $0x3a8] sm:$0xff]
    %v194 = vld [vmem:[#allocation5 + $0x3b0] sm:$0xff]
    %v195 = vld [vmem:[#allocation5 + $0x3b8] sm:$0xff]
    %v196 = vld [vmem:[#allocation5 + $0x3c0] sm:$0xff]
    %v197 = vld [vmem:[#allocation5 + $0x3c8] sm:$0xff]
    %v198 = vld [vmem:[#allocation5 + $0x3d0] sm:$0xff]
    %v199 = vld [vmem:[#allocation5 + $0x3d8] sm:$0xff]
    %v200 = vld [vmem:[#allocation5 + $0x3e0] sm:$0xff]
    %v201 = vld [vmem:[#allocation5 + $0x3e8] sm:$0xff]
    %v202 = vld [vmem:[#allocation5 + $0x3f0] sm:$0xff]
    %v203 = vld [vmem:[#allocation5 + $0x3f8] sm:$0xff]
    %v204 = vld [vmem:[%s2] sm:$0x3]
    %v206 = vlaneseq
    %v207 = vshrl.u32 %v206, 7
    %v208 = vsub.s32 0, %v207
    %v209 = vrot.slane %v204, %v208
    %v210 = vlaneseq
    %v211 = vshrl.u32 %v210, 7
    %v212 = vsub.s32 1, %v211
    %v213 = vrot.slane %v204, %v212
    %v344 = vunpack.c.l.b16 %v76
    %v345 = vunpack.c.h.b16 %v76
    %v346 = vunpack.c.l.b16 %v77
    %v347 = vunpack.c.h.b16 %v77
    %v348 = vunpack.c.l.b16 %v78
    %v349 = vunpack.c.h.b16 %v78
    %v350 = vunpack.c.l.b16 %v79
    %v351 = vunpack.c.h.b16 %v79
    %v352 = vunpack.c.l.b16 %v80
    %v353 = vunpack.c.h.b16 %v80
    %v354 = vunpack.c.l.b16 %v81
    %v355 = vunpack.c.h.b16 %v81
    %v356 = vunpack.c.l.b16 %v82
    %v357 = vunpack.c.h.b16 %v82
    %v358 = vunpack.c.l.b16 %v83
    %v359 = vunpack.c.h.b16 %v83
    %v360 = vunpack.c.l.b16 %v84
    %v361 = vunpack.c.h.b16 %v84
    %v362 = vunpack.c.l.b16 %v85
    %v363 = vunpack.c.h.b16 %v85
    %v364 = vunpack.c.l.b16 %v86
    %v365 = vunpack.c.h.b16 %v86
    %v366 = vunpack.c.l.b16 %v87
    %v367 = vunpack.c.h.b16 %v87
    %v368 = vunpack.c.l.b16 %v88
    %v369 = vunpack.c.h.b16 %v88
    %v370 = vunpack.c.l.b16 %v89
    %v371 = vunpack.c.h.b16 %v89
    %v372 = vunpack.c.l.b16 %v90
    %v373 = vunpack.c.h.b16 %v90
    %v374 = vunpack.c.l.b16 %v91
    %v375 = vunpack.c.h.b16 %v91
    %v376 = vunpack.c.l.b16 %v92
    %v377 = vunpack.c.h.b16 %v92
    %v378 = vunpack.c.l.b16 %v93
    %v379 = vunpack.c.h.b16 %v93
    %v380 = vunpack.c.l.b16 %v94
    %v381 = vunpack.c.h.b16 %v94
    %v382 = vunpack.c.l.b16 %v95
    %v383 = vunpack.c.h.b16 %v95
    %v384 = vunpack.c.l.b16 %v96
    %v385 = vunpack.c.h.b16 %v96
    %v386 = vunpack.c.l.b16 %v97
    %v387 = vunpack.c.h.b16 %v97
    %v388 = vunpack.c.l.b16 %v98
    %v389 = vunpack.c.h.b16 %v98
    %v390 = vunpack.c.l.b16 %v99
    %v391 = vunpack.c.h.b16 %v99
    %v392 = vunpack.c.l.b16 %v100
    %v393 = vunpack.c.h.b16 %v100
    %v394 = vunpack.c.l.b16 %v101
    %v395 = vunpack.c.h.b16 %v101
    %v396 = vunpack.c.l.b16 %v102
    %v397 = vunpack.c.h.b16 %v102
    %v398 = vunpack.c.l.b16 %v103
    %v399 = vunpack.c.h.b16 %v103
    %v400 = vunpack.c.l.b16 %v104
    %v401 = vunpack.c.h.b16 %v104
    %v402 = vunpack.c.l.b16 %v105
    %v403 = vunpack.c.h.b16 %v105
    %v404 = vunpack.c.l.b16 %v106
    %v405 = vunpack.c.h.b16 %v106
    %v406 = vunpack.c.l.b16 %v107
    %v407 = vunpack.c.h.b16 %v107
    %v408 = vunpack.c.l.b16 %v108
    %v409 = vunpack.c.h.b16 %v108
    %v410 = vunpack.c.l.b16 %v109
    %v411 = vunpack.c.h.b16 %v109
    %v412 = vunpack.c.l.b16 %v110
    %v413 = vunpack.c.h.b16 %v110
    %v414 = vunpack.c.l.b16 %v111
    %v415 = vunpack.c.h.b16 %v111
    %v416 = vunpack.c.l.b16 %v112
    %v417 = vunpack.c.h.b16 %v112
    %v418 = vunpack.c.l.b16 %v113
    %v419 = vunpack.c.h.b16 %v113
    %v420 = vunpack.c.l.b16 %v114
    %v421 = vunpack.c.h.b16 %v114
    %v422 = vunpack.c.l.b16 %v115
    %v423 = vunpack.c.h.b16 %v115
    %v424 = vunpack.c.l.b16 %v116
    %v425 = vunpack.c.h.b16 %v116
    %v426 = vunpack.c.l.b16 %v117
    %v427 = vunpack.c.h.b16 %v117
    %v428 = vunpack.c.l.b16 %v118
    %v429 = vunpack.c.h.b16 %v118
    %v430 = vunpack.c.l.b16 %v119
    %v431 = vunpack.c.h.b16 %v119
    %v432 = vunpack.c.l.b16 %v120
    %v433 = vunpack.c.h.b16 %v120
    %v434 = vunpack.c.l.b16 %v121
    %v435 = vunpack.c.h.b16 %v121
    %v436 = vunpack.c.l.b16 %v122
    %v437 = vunpack.c.h.b16 %v122
    %v438 = vunpack.c.l.b16 %v123
    %v439 = vunpack.c.h.b16 %v123
    %v440 = vunpack.c.l.b16 %v124
    %v441 = vunpack.c.h.b16 %v124
    %v442 = vunpack.c.l.b16 %v125
    %v443 = vunpack.c.h.b16 %v125
    %v444 = vunpack.c.l.b16 %v126
    %v445 = vunpack.c.h.b16 %v126
    %v446 = vunpack.c.l.b16 %v127
    %v447 = vunpack.c.h.b16 %v127
    %v448 = vunpack.c.l.b16 %v128
    %v449 = vunpack.c.h.b16 %v128
    %v450 = vunpack.c.l.b16 %v129
    %v451 = vunpack.c.h.b16 %v129
    %v452 = vunpack.c.l.b16 %v130
    %v453 = vunpack.c.h.b16 %v130
    %v454 = vunpack.c.l.b16 %v131
    %v455 = vunpack.c.h.b16 %v131
    %v456 = vunpack.c.l.b16 %v132
    %v457 = vunpack.c.h.b16 %v132
    %v458 = vunpack.c.l.b16 %v133
    %v459 = vunpack.c.h.b16 %v133
    %v460 = vunpack.c.l.b16 %v134
    %v461 = vunpack.c.h.b16 %v134
    %v462 = vunpack.c.l.b16 %v135
    %v463 = vunpack.c.h.b16 %v135
    %v464 = vunpack.c.l.b16 %v136
    %v465 = vunpack.c.h.b16 %v136
    %v466 = vunpack.c.l.b16 %v137
    %v467 = vunpack.c.h.b16 %v137
    %v468 = vunpack.c.l.b16 %v138
    %v469 = vunpack.c.h.b16 %v138
    %v470 = vunpack.c.l.b16 %v139
    %v471 = vunpack.c.h.b16 %v139
    %v472 = vunpack.c.l.b16 %v140
    %v473 = vunpack.c.h.b16 %v140
    %v474 = vunpack.c.l.b16 %v141
    %v475 = vunpack.c.h.b16 %v141
    %v476 = vunpack.c.l.b16 %v142
    %v477 = vunpack.c.h.b16 %v142
    %v478 = vunpack.c.l.b16 %v143
    %v479 = vunpack.c.h.b16 %v143
    %v480 = vunpack.c.l.b16 %v144
    %v481 = vunpack.c.h.b16 %v144
    %v482 = vunpack.c.l.b16 %v145
    %v483 = vunpack.c.h.b16 %v145
    %v484 = vunpack.c.l.b16 %v146
    %v485 = vunpack.c.h.b16 %v146
    %v486 = vunpack.c.l.b16 %v147
    %v487 = vunpack.c.h.b16 %v147
    %v488 = vunpack.c.l.b16 %v148
    %v489 = vunpack.c.h.b16 %v148
    %v490 = vunpack.c.l.b16 %v149
    %v491 = vunpack.c.h.b16 %v149
    %v492 = vunpack.c.l.b16 %v150
    %v493 = vunpack.c.h.b16 %v150
    %v494 = vunpack.c.l.b16 %v151
    %v495 = vunpack.c.h.b16 %v151
    %v496 = vunpack.c.l.b16 %v152
    %v497 = vunpack.c.h.b16 %v152
    %v498 = vunpack.c.l.b16 %v153
    %v499 = vunpack.c.h.b16 %v153
    %v500 = vunpack.c.l.b16 %v154
    %v501 = vunpack.c.h.b16 %v154
    %v502 = vunpack.c.l.b16 %v155
    %v503 = vunpack.c.h.b16 %v155
    %v504 = vunpack.c.l.b16 %v156
    %v505 = vunpack.c.h.b16 %v156
    %v506 = vunpack.c.l.b16 %v157
    %v507 = vunpack.c.h.b16 %v157
    %v508 = vunpack.c.l.b16 %v158
    %v509 = vunpack.c.h.b16 %v158
    %v510 = vunpack.c.l.b16 %v159
    %v511 = vunpack.c.h.b16 %v159
    %v512 = vunpack.c.l.b16 %v160
    %v513 = vunpack.c.h.b16 %v160
    %v514 = vunpack.c.l.b16 %v161
    %v515 = vunpack.c.h.b16 %v161
    %v516 = vunpack.c.l.b16 %v162
    %v517 = vunpack.c.h.b16 %v162
    %v518 = vunpack.c.l.b16 %v163
    %v519 = vunpack.c.h.b16 %v163
    %v520 = vunpack.c.l.b16 %v164
    %v521 = vunpack.c.h.b16 %v164
    %v522 = vunpack.c.l.b16 %v165
    %v523 = vunpack.c.h.b16 %v165
    %v524 = vunpack.c.l.b16 %v166
    %v525 = vunpack.c.h.b16 %v166
    %v526 = vunpack.c.l.b16 %v167
    %v527 = vunpack.c.h.b16 %v167
    %v528 = vunpack.c.l.b16 %v168
    %v529 = vunpack.c.h.b16 %v168
    %v530 = vunpack.c.l.b16 %v169
    %v531 = vunpack.c.h.b16 %v169
    %v532 = vunpack.c.l.b16 %v170
    %v533 = vunpack.c.h.b16 %v170
    %v534 = vunpack.c.l.b16 %v171
    %v535 = vunpack.c.h.b16 %v171
    %v536 = vunpack.c.l.b16 %v172
    %v537 = vunpack.c.h.b16 %v172
    %v538 = vunpack.c.l.b16 %v173
    %v539 = vunpack.c.h.b16 %v173
    %v540 = vunpack.c.l.b16 %v174
    %v541 = vunpack.c.h.b16 %v174
    %v542 = vunpack.c.l.b16 %v175
    %v543 = vunpack.c.h.b16 %v175
    %v544 = vunpack.c.l.b16 %v176
    %v545 = vunpack.c.h.b16 %v176
    %v546 = vunpack.c.l.b16 %v177
    %v547 = vunpack.c.h.b16 %v177
    %v548 = vunpack.c.l.b16 %v178
    %v549 = vunpack.c.h.b16 %v178
    %v550 = vunpack.c.l.b16 %v179
    %v551 = vunpack.c.h.b16 %v179
    %v552 = vunpack.c.l.b16 %v180
    %v553 = vunpack.c.h.b16 %v180
    %v554 = vunpack.c.l.b16 %v181
    %v555 = vunpack.c.h.b16 %v181
    %v556 = vunpack.c.l.b16 %v182
    %v557 = vunpack.c.h.b16 %v182
    %v558 = vunpack.c.l.b16 %v183
    %v559 = vunpack.c.h.b16 %v183
    %v560 = vunpack.c.l.b16 %v184
    %v561 = vunpack.c.h.b16 %v184
    %v562 = vunpack.c.l.b16 %v185
    %v563 = vunpack.c.h.b16 %v185
    %v564 = vunpack.c.l.b16 %v186
    %v565 = vunpack.c.h.b16 %v186
    %v566 = vunpack.c.l.b16 %v187
    %v567 = vunpack.c.h.b16 %v187
    %v568 = vunpack.c.l.b16 %v188
    %v569 = vunpack.c.h.b16 %v188
    %v570 = vunpack.c.l.b16 %v189
    %v571 = vunpack.c.h.b16 %v189
    %v572 = vunpack.c.l.b16 %v190
    %v573 = vunpack.c.h.b16 %v190
    %v574 = vunpack.c.l.b16 %v191
    %v575 = vunpack.c.h.b16 %v191
    %v576 = vunpack.c.l.b16 %v192
    %v577 = vunpack.c.h.b16 %v192
    %v578 = vunpack.c.l.b16 %v193
    %v579 = vunpack.c.h.b16 %v193
    %v580 = vunpack.c.l.b16 %v194
    %v581 = vunpack.c.h.b16 %v194
    %v582 = vunpack.c.l.b16 %v195
    %v583 = vunpack.c.h.b16 %v195
    %v584 = vunpack.c.l.b16 %v196
    %v585 = vunpack.c.h.b16 %v196
    %v586 = vunpack.c.l.b16 %v197
    %v587 = vunpack.c.h.b16 %v197
    %v588 = vunpack.c.l.b16 %v198
    %v589 = vunpack.c.h.b16 %v198
    %v590 = vunpack.c.l.b16 %v199
    %v591 = vunpack.c.h.b16 %v199
    %v592 = vunpack.c.l.b16 %v200
    %v593 = vunpack.c.h.b16 %v200
    %v594 = vunpack.c.l.b16 %v201
    %v595 = vunpack.c.h.b16 %v201
    %v596 = vunpack.c.l.b16 %v202
    %v597 = vunpack.c.h.b16 %v202
    %v598 = vunpack.c.l.b16 %v203
    %v599 = vunpack.c.h.b16 %v203
    %v600 = vpack.c.b16 %v346, %v344
    %v601 = vpack.c.b16 %v347, %v345
    %v602 = vpack.c.b16 %v350, %v348
    %v603 = vpack.c.b16 %v351, %v349
    %v604 = vpack.c.b16 %v354, %v352
    %v605 = vpack.c.b16 %v355, %v353
    %v606 = vpack.c.b16 %v358, %v356
    %v607 = vpack.c.b16 %v359, %v357
    %v608 = vpack.c.b16 %v362, %v360
    %v609 = vpack.c.b16 %v363, %v361
    %v610 = vpack.c.b16 %v366, %v364
    %v611 = vpack.c.b16 %v367, %v365
    %v612 = vpack.c.b16 %v370, %v368
    %v613 = vpack.c.b16 %v371, %v369
    %v614 = vpack.c.b16 %v374, %v372
    %v615 = vpack.c.b16 %v375, %v373
    %v616 = vpack.c.b16 %v378, %v376
    %v617 = vpack.c.b16 %v379, %v377
    %v618 = vpack.c.b16 %v382, %v380
    %v619 = vpack.c.b16 %v383, %v381
    %v620 = vpack.c.b16 %v386, %v384
    %v621 = vpack.c.b16 %v387, %v385
    %v622 = vpack.c.b16 %v390, %v388
    %v623 = vpack.c.b16 %v391, %v389
    %v624 = vpack.c.b16 %v394, %v392
    %v625 = vpack.c.b16 %v395, %v393
    %v626 = vpack.c.b16 %v398, %v396
    %v627 = vpack.c.b16 %v399, %v397
    %v628 = vpack.c.b16 %v402, %v400
    %v629 = vpack.c.b16 %v403, %v401
    %v630 = vpack.c.b16 %v406, %v404
    %v631 = vpack.c.b16 %v407, %v405
    %v632 = vpack.c.b16 %v410, %v408
    %v633 = vpack.c.b16 %v411, %v409
    %v634 = vpack.c.b16 %v414, %v412
    %v635 = vpack.c.b16 %v415, %v413
    %v636 = vpack.c.b16 %v418, %v416
    %v637 = vpack.c.b16 %v419, %v417
    %v638 = vpack.c.b16 %v422, %v420
    %v639 = vpack.c.b16 %v423, %v421
    %v640 = vpack.c.b16 %v426, %v424
    %v641 = vpack.c.b16 %v427, %v425
    %v642 = vpack.c.b16 %v430, %v428
    %v643 = vpack.c.b16 %v431, %v429
    %v644 = vpack.c.b16 %v434, %v432
    %v645 = vpack.c.b16 %v435, %v433
    %v646 = vpack.c.b16 %v438, %v436
    %v647 = vpack.c.b16 %v439, %v437
    %v648 = vpack.c.b16 %v442, %v440
    %v649 = vpack.c.b16 %v443, %v441
    %v650 = vpack.c.b16 %v446, %v444
    %v651 = vpack.c.b16 %v447, %v445
    %v652 = vpack.c.b16 %v450, %v448
    %v653 = vpack.c.b16 %v451, %v449
    %v654 = vpack.c.b16 %v454, %v452
    %v655 = vpack.c.b16 %v455, %v453
    %v656 = vpack.c.b16 %v458, %v456
    %v657 = vpack.c.b16 %v459, %v457
    %v658 = vpack.c.b16 %v462, %v460
    %v659 = vpack.c.b16 %v463, %v461
    %v660 = vpack.c.b16 %v466, %v464
    %v661 = vpack.c.b16 %v467, %v465
    %v662 = vpack.c.b16 %v470, %v468
    %v663 = vpack.c.b16 %v471, %v469
    %v664 = vpack.c.b16 %v474, %v472
    %v665 = vpack.c.b16 %v475, %v473
    %v666 = vpack.c.b16 %v478, %v476
    %v667 = vpack.c.b16 %v479, %v477
    %v668 = vpack.c.b16 %v482, %v480
    %v669 = vpack.c.b16 %v483, %v481
    %v670 = vpack.c.b16 %v486, %v484
    %v671 = vpack.c.b16 %v487, %v485
    %v672 = vpack.c.b16 %v490, %v488
    %v673 = vpack.c.b16 %v491, %v489
    %v674 = vpack.c.b16 %v494, %v492
    %v675 = vpack.c.b16 %v495, %v493
    %v676 = vpack.c.b16 %v498, %v496
    %v677 = vpack.c.b16 %v499, %v497
    %v678 = vpack.c.b16 %v502, %v500
    %v679 = vpack.c.b16 %v503, %v501
    %v680 = vpack.c.b16 %v506, %v504
    %v681 = vpack.c.b16 %v507, %v505
    %v682 = vpack.c.b16 %v510, %v508
    %v683 = vpack.c.b16 %v511, %v509
    %v684 = vpack.c.b16 %v514, %v512
    %v685 = vpack.c.b16 %v515, %v513
    %v686 = vpack.c.b16 %v518, %v516
    %v687 = vpack.c.b16 %v519, %v517
    %v688 = vpack.c.b16 %v522, %v520
    %v689 = vpack.c.b16 %v523, %v521
    %v690 = vpack.c.b16 %v526, %v524
    %v691 = vpack.c.b16 %v527, %v525
    %v692 = vpack.c.b16 %v530, %v528
    %v693 = vpack.c.b16 %v531, %v529
    %v694 = vpack.c.b16 %v534, %v532
    %v695 = vpack.c.b16 %v535, %v533
    %v696 = vpack.c.b16 %v538, %v536
    %v697 = vpack.c.b16 %v539, %v537
    %v698 = vpack.c.b16 %v542, %v540
    %v699 = vpack.c.b16 %v543, %v541
    %v700 = vpack.c.b16 %v546, %v544
    %v701 = vpack.c.b16 %v547, %v545
    %v702 = vpack.c.b16 %v550, %v548
    %v703 = vpack.c.b16 %v551, %v549
    %v704 = vpack.c.b16 %v554, %v552
    %v705 = vpack.c.b16 %v555, %v553
    %v706 = vpack.c.b16 %v558, %v556
    %v707 = vpack.c.b16 %v559, %v557
    %v708 = vpack.c.b16 %v562, %v560
    %v709 = vpack.c.b16 %v563, %v561
    %v710 = vpack.c.b16 %v566, %v564
    %v711 = vpack.c.b16 %v567, %v565
    %v712 = vpack.c.b16 %v570, %v568
    %v713 = vpack.c.b16 %v571, %v569
    %v714 = vpack.c.b16 %v574, %v572
    %v715 = vpack.c.b16 %v575, %v573
    %v716 = vpack.c.b16 %v578, %v576
    %v717 = vpack.c.b16 %v579, %v577
    %v718 = vpack.c.b16 %v582, %v580
    %v719 = vpack.c.b16 %v583, %v581
    %v720 = vpack.c.b16 %v586, %v584
    %v721 = vpack.c.b16 %v587, %v585
    %v722 = vpack.c.b16 %v590, %v588
    %v723 = vpack.c.b16 %v591, %v589
    %v724 = vpack.c.b16 %v594, %v592
    %v725 = vpack.c.b16 %v595, %v593
    %v726 = vpack.c.b16 %v598, %v596
    %v727 = vpack.c.b16 %v599, %v597
    %856 = vmatprep.subr.bf16.mxu0 %v601
    %857 = vmatpush1.bf16.msra.mxu0 %v600
    %858 = vmatprep.subr.bf16.mxu0 %v603
    %859 = vmatpush1.bf16.msra.mxu0 %v602
    %860 = vmatprep.subr.bf16.mxu0 %v605
    %861 = vmatpush1.bf16.msra.mxu0 %v604
    %862 = vmatprep.subr.bf16.mxu0 %v607
    %863 = vmatpush1.bf16.msra.mxu0 %v606
    %864 = vmatprep.subr.bf16.mxu0 %v609
    %865 = vmatpush1.bf16.msra.mxu0 %v608
    %866 = vmatprep.subr.bf16.mxu0 %v611
    %867 = vmatpush1.bf16.msra.mxu0 %v610
    %868 = vmatprep.subr.bf16.mxu0 %v613
    %869 = vmatpush1.bf16.msra.mxu0 %v612
    %870 = vmatprep.subr.bf16.mxu0 %v615
    %871 = vmatpush1.bf16.msra.mxu0 %v614
    %872 = vmatprep.subr.bf16.mxu0 %v617
    %873 = vmatpush1.bf16.msra.mxu0 %v616
    %874 = vmatprep.subr.bf16.mxu0 %v619
    %875 = vmatpush1.bf16.msra.mxu0 %v618
    %876 = vmatprep.subr.bf16.mxu0 %v621
    %877 = vmatpush1.bf16.msra.mxu0 %v620
    %878 = vmatprep.subr.bf16.mxu0 %v623
    %879 = vmatpush1.bf16.msra.mxu0 %v622
    %880 = vmatprep.subr.bf16.mxu0 %v625
    %881 = vmatpush1.bf16.msra.mxu0 %v624
    %882 = vmatprep.subr.bf16.mxu0 %v627
    %883 = vmatpush1.bf16.msra.mxu0 %v626
    %884 = vmatprep.subr.bf16.mxu0 %v629
    %885 = vmatpush1.bf16.msra.mxu0 %v628
    %886 = vmatprep.subr.bf16.mxu0 %v631
    %887 = vmatpush1.bf16.msra.mxu0 %v630
    %888 = vmatprep.mubr.bf16.mxu0 %v69
    %889 = vmatmul.mubr.bf16.gmra.mrb[0].mxu0 %v68
    %v890 = vpop.f32.mrb[0].mxu0
    %v891 = vadd.f32 %v209, %v890
    %v892 = vpop.f32.mrb[0].mxu0
    %v893 = vadd.f32 %v213, %v892
    %v894 = vpop.f32.mrb[0].mxu0
    %v895 = vpop.f32.mrb[0].mxu0
    %896 = vdwg.mxu0
    %897 = vmatprep.subr.bf16.mxu0 %v633
    %898 = vmatpush1.bf16.msra.mxu0 %v632
    %899 = vmatprep.subr.bf16.mxu0 %v635
    %900 = vmatpush1.bf16.msra.mxu0 %v634
    %901 = vmatprep.subr.bf16.mxu0 %v637
    %902 = vmatpush1.bf16.msra.mxu0 %v636
    %903 = vmatprep.subr.bf16.mxu0 %v639
    %904 = vmatpush1.bf16.msra.mxu0 %v638
    %905 = vmatprep.subr.bf16.mxu0 %v641
    %906 = vmatpush1.bf16.msra.mxu0 %v640
    %907 = vmatprep.subr.bf16.mxu0 %v643
    %908 = vmatpush1.bf16.msra.mxu0 %v642
    %909 = vmatprep.subr.bf16.mxu0 %v645
    %910 = vmatpush1.bf16.msra.mxu0 %v644
    %911 = vmatprep.subr.bf16.mxu0 %v647
    %912 = vmatpush1.bf16.msra.mxu0 %v646
    %913 = vmatprep.subr.bf16.mxu0 %v649
    %914 = vmatpush1.bf16.msra.mxu0 %v648
    %915 = vmatprep.subr.bf16.mxu0 %v651
    %916 = vmatpush1.bf16.msra.mxu0 %v650
    %917 = vmatprep.subr.bf16.mxu0 %v653
    %918 = vmatpush1.bf16.msra.mxu0 %v652
    %919 = vmatprep.subr.bf16.mxu0 %v655
    %920 = vmatpush1.bf16.msra.mxu0 %v654
    %921 = vmatprep.subr.bf16.mxu0 %v657
    %922 = vmatpush1.bf16.msra.mxu0 %v656
    %923 = vmatprep.subr.bf16.mxu0 %v659
    %924 = vmatpush1.bf16.msra.mxu0 %v658
    %925 = vmatprep.subr.bf16.mxu0 %v661
    %926 = vmatpush1.bf16.msra.mxu0 %v660
    %927 = vmatprep.subr.bf16.mxu0 %v663
    %928 = vmatpush1.bf16.msra.mxu0 %v662
    %929 = vmatprep.mubr.bf16.mxu0 %v71
    %930 = vmatmul.mubr.bf16.gmra.mrb[0].mxu0 %v70
    %v931 = vpop.f32.mrb[0].mxu0
    %v932 = vadd.f32 %v891, %v931
    %v933 = vpop.f32.mrb[0].mxu0
    %v934 = vadd.f32 %v893, %v933
    %v935 = vpop.f32.mrb[0].mxu0
    %v936 = vpop.f32.mrb[0].mxu0
    %937 = vdwg.mxu0
    %938 = vmatprep.subr.bf16.mxu0 %v665
    %939 = vmatpush1.bf16.msra.mxu0 %v664
    %940 = vmatprep.subr.bf16.mxu0 %v667
    %941 = vmatpush1.bf16.msra.mxu0 %v666
    %942 = vmatprep.subr.bf16.mxu0 %v669
    %943 = vmatpush1.bf16.msra.mxu0 %v668
    %944 = vmatprep.subr.bf16.mxu0 %v671
    %945 = vmatpush1.bf16.msra.mxu0 %v670
    %946 = vmatprep.subr.bf16.mxu0 %v673
    %947 = vmatpush1.bf16.msra.mxu0 %v672
    %948 = vmatprep.subr.bf16.mxu0 %v675
    %949 = vmatpush1.bf16.msra.mxu0 %v674
    %950 = vmatprep.subr.bf16.mxu0 %v677
    %951 = vmatpush1.bf16.msra.mxu0 %v676
    %952 = vmatprep.subr.bf16.mxu0 %v679
    %953 = vmatpush1.bf16.msra.mxu0 %v678
    %954 = vmatprep.subr.bf16.mxu0 %v681
    %955 = vmatpush1.bf16.msra.mxu0 %v680
    %956 = vmatprep.subr.bf16.mxu0 %v683
    %957 = vmatpush1.bf16.msra.mxu0 %v682
    %958 = vmatprep.subr.bf16.mxu0 %v685
    %959 = vmatpush1.bf16.msra.mxu0 %v684
    %960 = vmatprep.subr.bf16.mxu0 %v687
    %961 = vmatpush1.bf16.msra.mxu0 %v686
    %962 = vmatprep.subr.bf16.mxu0 %v689
    %963 = vmatpush1.bf16.msra.mxu0 %v688
    %964 = vmatprep.subr.bf16.mxu0 %v691
    %965 = vmatpush1.bf16.msra.mxu0 %v690
    %966 = vmatprep.subr.bf16.mxu0 %v693
    %967 = vmatpush1.bf16.msra.mxu0 %v692
    %968 = vmatprep.subr.bf16.mxu0 %v695
    %969 = vmatpush1.bf16.msra.mxu0 %v694
    %970 = vmatprep.mubr.bf16.mxu0 %v73
    %971 = vmatmul.mubr.bf16.gmra.mrb[0].mxu0 %v72
    %v972 = vpop.f32.mrb[0].mxu0
    %v973 = vadd.f32 %v932, %v972
    %v974 = vpop.f32.mrb[0].mxu0
    %v975 = vadd.f32 %v934, %v974
    %v976 = vpop.f32.mrb[0].mxu0
    %v977 = vpop.f32.mrb[0].mxu0
    %978 = vdwg.mxu0
    %979 = vmatprep.subr.bf16.mxu0 %v697
    %980 = vmatpush1.bf16.msra.mxu0 %v696
    %981 = vmatprep.subr.bf16.mxu0 %v699
    %982 = vmatpush1.bf16.msra.mxu0 %v698
    %983 = vmatprep.subr.bf16.mxu0 %v701
    %984 = vmatpush1.bf16.msra.mxu0 %v700
    %985 = vmatprep.subr.bf16.mxu0 %v703
    %986 = vmatpush1.bf16.msra.mxu0 %v702
    %987 = vmatprep.subr.bf16.mxu0 %v705
    %988 = vmatpush1.bf16.msra.mxu0 %v704
    %989 = vmatprep.subr.bf16.mxu0 %v707
    %990 = vmatpush1.bf16.msra.mxu0 %v706
    %991 = vmatprep.subr.bf16.mxu0 %v709
    %992 = vmatpush1.bf16.msra.mxu0 %v708
    %993 = vmatprep.subr.bf16.mxu0 %v711
    %994 = vmatpush1.bf16.msra.mxu0 %v710
    %995 = vmatprep.subr.bf16.mxu0 %v713
    %996 = vmatpush1.bf16.msra.mxu0 %v712
    %997 = vmatprep.subr.bf16.mxu0 %v715
    %998 = vmatpush1.bf16.msra.mxu0 %v714
    %999 = vmatprep.subr.bf16.mxu0 %v717
    %1000 = vmatpush1.bf16.msra.mxu0 %v716
    %1001 = vmatprep.subr.bf16.mxu0 %v719
    %1002 = vmatpush1.bf16.msra.mxu0 %v718
    %1003 = vmatprep.subr.bf16.mxu0 %v721
    %1004 = vmatpush1.bf16.msra.mxu0 %v720
    %1005 = vmatprep.subr.bf16.mxu0 %v723
    %1006 = vmatpush1.bf16.msra.mxu0 %v722
    %1007 = vmatprep.subr.bf16.mxu0 %v725
    %1008 = vmatpush1.bf16.msra.mxu0 %v724
    %1009 = vmatprep.subr.bf16.mxu0 %v727
    %1010 = vmatpush1.bf16.msra.mxu0 %v726
    %1011 = vmatprep.mubr.bf16.mxu0 %v75
    %1012 = vmatmul.mubr.bf16.gmra.mrb[0].mxu0 %v74
    %v1013 = vpop.f32.mrb[0].mxu0
    %v1014 = vadd.f32 %v973, %v1013
    %v1015 = vpop.f32.mrb[0].mxu0
    %v1016 = vadd.f32 %v975, %v1015
    %v1017 = vpop.f32.mrb[0].mxu0
    %v1018 = vpop.f32.mrb[0].mxu0
    %1019 = vdwg.mxu0
    %v1020 = vmax.f32 %v1014, 0.0
    %v1021 = vmax.f32 %v1016, 0.0
    %v1022 = vpack.c.bf16 %v1020, %v1020
    %v1023 = vpack.c.bf16 %v1021, %v1021
    %v1024 = vld [vmem:[#allocation7] sm:$0xff]
    %v1025 = vld [vmem:[#allocation7 + $0x8] sm:$0xff]
    %v1026 = vld [vmem:[#allocation7 + $0x10] sm:$0xff]
    %v1027 = vld [vmem:[#allocation7 + $0x18] sm:$0xff]
    %v1028 = vld [vmem:[#allocation7 + $0x20] sm:$0xff]
    %v1029 = vld [vmem:[#allocation7 + $0x28] sm:$0xff]
    %v1030 = vld [vmem:[#allocation7 + $0x30] sm:$0xff]
    %v1031 = vld [vmem:[#allocation7 + $0x38] sm:$0xff]
    %v1032 = vld [vmem:[#allocation7 + $0x40] sm:$0xff]
    %v1033 = vld [vmem:[#allocation7 + $0x48] sm:$0xff]
    %v1034 = vld [vmem:[#allocation7 + $0x50] sm:$0xff]
    %v1035 = vld [vmem:[#allocation7 + $0x58] sm:$0xff]
    %v1036 = vld [vmem:[#allocation7 + $0x60] sm:$0xff]
    %v1037 = vld [vmem:[#allocation7 + $0x68] sm:$0xff]
    %v1038 = vld [vmem:[#allocation7 + $0x70] sm:$0xff]
    %v1039 = vld [vmem:[#allocation7 + $0x78] sm:$0xff]
    %v1040 = vld [vmem:[#allocation7 + $0x80] sm:$0xff]
    %v1041 = vld [vmem:[#allocation7 + $0x88] sm:$0xff]
    %v1042 = vld [vmem:[#allocation7 + $0x90] sm:$0xff]
    %v1043 = vld [vmem:[#allocation7 + $0x98] sm:$0xff]
    %v1044 = vld [vmem:[#allocation7 + $0xa0] sm:$0xff]
    %v1045 = vld [vmem:[#allocation7 + $0xa8] sm:$0xff]
    %v1046 = vld [vmem:[#allocation7 + $0xb0] sm:$0xff]
    %v1047 = vld [vmem:[#allocation7 + $0xb8] sm:$0xff]
    %v1048 = vld [vmem:[#allocation7 + $0xc0] sm:$0xff]
    %v1049 = vld [vmem:[#allocation7 + $0xc8] sm:$0xff]
    %v1050 = vld [vmem:[#allocation7 + $0xd0] sm:$0xff]
    %v1051 = vld [vmem:[#allocation7 + $0xd8] sm:$0xff]
    %v1052 = vld [vmem:[#allocation7 + $0xe0] sm:$0xff]
    %v1053 = vld [vmem:[#allocation7 + $0xe8] sm:$0xff]
    %v1054 = vld [vmem:[#allocation7 + $0xf0] sm:$0xff]
    %v1055 = vld [vmem:[#allocation7 + $0xf8] sm:$0xff]
    %v1056 = vld [vmem:[#allocation7 + $0x100] sm:$0xff]
    %v1057 = vld [vmem:[#allocation7 + $0x108] sm:$0xff]
    %v1058 = vld [vmem:[#allocation7 + $0x110] sm:$0xff]
    %v1059 = vld [vmem:[#allocation7 + $0x118] sm:$0xff]
    %v1060 = vld [vmem:[#allocation7 + $0x120] sm:$0xff]
    %v1061 = vld [vmem:[#allocation7 + $0x128] sm:$0xff]
    %v1062 = vld [vmem:[#allocation7 + $0x130] sm:$0xff]
    %v1063 = vld [vmem:[#allocation7 + $0x138] sm:$0xff]
    %v1064 = vld [vmem:[#allocation7 + $0x140] sm:$0xff]
    %v1065 = vld [vmem:[#allocation7 + $0x148] sm:$0xff]
    %v1066 = vld [vmem:[#allocation7 + $0x150] sm:$0xff]
    %v1067 = vld [vmem:[#allocation7 + $0x158] sm:$0xff]
    %v1068 = vld [vmem:[#allocation7 + $0x160] sm:$0xff]
    %v1069 = vld [vmem:[#allocation7 + $0x168] sm:$0xff]
    %v1070 = vld [vmem:[#allocation7 + $0x170] sm:$0xff]
    %v1071 = vld [vmem:[#allocation7 + $0x178] sm:$0xff]
    %v1072 = vld [vmem:[#allocation7 + $0x180] sm:$0xff]
    %v1073 = vld [vmem:[#allocation7 + $0x188] sm:$0xff]
    %v1074 = vld [vmem:[#allocation7 + $0x190] sm:$0xff]
    %v1075 = vld [vmem:[#allocation7 + $0x198] sm:$0xff]
    %v1076 = vld [vmem:[#allocation7 + $0x1a0] sm:$0xff]
    %v1077 = vld [vmem:[#allocation7 + $0x1a8] sm:$0xff]
    %v1078 = vld [vmem:[#allocation7 + $0x1b0] sm:$0xff]
    %v1079 = vld [vmem:[#allocation7 + $0x1b8] sm:$0xff]
    %v1080 = vld [vmem:[#allocation7 + $0x1c0] sm:$0xff]
    %v1081 = vld [vmem:[#allocation7 + $0x1c8] sm:$0xff]
    %v1082 = vld [vmem:[#allocation7 + $0x1d0] sm:$0xff]
    %v1083 = vld [vmem:[#allocation7 + $0x1d8] sm:$0xff]
    %v1084 = vld [vmem:[#allocation7 + $0x1e0] sm:$0xff]
    %v1085 = vld [vmem:[#allocation7 + $0x1e8] sm:$0xff]
    %v1086 = vld [vmem:[#allocation7 + $0x1f0] sm:$0xff]
    %v1087 = vld [vmem:[#allocation7 + $0x1f8] sm:$0xff]
    %v1088 = vld [vmem:[#allocation7 + $0x200] sm:$0xff]
    %v1089 = vld [vmem:[#allocation7 + $0x208] sm:$0xff]
    %v1090 = vld [vmem:[#allocation7 + $0x210] sm:$0xff]
    %v1091 = vld [vmem:[#allocation7 + $0x218] sm:$0xff]
    %v1092 = vld [vmem:[#allocation7 + $0x220] sm:$0xff]
    %v1093 = vld [vmem:[#allocation7 + $0x228] sm:$0xff]
    %v1094 = vld [vmem:[#allocation7 + $0x230] sm:$0xff]
    %v1095 = vld [vmem:[#allocation7 + $0x238] sm:$0xff]
    %v1096 = vld [vmem:[#allocation7 + $0x240] sm:$0xff]
    %v1097 = vld [vmem:[#allocation7 + $0x248] sm:$0xff]
    %v1098 = vld [vmem:[#allocation7 + $0x250] sm:$0xff]
    %v1099 = vld [vmem:[#allocation7 + $0x258] sm:$0xff]
    %v1100 = vld [vmem:[#allocation7 + $0x260] sm:$0xff]
    %v1101 = vld [vmem:[#allocation7 + $0x268] sm:$0xff]
    %v1102 = vld [vmem:[#allocation7 + $0x270] sm:$0xff]
    %v1103 = vld [vmem:[#allocation7 + $0x278] sm:$0xff]
    %v1104 = vld [vmem:[#allocation7 + $0x280] sm:$0xff]
    %v1105 = vld [vmem:[#allocation7 + $0x288] sm:$0xff]
    %v1106 = vld [vmem:[#allocation7 + $0x290] sm:$0xff]
    %v1107 = vld [vmem:[#allocation7 + $0x298] sm:$0xff]
    %v1108 = vld [vmem:[#allocation7 + $0x2a0] sm:$0xff]
    %v1109 = vld [vmem:[#allocation7 + $0x2a8] sm:$0xff]
    %v1110 = vld [vmem:[#allocation7 + $0x2b0] sm:$0xff]
    %v1111 = vld [vmem:[#allocation7 + $0x2b8] sm:$0xff]
    %v1112 = vld [vmem:[#allocation7 + $0x2c0] sm:$0xff]
    %v1113 = vld [vmem:[#allocation7 + $0x2c8] sm:$0xff]
    %v1114 = vld [vmem:[#allocation7 + $0x2d0] sm:$0xff]
    %v1115 = vld [vmem:[#allocation7 + $0x2d8] sm:$0xff]
    %v1116 = vld [vmem:[#allocation7 + $0x2e0] sm:$0xff]
    %v1117 = vld [vmem:[#allocation7 + $0x2e8] sm:$0xff]
    %v1118 = vld [vmem:[#allocation7 + $0x2f0] sm:$0xff]
    %v1119 = vld [vmem:[#allocation7 + $0x2f8] sm:$0xff]
    %v1120 = vld [vmem:[#allocation7 + $0x300] sm:$0xff]
    %v1121 = vld [vmem:[#allocation7 + $0x308] sm:$0xff]
    %v1122 = vld [vmem:[#allocation7 + $0x310] sm:$0xff]
    %v1123 = vld [vmem:[#allocation7 + $0x318] sm:$0xff]
    %v1124 = vld [vmem:[#allocation7 + $0x320] sm:$0xff]
    %v1125 = vld [vmem:[#allocation7 + $0x328] sm:$0xff]
    %v1126 = vld [vmem:[#allocation7 + $0x330] sm:$0xff]
    %v1127 = vld [vmem:[#allocation7 + $0x338] sm:$0xff]
    %v1128 = vld [vmem:[#allocation7 + $0x340] sm:$0xff]
    %v1129 = vld [vmem:[#allocation7 + $0x348] sm:$0xff]
    %v1130 = vld [vmem:[#allocation7 + $0x350] sm:$0xff]
    %v1131 = vld [vmem:[#allocation7 + $0x358] sm:$0xff]
    %v1132 = vld [vmem:[#allocation7 + $0x360] sm:$0xff]
    %v1133 = vld [vmem:[#allocation7 + $0x368] sm:$0xff]
    %v1134 = vld [vmem:[#allocation7 + $0x370] sm:$0xff]
    %v1135 = vld [vmem:[#allocation7 + $0x378] sm:$0xff]
    %v1136 = vld [vmem:[#allocation7 + $0x380] sm:$0xff]
    %v1137 = vld [vmem:[#allocation7 + $0x388] sm:$0xff]
    %v1138 = vld [vmem:[#allocation7 + $0x390] sm:$0xff]
    %v1139 = vld [vmem:[#allocation7 + $0x398] sm:$0xff]
    %v1140 = vld [vmem:[#allocation7 + $0x3a0] sm:$0xff]
    %v1141 = vld [vmem:[#allocation7 + $0x3a8] sm:$0xff]
    %v1142 = vld [vmem:[#allocation7 + $0x3b0] sm:$0xff]
    %v1143 = vld [vmem:[#allocation7 + $0x3b8] sm:$0xff]
    %v1144 = vld [vmem:[#allocation7 + $0x3c0] sm:$0xff]
    %v1145 = vld [vmem:[#allocation7 + $0x3c8] sm:$0xff]
    %v1146 = vld [vmem:[#allocation7 + $0x3d0] sm:$0xff]
    %v1147 = vld [vmem:[#allocation7 + $0x3d8] sm:$0xff]
    %v1148 = vld [vmem:[#allocation7 + $0x3e0] sm:$0xff]
    %v1149 = vld [vmem:[#allocation7 + $0x3e8] sm:$0xff]
    %v1150 = vld [vmem:[#allocation7 + $0x3f0] sm:$0xff]
    %v1151 = vld [vmem:[#allocation7 + $0x3f8] sm:$0xff]
    %v1152 = vld [vmem:[%s4] sm:$0xff]
    %v1154 = vlaneseq
    %v1155 = vshrl.u32 %v1154, 7
    %v1156 = vsub.s32 0, %v1155
    %v1157 = vrot.slane %v1152, %v1156
    %v1158 = vlaneseq
    %v1159 = vshrl.u32 %v1158, 7
    %v1160 = vsub.s32 1, %v1159
    %v1161 = vrot.slane %v1152, %v1160
    %v1162 = vlaneseq
    %v1163 = vshrl.u32 %v1162, 7
    %v1164 = vsub.s32 2, %v1163
    %v1165 = vrot.slane %v1152, %v1164
    %v1166 = vlaneseq
    %v1167 = vshrl.u32 %v1166, 7
    %v1168 = vsub.s32 3, %v1167
    %v1169 = vrot.slane %v1152, %v1168
    %v1170 = vlaneseq
    %v1171 = vshrl.u32 %v1170, 7
    %v1172 = vsub.s32 4, %v1171
    %v1173 = vrot.slane %v1152, %v1172
    %v1174 = vlaneseq
    %v1175 = vshrl.u32 %v1174, 7
    %v1176 = vsub.s32 5, %v1175
    %v1177 = vrot.slane %v1152, %v1176
    %v1178 = vlaneseq
    %v1179 = vshrl.u32 %v1178, 7
    %v1180 = vsub.s32 6, %v1179
    %v1181 = vrot.slane %v1152, %v1180
    %v1182 = vlaneseq
    %v1183 = vshrl.u32 %v1182, 7
    %v1184 = vsub.s32 7, %v1183
    %v1185 = vrot.slane %v1152, %v1184
    %v1322 = vunpack.c.l.b16 %v1024
    %v1323 = vunpack.c.h.b16 %v1024
    %v1324 = vunpack.c.l.b16 %v1025
    %v1325 = vunpack.c.h.b16 %v1025
    %v1326 = vunpack.c.l.b16 %v1026
    %v1327 = vunpack.c.h.b16 %v1026
    %v1328 = vunpack.c.l.b16 %v1027
    %v1329 = vunpack.c.h.b16 %v1027
    %v1330 = vunpack.c.l.b16 %v1028
    %v1331 = vunpack.c.h.b16 %v1028
    %v1332 = vunpack.c.l.b16 %v1029
    %v1333 = vunpack.c.h.b16 %v1029
    %v1334 = vunpack.c.l.b16 %v1030
    %v1335 = vunpack.c.h.b16 %v1030
    %v1336 = vunpack.c.l.b16 %v1031
    %v1337 = vunpack.c.h.b16 %v1031
    %v1338 = vunpack.c.l.b16 %v1032
    %v1339 = vunpack.c.h.b16 %v1032
    %v1340 = vunpack.c.l.b16 %v1033
    %v1341 = vunpack.c.h.b16 %v1033
    %v1342 = vunpack.c.l.b16 %v1034
    %v1343 = vunpack.c.h.b16 %v1034
    %v1344 = vunpack.c.l.b16 %v1035
    %v1345 = vunpack.c.h.b16 %v1035
    %v1346 = vunpack.c.l.b16 %v1036
    %v1347 = vunpack.c.h.b16 %v1036
    %v1348 = vunpack.c.l.b16 %v1037
    %v1349 = vunpack.c.h.b16 %v1037
    %v1350 = vunpack.c.l.b16 %v1038
    %v1351 = vunpack.c.h.b16 %v1038
    %v1352 = vunpack.c.l.b16 %v1039
    %v1353 = vunpack.c.h.b16 %v1039
    %v1354 = vunpack.c.l.b16 %v1040
    %v1355 = vunpack.c.h.b16 %v1040
    %v1356 = vunpack.c.l.b16 %v1041
    %v1357 = vunpack.c.h.b16 %v1041
    %v1358 = vunpack.c.l.b16 %v1042
    %v1359 = vunpack.c.h.b16 %v1042
    %v1360 = vunpack.c.l.b16 %v1043
    %v1361 = vunpack.c.h.b16 %v1043
    %v1362 = vunpack.c.l.b16 %v1044
    %v1363 = vunpack.c.h.b16 %v1044
    %v1364 = vunpack.c.l.b16 %v1045
    %v1365 = vunpack.c.h.b16 %v1045
    %v1366 = vunpack.c.l.b16 %v1046
    %v1367 = vunpack.c.h.b16 %v1046
    %v1368 = vunpack.c.l.b16 %v1047
    %v1369 = vunpack.c.h.b16 %v1047
    %v1370 = vunpack.c.l.b16 %v1048
    %v1371 = vunpack.c.h.b16 %v1048
    %v1372 = vunpack.c.l.b16 %v1049
    %v1373 = vunpack.c.h.b16 %v1049
    %v1374 = vunpack.c.l.b16 %v1050
    %v1375 = vunpack.c.h.b16 %v1050
    %v1376 = vunpack.c.l.b16 %v1051
    %v1377 = vunpack.c.h.b16 %v1051
    %v1378 = vunpack.c.l.b16 %v1052
    %v1379 = vunpack.c.h.b16 %v1052
    %v1380 = vunpack.c.l.b16 %v1053
    %v1381 = vunpack.c.h.b16 %v1053
    %v1382 = vunpack.c.l.b16 %v1054
    %v1383 = vunpack.c.h.b16 %v1054
    %v1384 = vunpack.c.l.b16 %v1055
    %v1385 = vunpack.c.h.b16 %v1055
    %v1386 = vunpack.c.l.b16 %v1056
    %v1387 = vunpack.c.h.b16 %v1056
    %v1388 = vunpack.c.l.b16 %v1057
    %v1389 = vunpack.c.h.b16 %v1057
    %v1390 = vunpack.c.l.b16 %v1058
    %v1391 = vunpack.c.h.b16 %v1058
    %v1392 = vunpack.c.l.b16 %v1059
    %v1393 = vunpack.c.h.b16 %v1059
    %v1394 = vunpack.c.l.b16 %v1060
    %v1395 = vunpack.c.h.b16 %v1060
    %v1396 = vunpack.c.l.b16 %v1061
    %v1397 = vunpack.c.h.b16 %v1061
    %v1398 = vunpack.c.l.b16 %v1062
    %v1399 = vunpack.c.h.b16 %v1062
    %v1400 = vunpack.c.l.b16 %v1063
    %v1401 = vunpack.c.h.b16 %v1063
    %v1402 = vunpack.c.l.b16 %v1064
    %v1403 = vunpack.c.h.b16 %v1064
    %v1404 = vunpack.c.l.b16 %v1065
    %v1405 = vunpack.c.h.b16 %v1065
    %v1406 = vunpack.c.l.b16 %v1066
    %v1407 = vunpack.c.h.b16 %v1066
    %v1408 = vunpack.c.l.b16 %v1067
    %v1409 = vunpack.c.h.b16 %v1067
    %v1410 = vunpack.c.l.b16 %v1068
    %v1411 = vunpack.c.h.b16 %v1068
    %v1412 = vunpack.c.l.b16 %v1069
    %v1413 = vunpack.c.h.b16 %v1069
    %v1414 = vunpack.c.l.b16 %v1070
    %v1415 = vunpack.c.h.b16 %v1070
    %v1416 = vunpack.c.l.b16 %v1071
    %v1417 = vunpack.c.h.b16 %v1071
    %v1418 = vunpack.c.l.b16 %v1072
    %v1419 = vunpack.c.h.b16 %v1072
    %v1420 = vunpack.c.l.b16 %v1073
    %v1421 = vunpack.c.h.b16 %v1073
    %v1422 = vunpack.c.l.b16 %v1074
    %v1423 = vunpack.c.h.b16 %v1074
    %v1424 = vunpack.c.l.b16 %v1075
    %v1425 = vunpack.c.h.b16 %v1075
    %v1426 = vunpack.c.l.b16 %v1076
    %v1427 = vunpack.c.h.b16 %v1076
    %v1428 = vunpack.c.l.b16 %v1077
    %v1429 = vunpack.c.h.b16 %v1077
    %v1430 = vunpack.c.l.b16 %v1078
    %v1431 = vunpack.c.h.b16 %v1078
    %v1432 = vunpack.c.l.b16 %v1079
    %v1433 = vunpack.c.h.b16 %v1079
    %v1434 = vunpack.c.l.b16 %v1080
    %v1435 = vunpack.c.h.b16 %v1080
    %v1436 = vunpack.c.l.b16 %v1081
    %v1437 = vunpack.c.h.b16 %v1081
    %v1438 = vunpack.c.l.b16 %v1082
    %v1439 = vunpack.c.h.b16 %v1082
    %v1440 = vunpack.c.l.b16 %v1083
    %v1441 = vunpack.c.h.b16 %v1083
    %v1442 = vunpack.c.l.b16 %v1084
    %v1443 = vunpack.c.h.b16 %v1084
    %v1444 = vunpack.c.l.b16 %v1085
    %v1445 = vunpack.c.h.b16 %v1085
    %v1446 = vunpack.c.l.b16 %v1086
    %v1447 = vunpack.c.h.b16 %v1086
    %v1448 = vunpack.c.l.b16 %v1087
    %v1449 = vunpack.c.h.b16 %v1087
    %v1450 = vunpack.c.l.b16 %v1088
    %v1451 = vunpack.c.h.b16 %v1088
    %v1452 = vunpack.c.l.b16 %v1089
    %v1453 = vunpack.c.h.b16 %v1089
    %v1454 = vunpack.c.l.b16 %v1090
    %v1455 = vunpack.c.h.b16 %v1090
    %v1456 = vunpack.c.l.b16 %v1091
    %v1457 = vunpack.c.h.b16 %v1091
    %v1458 = vunpack.c.l.b16 %v1092
    %v1459 = vunpack.c.h.b16 %v1092
    %v1460 = vunpack.c.l.b16 %v1093
    %v1461 = vunpack.c.h.b16 %v1093
    %v1462 = vunpack.c.l.b16 %v1094
    %v1463 = vunpack.c.h.b16 %v1094
    %v1464 = vunpack.c.l.b16 %v1095
    %v1465 = vunpack.c.h.b16 %v1095
    %v1466 = vunpack.c.l.b16 %v1096
    %v1467 = vunpack.c.h.b16 %v1096
    %v1468 = vunpack.c.l.b16 %v1097
    %v1469 = vunpack.c.h.b16 %v1097
    %v1470 = vunpack.c.l.b16 %v1098
    %v1471 = vunpack.c.h.b16 %v1098
    %v1472 = vunpack.c.l.b16 %v1099
    %v1473 = vunpack.c.h.b16 %v1099
    %v1474 = vunpack.c.l.b16 %v1100
    %v1475 = vunpack.c.h.b16 %v1100
    %v1476 = vunpack.c.l.b16 %v1101
    %v1477 = vunpack.c.h.b16 %v1101
    %v1478 = vunpack.c.l.b16 %v1102
    %v1479 = vunpack.c.h.b16 %v1102
    %v1480 = vunpack.c.l.b16 %v1103
    %v1481 = vunpack.c.h.b16 %v1103
    %v1482 = vunpack.c.l.b16 %v1104
    %v1483 = vunpack.c.h.b16 %v1104
    %v1484 = vunpack.c.l.b16 %v1105
    %v1485 = vunpack.c.h.b16 %v1105
    %v1486 = vunpack.c.l.b16 %v1106
    %v1487 = vunpack.c.h.b16 %v1106
    %v1488 = vunpack.c.l.b16 %v1107
    %v1489 = vunpack.c.h.b16 %v1107
    %v1490 = vunpack.c.l.b16 %v1108
    %v1491 = vunpack.c.h.b16 %v1108
    %v1492 = vunpack.c.l.b16 %v1109
    %v1493 = vunpack.c.h.b16 %v1109
    %v1494 = vunpack.c.l.b16 %v1110
    %v1495 = vunpack.c.h.b16 %v1110
    %v1496 = vunpack.c.l.b16 %v1111
    %v1497 = vunpack.c.h.b16 %v1111
    %v1498 = vunpack.c.l.b16 %v1112
    %v1499 = vunpack.c.h.b16 %v1112
    %v1500 = vunpack.c.l.b16 %v1113
    %v1501 = vunpack.c.h.b16 %v1113
    %v1502 = vunpack.c.l.b16 %v1114
    %v1503 = vunpack.c.h.b16 %v1114
    %v1504 = vunpack.c.l.b16 %v1115
    %v1505 = vunpack.c.h.b16 %v1115
    %v1506 = vunpack.c.l.b16 %v1116
    %v1507 = vunpack.c.h.b16 %v1116
    %v1508 = vunpack.c.l.b16 %v1117
    %v1509 = vunpack.c.h.b16 %v1117
    %v1510 = vunpack.c.l.b16 %v1118
    %v1511 = vunpack.c.h.b16 %v1118
    %v1512 = vunpack.c.l.b16 %v1119
    %v1513 = vunpack.c.h.b16 %v1119
    %v1514 = vunpack.c.l.b16 %v1120
    %v1515 = vunpack.c.h.b16 %v1120
    %v1516 = vunpack.c.l.b16 %v1121
    %v1517 = vunpack.c.h.b16 %v1121
    %v1518 = vunpack.c.l.b16 %v1122
    %v1519 = vunpack.c.h.b16 %v1122
    %v1520 = vunpack.c.l.b16 %v1123
    %v1521 = vunpack.c.h.b16 %v1123
    %v1522 = vunpack.c.l.b16 %v1124
    %v1523 = vunpack.c.h.b16 %v1124
    %v1524 = vunpack.c.l.b16 %v1125
    %v1525 = vunpack.c.h.b16 %v1125
    %v1526 = vunpack.c.l.b16 %v1126
    %v1527 = vunpack.c.h.b16 %v1126
    %v1528 = vunpack.c.l.b16 %v1127
    %v1529 = vunpack.c.h.b16 %v1127
    %v1530 = vunpack.c.l.b16 %v1128
    %v1531 = vunpack.c.h.b16 %v1128
    %v1532 = vunpack.c.l.b16 %v1129
    %v1533 = vunpack.c.h.b16 %v1129
    %v1534 = vunpack.c.l.b16 %v1130
    %v1535 = vunpack.c.h.b16 %v1130
    %v1536 = vunpack.c.l.b16 %v1131
    %v1537 = vunpack.c.h.b16 %v1131
    %v1538 = vunpack.c.l.b16 %v1132
    %v1539 = vunpack.c.h.b16 %v1132
    %v1540 = vunpack.c.l.b16 %v1133
    %v1541 = vunpack.c.h.b16 %v1133
    %v1542 = vunpack.c.l.b16 %v1134
    %v1543 = vunpack.c.h.b16 %v1134
    %v1544 = vunpack.c.l.b16 %v1135
    %v1545 = vunpack.c.h.b16 %v1135
    %v1546 = vunpack.c.l.b16 %v1136
    %v1547 = vunpack.c.h.b16 %v1136
    %v1548 = vunpack.c.l.b16 %v1137
    %v1549 = vunpack.c.h.b16 %v1137
    %v1550 = vunpack.c.l.b16 %v1138
    %v1551 = vunpack.c.h.b16 %v1138
    %v1552 = vunpack.c.l.b16 %v1139
    %v1553 = vunpack.c.h.b16 %v1139
    %v1554 = vunpack.c.l.b16 %v1140
    %v1555 = vunpack.c.h.b16 %v1140
    %v1556 = vunpack.c.l.b16 %v1141
    %v1557 = vunpack.c.h.b16 %v1141
    %v1558 = vunpack.c.l.b16 %v1142
    %v1559 = vunpack.c.h.b16 %v1142
    %v1560 = vunpack.c.l.b16 %v1143
    %v1561 = vunpack.c.h.b16 %v1143
    %v1562 = vunpack.c.l.b16 %v1144
    %v1563 = vunpack.c.h.b16 %v1144
    %v1564 = vunpack.c.l.b16 %v1145
    %v1565 = vunpack.c.h.b16 %v1145
    %v1566 = vunpack.c.l.b16 %v1146
    %v1567 = vunpack.c.h.b16 %v1146
    %v1568 = vunpack.c.l.b16 %v1147
    %v1569 = vunpack.c.h.b16 %v1147
    %v1570 = vunpack.c.l.b16 %v1148
    %v1571 = vunpack.c.h.b16 %v1148
    %v1572 = vunpack.c.l.b16 %v1149
    %v1573 = vunpack.c.h.b16 %v1149
    %v1574 = vunpack.c.l.b16 %v1150
    %v1575 = vunpack.c.h.b16 %v1150
    %v1576 = vunpack.c.l.b16 %v1151
    %v1577 = vunpack.c.h.b16 %v1151
    %v1578 = vpack.c.b16 %v1330, %v1322
    %v1579 = vpack.c.b16 %v1331, %v1323
    %v1580 = vpack.c.b16 %v1332, %v1324
    %v1581 = vpack.c.b16 %v1333, %v1325
    %v1582 = vpack.c.b16 %v1334, %v1326
    %v1583 = vpack.c.b16 %v1335, %v1327
    %v1584 = vpack.c.b16 %v1336, %v1328
    %v1585 = vpack.c.b16 %v1337, %v1329
    %v1586 = vpack.c.b16 %v1346, %v1338
    %v1587 = vpack.c.b16 %v1347, %v1339
    %v1588 = vpack.c.b16 %v1348, %v1340
    %v1589 = vpack.c.b16 %v1349, %v1341
    %v1590 = vpack.c.b16 %v1350, %v1342
    %v1591 = vpack.c.b16 %v1351, %v1343
    %v1592 = vpack.c.b16 %v1352, %v1344
    %v1593 = vpack.c.b16 %v1353, %v1345
    %v1594 = vpack.c.b16 %v1362, %v1354
    %v1595 = vpack.c.b16 %v1363, %v1355
    %v1596 = vpack.c.b16 %v1364, %v1356
    %v1597 = vpack.c.b16 %v1365, %v1357
    %v1598 = vpack.c.b16 %v1366, %v1358
    %v1599 = vpack.c.b16 %v1367, %v1359
    %v1600 = vpack.c.b16 %v1368, %v1360
    %v1601 = vpack.c.b16 %v1369, %v1361
    %v1602 = vpack.c.b16 %v1378, %v1370
    %v1603 = vpack.c.b16 %v1379, %v1371
    %v1604 = vpack.c.b16 %v1380, %v1372
    %v1605 = vpack.c.b16 %v1381, %v1373
    %v1606 = vpack.c.b16 %v1382, %v1374
    %v1607 = vpack.c.b16 %v1383, %v1375
    %v1608 = vpack.c.b16 %v1384, %v1376
    %v1609 = vpack.c.b16 %v1385, %v1377
    %v1610 = vpack.c.b16 %v1394, %v1386
    %v1611 = vpack.c.b16 %v1395, %v1387
    %v1612 = vpack.c.b16 %v1396, %v1388
    %v1613 = vpack.c.b16 %v1397, %v1389
    %v1614 = vpack.c.b16 %v1398, %v1390
    %v1615 = vpack.c.b16 %v1399, %v1391
    %v1616 = vpack.c.b16 %v1400, %v1392
    %v1617 = vpack.c.b16 %v1401, %v1393
    %v1618 = vpack.c.b16 %v1410, %v1402
    %v1619 = vpack.c.b16 %v1411, %v1403
    %v1620 = vpack.c.b16 %v1412, %v1404
    %v1621 = vpack.c.b16 %v1413, %v1405
    %v1622 = vpack.c.b16 %v1414, %v1406
    %v1623 = vpack.c.b16 %v1415, %v1407
    %v1624 = vpack.c.b16 %v1416, %v1408
    %v1625 = vpack.c.b16 %v1417, %v1409
    %v1626 = vpack.c.b16 %v1426, %v1418
    %v1627 = vpack.c.b16 %v1427, %v1419
    %v1628 = vpack.c.b16 %v1428, %v1420
    %v1629 = vpack.c.b16 %v1429, %v1421
    %v1630 = vpack.c.b16 %v1430, %v1422
    %v1631 = vpack.c.b16 %v1431, %v1423
    %v1632 = vpack.c.b16 %v1432, %v1424
    %v1633 = vpack.c.b16 %v1433, %v1425
    %v1634 = vpack.c.b16 %v1442, %v1434
    %v1635 = vpack.c.b16 %v1443, %v1435
    %v1636 = vpack.c.b16 %v1444, %v1436
    %v1637 = vpack.c.b16 %v1445, %v1437
    %v1638 = vpack.c.b16 %v1446, %v1438
    %v1639 = vpack.c.b16 %v1447, %v1439
    %v1640 = vpack.c.b16 %v1448, %v1440
    %v1641 = vpack.c.b16 %v1449, %v1441
    %v1642 = vpack.c.b16 %v1458, %v1450
    %v1643 = vpack.c.b16 %v1459, %v1451
    %v1644 = vpack.c.b16 %v1460, %v1452
    %v1645 = vpack.c.b16 %v1461, %v1453
    %v1646 = vpack.c.b16 %v1462, %v1454
    %v1647 = vpack.c.b16 %v1463, %v1455
    %v1648 = vpack.c.b16 %v1464, %v1456
    %v1649 = vpack.c.b16 %v1465, %v1457
    %v1650 = vpack.c.b16 %v1474, %v1466
    %v1651 = vpack.c.b16 %v1475, %v1467
    %v1652 = vpack.c.b16 %v1476, %v1468
    %v1653 = vpack.c.b16 %v1477, %v1469
    %v1654 = vpack.c.b16 %v1478, %v1470
    %v1655 = vpack.c.b16 %v1479, %v1471
    %v1656 = vpack.c.b16 %v1480, %v1472
    %v1657 = vpack.c.b16 %v1481, %v1473
    %v1658 = vpack.c.b16 %v1490, %v1482
    %v1659 = vpack.c.b16 %v1491, %v1483
    %v1660 = vpack.c.b16 %v1492, %v1484
    %v1661 = vpack.c.b16 %v1493, %v1485
    %v1662 = vpack.c.b16 %v1494, %v1486
    %v1663 = vpack.c.b16 %v1495, %v1487
    %v1664 = vpack.c.b16 %v1496, %v1488
    %v1665 = vpack.c.b16 %v1497, %v1489
    %v1666 = vpack.c.b16 %v1506, %v1498
    %v1667 = vpack.c.b16 %v1507, %v1499
    %v1668 = vpack.c.b16 %v1508, %v1500
    %v1669 = vpack.c.b16 %v1509, %v1501
    %v1670 = vpack.c.b16 %v1510, %v1502
    %v1671 = vpack.c.b16 %v1511, %v1503
    %v1672 = vpack.c.b16 %v1512, %v1504
    %v1673 = vpack.c.b16 %v1513, %v1505
    %v1674 = vpack.c.b16 %v1522, %v1514
    %v1675 = vpack.c.b16 %v1523, %v1515
    %v1676 = vpack.c.b16 %v1524, %v1516
    %v1677 = vpack.c.b16 %v1525, %v1517
    %v1678 = vpack.c.b16 %v1526, %v1518
    %v1679 = vpack.c.b16 %v1527, %v1519
    %v1680 = vpack.c.b16 %v1528, %v1520
    %v1681 = vpack.c.b16 %v1529, %v1521
    %v1682 = vpack.c.b16 %v1538, %v1530
    %v1683 = vpack.c.b16 %v1539, %v1531
    %v1684 = vpack.c.b16 %v1540, %v1532
    %v1685 = vpack.c.b16 %v1541, %v1533
    %v1686 = vpack.c.b16 %v1542, %v1534
    %v1687 = vpack.c.b16 %v1543, %v1535
    %v1688 = vpack.c.b16 %v1544, %v1536
    %v1689 = vpack.c.b16 %v1545, %v1537
    %v1690 = vpack.c.b16 %v1554, %v1546
    %v1691 = vpack.c.b16 %v1555, %v1547
    %v1692 = vpack.c.b16 %v1556, %v1548
    %v1693 = vpack.c.b16 %v1557, %v1549
    %v1694 = vpack.c.b16 %v1558, %v1550
    %v1695 = vpack.c.b16 %v1559, %v1551
    %v1696 = vpack.c.b16 %v1560, %v1552
    %v1697 = vpack.c.b16 %v1561, %v1553
    %v1698 = vpack.c.b16 %v1570, %v1562
    %v1699 = vpack.c.b16 %v1571, %v1563
    %v1700 = vpack.c.b16 %v1572, %v1564
    %v1701 = vpack.c.b16 %v1573, %v1565
    %v1702 = vpack.c.b16 %v1574, %v1566
    %v1703 = vpack.c.b16 %v1575, %v1567
    %v1704 = vpack.c.b16 %v1576, %v1568
    %v1705 = vpack.c.b16 %v1577, %v1569
    %1834 = vmatprep.subr.bf16.mxu0 %v1579
    %1835 = vmatpush1.bf16.msra.mxu0 %v1578
    %1836 = vmatprep.subr.bf16.mxu0 %v1587
    %1837 = vmatpush1.bf16.msra.mxu0 %v1586
    %1838 = vmatprep.subr.bf16.mxu0 %v1595
    %1839 = vmatpush1.bf16.msra.mxu0 %v1594
    %1840 = vmatprep.subr.bf16.mxu0 %v1603
    %1841 = vmatpush1.bf16.msra.mxu0 %v1602
    %1842 = vmatprep.subr.bf16.mxu0 %v1611
    %1843 = vmatpush1.bf16.msra.mxu0 %v1610
    %1844 = vmatprep.subr.bf16.mxu0 %v1619
    %1845 = vmatpush1.bf16.msra.mxu0 %v1618
    %1846 = vmatprep.subr.bf16.mxu0 %v1627
    %1847 = vmatpush1.bf16.msra.mxu0 %v1626
    %1848 = vmatprep.subr.bf16.mxu0 %v1635
    %1849 = vmatpush1.bf16.msra.mxu0 %v1634
    %1850 = vmatprep.subr.bf16.mxu0 %v1643
    %1851 = vmatpush1.bf16.msra.mxu0 %v1642
    %1852 = vmatprep.subr.bf16.mxu0 %v1651
    %1853 = vmatpush1.bf16.msra.mxu0 %v1650
    %1854 = vmatprep.subr.bf16.mxu0 %v1659
    %1855 = vmatpush1.bf16.msra.mxu0 %v1658
    %1856 = vmatprep.subr.bf16.mxu0 %v1667
    %1857 = vmatpush1.bf16.msra.mxu0 %v1666
    %1858 = vmatprep.subr.bf16.mxu0 %v1675
    %1859 = vmatpush1.bf16.msra.mxu0 %v1674
    %1860 = vmatprep.subr.bf16.mxu0 %v1683
    %1861 = vmatpush1.bf16.msra.mxu0 %v1682
    %1862 = vmatprep.subr.bf16.mxu0 %v1691
    %1863 = vmatpush1.bf16.msra.mxu0 %v1690
    %1864 = vmatprep.subr.bf16.mxu0 %v1699
    %1865 = vmatpush1.bf16.msra.mxu0 %v1698
    %1866 = vmatprep.mubr.bf16.mxu0 %v1023
    %1867 = vmatmul.mubr.bf16.gmra.mrb[0].mxu0 %v1022
    %v1868 = vpop.f32.mrb[0].mxu0
    %v1869 = vadd.f32 %v1157, %v1868
    %v1870 = vpop.f32.mrb[0].mxu0
    %v1871 = vadd.f32 %v1161, %v1870
    %v1872 = vpop.f32.mrb[0].mxu0
    %v1873 = vpop.f32.mrb[0].mxu0
    %1874 = vdwg.mxu0
    %1875 = vmatprep.subr.bf16.mxu0 %v1581
    %1876 = vmatpush1.bf16.msra.mxu0 %v1580
    %1877 = vmatprep.subr.bf16.mxu0 %v1589
    %1878 = vmatpush1.bf16.msra.mxu0 %v1588
    %1879 = vmatprep.subr.bf16.mxu0 %v1597
    %1880 = vmatpush1.bf16.msra.mxu0 %v1596
    %1881 = vmatprep.subr.bf16.mxu0 %v1605
    %1882 = vmatpush1.bf16.msra.mxu0 %v1604
    %1883 = vmatprep.subr.bf16.mxu0 %v1613
    %1884 = vmatpush1.bf16.msra.mxu0 %v1612
    %1885 = vmatprep.subr.bf16.mxu0 %v1621
    %1886 = vmatpush1.bf16.msra.mxu0 %v1620
    %1887 = vmatprep.subr.bf16.mxu0 %v1629
    %1888 = vmatpush1.bf16.msra.mxu0 %v1628
    %1889 = vmatprep.subr.bf16.mxu0 %v1637
    %1890 = vmatpush1.bf16.msra.mxu0 %v1636
    %1891 = vmatprep.subr.bf16.mxu0 %v1645
    %1892 = vmatpush1.bf16.msra.mxu0 %v1644
    %1893 = vmatprep.subr.bf16.mxu0 %v1653
    %1894 = vmatpush1.bf16.msra.mxu0 %v1652
    %1895 = vmatprep.subr.bf16.mxu0 %v1661
    %1896 = vmatpush1.bf16.msra.mxu0 %v1660
    %1897 = vmatprep.subr.bf16.mxu0 %v1669
    %1898 = vmatpush1.bf16.msra.mxu0 %v1668
    %1899 = vmatprep.subr.bf16.mxu0 %v1677
    %1900 = vmatpush1.bf16.msra.mxu0 %v1676
    %1901 = vmatprep.subr.bf16.mxu0 %v1685
    %1902 = vmatpush1.bf16.msra.mxu0 %v1684
    %1903 = vmatprep.subr.bf16.mxu0 %v1693
    %1904 = vmatpush1.bf16.msra.mxu0 %v1692
    %1905 = vmatprep.subr.bf16.mxu0 %v1701
    %1906 = vmatpush1.bf16.msra.mxu0 %v1700
    %1907 = vmatprep.mubr.bf16.mxu0 %v1023
    %1908 = vmatmul.mubr.bf16.gmra.mrb[0].mxu0 %v1022
    %v1909 = vpop.f32.mrb[0].mxu0
    %v1910 = vadd.f32 %v1165, %v1909
    %v1911 = vpop.f32.mrb[0].mxu0
    %v1912 = vadd.f32 %v1169, %v1911
    %v1913 = vpop.f32.mrb[0].mxu0
    %v1914 = vpop.f32.mrb[0].mxu0
    %1915 = vdwg.mxu0
    %1916 = vmatprep.subr.bf16.mxu0 %v1583
    %1917 = vmatpush1.bf16.msra.mxu0 %v1582
    %1918 = vmatprep.subr.bf16.mxu0 %v1591
    %1919 = vmatpush1.bf16.msra.mxu0 %v1590
    %1920 = vmatprep.subr.bf16.mxu0 %v1599
    %1921 = vmatpush1.bf16.msra.mxu0 %v1598
    %1922 = vmatprep.subr.bf16.mxu0 %v1607
    %1923 = vmatpush1.bf16.msra.mxu0 %v1606
    %1924 = vmatprep.subr.bf16.mxu0 %v1615
    %1925 = vmatpush1.bf16.msra.mxu0 %v1614
    %1926 = vmatprep.subr.bf16.mxu0 %v1623
    %1927 = vmatpush1.bf16.msra.mxu0 %v1622
    %1928 = vmatprep.subr.bf16.mxu0 %v1631
    %1929 = vmatpush1.bf16.msra.mxu0 %v1630
    %1930 = vmatprep.subr.bf16.mxu0 %v1639
    %1931 = vmatpush1.bf16.msra.mxu0 %v1638
    %1932 = vmatprep.subr.bf16.mxu0 %v1647
    %1933 = vmatpush1.bf16.msra.mxu0 %v1646
    %1934 = vmatprep.subr.bf16.mxu0 %v1655
    %1935 = vmatpush1.bf16.msra.mxu0 %v1654
    %1936 = vmatprep.subr.bf16.mxu0 %v1663
    %1937 = vmatpush1.bf16.msra.mxu0 %v1662
    %1938 = vmatprep.subr.bf16.mxu0 %v1671
    %1939 = vmatpush1.bf16.msra.mxu0 %v1670
    %1940 = vmatprep.subr.bf16.mxu0 %v1679
    %1941 = vmatpush1.bf16.msra.mxu0 %v1678
    %1942 = vmatprep.subr.bf16.mxu0 %v1687
    %1943 = vmatpush1.bf16.msra.mxu0 %v1686
    %1944 = vmatprep.subr.bf16.mxu0 %v1695
    %1945 = vmatpush1.bf16.msra.mxu0 %v1694
    %1946 = vmatprep.subr.bf16.mxu0 %v1703
    %1947 = vmatpush1.bf16.msra.mxu0 %v1702
    %1948 = vmatprep.mubr.bf16.mxu0 %v1023
    %1949 = vmatmul.mubr.bf16.gmra.mrb[0].mxu0 %v1022
    %v1950 = vpop.f32.mrb[0].mxu0
    %v1951 = vadd.f32 %v1173, %v1950
    %v1952 = vpop.f32.mrb[0].mxu0
    %v1953 = vadd.f32 %v1177, %v1952
    %v1954 = vpop.f32.mrb[0].mxu0
    %v1955 = vpop.f32.mrb[0].mxu0
    %1956 = vdwg.mxu0
    %1957 = vmatprep.subr.bf16.mxu0 %v1585
    %1958 = vmatpush1.bf16.msra.mxu0 %v1584
    %1959 = vmatprep.subr.bf16.mxu0 %v1593
    %1960 = vmatpush1.bf16.msra.mxu0 %v1592
    %1961 = vmatprep.subr.bf16.mxu0 %v1601
    %1962 = vmatpush1.bf16.msra.mxu0 %v1600
    %1963 = vmatprep.subr.bf16.mxu0 %v1609
    %1964 = vmatpush1.bf16.msra.mxu0 %v1608
    %1965 = vmatprep.subr.bf16.mxu0 %v1617
    %1966 = vmatpush1.bf16.msra.mxu0 %v1616
    %1967 = vmatprep.subr.bf16.mxu0 %v1625
    %1968 = vmatpush1.bf16.msra.mxu0 %v1624
    %1969 = vmatprep.subr.bf16.mxu0 %v1633
    %1970 = vmatpush1.bf16.msra.mxu0 %v1632
    %1971 = vmatprep.subr.bf16.mxu0 %v1641
    %1972 = vmatpush1.bf16.msra.mxu0 %v1640
    %1973 = vmatprep.subr.bf16.mxu0 %v1649
    %1974 = vmatpush1.bf16.msra.mxu0 %v1648
    %1975 = vmatprep.subr.bf16.mxu0 %v1657
    %1976 = vmatpush1.bf16.msra.mxu0 %v1656
    %1977 = vmatprep.subr.bf16.mxu0 %v1665
    %1978 = vmatpush1.bf16.msra.mxu0 %v1664
    %1979 = vmatprep.subr.bf16.mxu0 %v1673
    %1980 = vmatpush1.bf16.msra.mxu0 %v1672
    %1981 = vmatprep.subr.bf16.mxu0 %v1681
    %1982 = vmatpush1.bf16.msra.mxu0 %v1680
    %1983 = vmatprep.subr.bf16.mxu0 %v1689
    %1984 = vmatpush1.bf16.msra.mxu0 %v1688
    %1985 = vmatprep.subr.bf16.mxu0 %v1697
    %1986 = vmatpush1.bf16.msra.mxu0 %v1696
    %1987 = vmatprep.subr.bf16.mxu0 %v1705
    %1988 = vmatpush1.bf16.msra.mxu0 %v1704
    %1989 = vmatprep.mubr.bf16.mxu0 %v1023
    %1990 = vmatmul.mubr.bf16.gmra.mrb[0].mxu0 %v1022
    %v1991 = vpop.f32.mrb[0].mxu0
    %v1992 = vadd.f32 %v1181, %v1991
    %v1993 = vpop.f32.mrb[0].mxu0
    %v1994 = vadd.f32 %v1185, %v1993
    %v1995 = vpop.f32.mrb[0].mxu0
    %v1996 = vpop.f32.mrb[0].mxu0
    %1997 = vdwg.mxu0
    %v1998 = vmax.f32 %v1869, 0.0
    %v1999 = vmax.f32 %v1871, 0.0
    %v2000 = vmax.f32 %v1910, 0.0
    %v2001 = vmax.f32 %v1912, 0.0
    %v2002 = vmax.f32 %v1951, 0.0
    %v2003 = vmax.f32 %v1953, 0.0
    %v2004 = vmax.f32 %v1992, 0.0
    %v2005 = vmax.f32 %v1994, 0.0
    %2006 = vst [vmem:[#allocation8] sm:$0xff] %v1998
    %2007 = vst [vmem:[#allocation8 + $0x8] sm:$0xff] %v1999
    %2008 = vst [vmem:[#allocation8 + $0x10] sm:$0xff] %v2000
    %2009 = vst [vmem:[#allocation8 + $0x18] sm:$0xff] %v2001
    %2010 = vst [vmem:[#allocation8 + $0x20] sm:$0xff] %v2002
    %2011 = vst [vmem:[#allocation8 + $0x28] sm:$0xff] %v2003
    %2012 = vst [vmem:[#allocation8 + $0x30] sm:$0xff] %v2004
    %2013 = vst [vmem:[#allocation8 + $0x38] sm:$0xff] %v2005
    // Predicated region
    $region34: #{tpu_custom_call.1} parent=1 // pred_check
      _
    $region35: #{tpu_custom_call.1} parent=1 // pred_check_branch
      %2015 = sbr.rel (0) target = $region37
    $region36: #{tpu_custom_call.1} parent=1 // pred_region
      %s2017 = ssub.s32 1024, 1024
      %2018 = vsyncadd [#allocation4], %s2017
      %s2020 = sshll.u32 [#allocation8], 4
      %s2021 = int_to_ptr.vmem [resolvable:$true] %s2020
      %2023 = dma.vmem_to_hbm [thread:$0]  %s2021, 1024, %s5, [#allocation4]
    $region37: #{tpu_custom_call.1} parent=1 // pred_fallthru
      _
    // Predicated region
    $region38: #{tpu_custom_call.1} parent=1 // pred_check
      _
    $region39: #{tpu_custom_call.1} parent=1 // pred_check_branch
      %2025 = sbr.rel (0) target = $region41
    $region40: #{tpu_custom_call.1} parent=1 // pred_region
      %2026 = dma.done [#allocation4], 1024
    $region41: #{tpu_custom_call.1} parent=1 // pred_fallthru
      _
    %2027 = vsyncpa [#allocation3], 1
    %2028 = vsyncpa [#allocation6], 1
    %2029 = vsyncpa [#allocation4], 1

</llo_original>
